<compile_context>
chip_gen: v5e
topology: v5e:2x2
jax: 0.10.0
libtpu: 0.0.40
codegen_flags: <defaults>
</compile_context>

<pallas_src>
import functools

import jax
import jax.numpy as jnp
from jax import lax
from jax.experimental import pallas as pl
from jax.experimental.pallas import tpu as pltpu

GATE_W = 256    # per-direction gate width (2 x 128 lanes)
STATE_W = 128   # per-direction h / c state width; real state in lanes [0:H)


# ----------------------------------------------------------------------------
# Pallas kernel: bidirectional single-layer LSTM (batch_first nn.LSTM) fused
# with the final nn.Linear(2H -> L).
# ----------------------------------------------------------------------------
def bilstm_linear_kernel(
    x_ref,        # [T, BB, D]        f32  embeddings (time-major, batch block)
    wih_ref,      # [D, 2*GATE_W]     bf16 input->gates (fwd cols [0:256), bwd [256:512))
    bih_ref,      # [1, 2*GATE_W]     f32  (b_ih + b_hh), same column layout
    whh_ref,      # [2*STATE_W, 2*GATE_W] bf16 block-diag hidden->gates
    wlin_ref,     # [2*STATE_W, LP]   bf16 Linear (rows [0:128) fwd h, [128:256) bwd h)
    blin_ref,     # [1, LP]           f32  Linear bias (zero padded)
    out_ref,      # [T, BB, LP]       f32
    gin_f_ref,    # scratch [T, BB, GATE_W]  f32
    gin_b_ref,    # scratch [T, BB, GATE_W]  f32
    hf_ref,       # scratch [T, BB, STATE_W] bf16
    hb_ref,       # scratch [T, BB, STATE_W] bf16
    *,
    hidden_size: int,
    unroll: int,
):
    T, BB, D = x_ref.shape
    H = hidden_size
    LP = out_ref.shape[-1]

    # ---- 1) hoisted input projection, both directions, biases folded in ----
    x2d = x_ref[...].reshape(T * BB, D).astype(jnp.bfloat16)
    gin = (
        jnp.dot(x2d, wih_ref[...], preferred_element_type=jnp.float32)
        + bih_ref[...]
    )
    gin_f_ref[...] = gin[:, :GATE_W].reshape(T, BB, GATE_W)
    gin_b_ref[...] = gin[:, GATE_W:].reshape(T, BB, GATE_W)

    # lane mask for the g-gate lanes of the o/g 128-lane half (hoisted)
    lane = lax.broadcasted_iota(jnp.int32, (BB, STATE_W), 1)
    g_mask = (lane >= 64) & (lane < 64 + H)

    whh = whh_ref[...]           # [256, 512] bf16, block-diagonal

    def gate_og(gb):
        # gb: [BB, 128] with o @ [0:H) and 2*(g preact) @ [64:64+H)
        # (g columns were pre-scaled x2 at pack time).
        s = jax.nn.sigmoid(gb)
        # tanh(x) = 2*sigmoid(2x) - 1 on the g lanes; plain sigmoid elsewhere.
        return jnp.where(g_mask, 2.0 * s - 1.0, s)

    def direction(ga, gb, c):
        # ga: f @ [0:H), i @ [64:64+H);  gb: o @ [0:H), g @ [64:64+H)
        av = jax.nn.sigmoid(ga)
        bv = gate_og(gb)
        fc = av * c                                     # lanes [0:H)     = f*c
        ig = av * bv                                    # lanes [64:64+H) = i*g
        # roll by 64 over 128 lanes swaps halves (sign convention irrelevant)
        c_new = fc + pltpu.roll(ig, shift=64, axis=1)   # lanes [0:H) = f*c + i*g
        h_new = bv * jnp.tanh(c_new)                    # lanes [0:H) = o*tanh(c)
        return h_new, c_new

    # ---- 2) single time loop, fwd/bwd interleaved, ONE fused matmul/step ----
    def step(t, carry):
        h_cat, cf, cb = carry            # h_cat [BB,256] f32, cf/cb [BB,128] f32
        tb = T - 1 - t
        gin_t = jnp.concatenate([gin_f_ref[t], gin_b_ref[tb]], axis=1)  # [BB,512]
        gates = gin_t + jnp.dot(
            h_cat.astype(jnp.bfloat16), whh, preferred_element_type=jnp.float32
        )                                                                # [BB,512]
        hf, cf = direction(gates[:, 0:128], gates[:, 128:256], cf)
        hb, cb = direction(gates[:, 256:384], gates[:, 384:512], cb)
        hf_ref[t] = hf.astype(jnp.bfloat16)
        hb_ref[tb] = hb.astype(jnp.bfloat16)
        h_cat = jnp.concatenate([hf, hb], axis=1)        # 128-aligned, free
        return h_cat, cf, cb

    zeros128 = jnp.zeros((BB, STATE_W), jnp.float32)
    zeros256 = jnp.zeros((BB, 2 * STATE_W), jnp.float32)
    lax.fori_loop(0, T, step, (zeros256, zeros128, zeros128), unroll=unroll)

    # ---- 3) fused Linear(2H -> L), lane-dense (LP = k*128) output ----
    hcat2d = jnp.concatenate(
        [hf_ref[...].reshape(T * BB, STATE_W),
         hb_ref[...].reshape(T * BB, STATE_W)],
        axis=1,
    )                                                    # [T*BB, 256] bf16
    out = (
        jnp.dot(hcat2d, wlin_ref[...], preferred_element_type=jnp.float32)
        + blin_ref[...]
    )
    out_ref[...] = out.reshape(T, BB, LP)


# ----------------------------------------------------------------------------
# Wrapper: weight repacking (torch layout -> kernel lane layout) + pallas_call.
# ----------------------------------------------------------------------------
def _round_up(x, m):
    return (x + m - 1) // m * m


def pack_lstm_direction(w_ih, w_hh, b_ih, b_hh, hidden_size):
    """torch-layout LSTM params -> kernel gate-column layout.

    torch: w_ih [4H, D], w_hh [4H, H], b_* [4H], gate order (i, f, g, o).
    kernel columns (width 256): [0:H)=f, [64:64+H)=i, [128:128+H)=o, [192:192+H)=g.
    g columns are pre-scaled by 2 so tanh(g) can be recovered from sigmoid.
    """
    H = hidden_size
    D = w_ih.shape[1]
    i_ih, f_ih, g_ih, o_ih = jnp.split(w_ih, 4, axis=0)
    i_hh, f_hh, g_hh, o_hh = jnp.split(w_hh, 4, axis=0)

    def place(i_w, f_w, g_w, o_w, rows):
        out = jnp.zeros((rows, GATE_W), jnp.float32)
        out = out.at[:, 0:H].set(f_w.T)
        out = out.at[:, 64:64 + H].set(i_w.T)
        out = out.at[:, 128:128 + H].set(o_w.T)
        out = out.at[:, 192:192 + H].set(2.0 * g_w.T)      # x2 fold (exact in bf16)
        return out

    wih_k = place(i_ih, f_ih, g_ih, o_ih, D)                        # [D, 256]
    whh_k = jnp.zeros((STATE_W, GATE_W), jnp.float32)
    whh_k = whh_k.at[:H, :].set(place(i_hh, f_hh, g_hh, o_hh, H))   # rows [0:H)

    b = b_ih + b_hh
    bi, bf, bg, bo = jnp.split(b, 4)
    b_k = jnp.zeros((GATE_W,), jnp.float32)
    b_k = b_k.at[0:H].set(bf).at[64:64 + H].set(bi)
    b_k = b_k.at[128:128 + H].set(bo).at[192:192 + H].set(2.0 * bg)
    return wih_k, whh_k, b_k


def pack_params(params, hidden_size, label_size):
    H, L = hidden_size, label_size
    assert H <= 64, "gate lane layout assumes hidden_size <= 64"
    LP = _round_up(max(L, 128), 128)

    wih_f, whh_f, b_f = pack_lstm_direction(
        params["w_ih_f"], params["w_hh_f"], params["b_ih_f"], params["b_hh_f"], H)
    wih_b, whh_b, b_b = pack_lstm_direction(
        params["w_ih_b"], params["w_hh_b"], params["b_ih_b"], params["b_hh_b"], H)

    # Fused input projection [D, 512] and bias [1, 512].
    wih = jnp.concatenate([wih_f, wih_b], axis=1)
    bih = jnp.concatenate([b_f, b_b])[None, :]

    # Fused block-diagonal recurrent weight [256, 512]:
    #   rows [0:128) (fwd h) -> cols [0:256); rows [128:256) (bwd h) -> cols [256:512).
    whh = jnp.zeros((2 * STATE_W, 2 * GATE_W), jnp.float32)
    whh = whh.at[:STATE_W, :GATE_W].set(whh_f)
    whh = whh.at[STATE_W:, GATE_W:].set(whh_b)

    # Fused Linear [256, LP]: rows [0:H) act on fwd h, rows [128:128+H) on bwd h.
    wl, bl = params["w_lin"], params["b_lin"]      # [L, 2H], [L]
    wlin = jnp.zeros((2 * STATE_W, LP), jnp.float32)
    wlin = wlin.at[0:H, :L].set(wl[:, :H].T)
    wlin = wlin.at[STATE_W:STATE_W + H, :L].set(wl[:, H:].T)
    blin = jnp.zeros((1, LP), jnp.float32).at[0, :L].set(bl)

    return dict(
        wih=wih.astype(jnp.bfloat16),
        bih=bih,
        whh=whh.astype(jnp.bfloat16),
        wlin=wlin.astype(jnp.bfloat16),
        blin=blin,
    )


def bilstm_linear_pallas(embed_btd, kparams, hidden_size, label_size, *,
                         batch_block=64):
    """embed [B, T, D] f32 -> linear output [B, T, label_size] f32."""
    B, T, D = embed_btd.shape
    H, L = hidden_size, label_size
    LP = kparams["blin"].shape[-1]

    # Batch block <= 64 rows (keeps carried state + gate temporaries in vregs);
    # pad batch up to a whole number of blocks.
    BB = _round_up(min(batch_block, _round_up(B, 8)), 8)
    Bp = _round_up(B, BB)
    n_blocks = Bp // BB

    x = jnp.transpose(embed_btd, (1, 0, 2))     # time-major [T, B, D]
    x = jnp.pad(x, ((0, 0), (0, Bp - B), (0, 0)))

    kernel = functools.partial(
        bilstm_linear_kernel, hidden_size=H, unroll=min(T, 8))

    grid_spec = pltpu.PrefetchScalarGridSpec(
        num_scalar_prefetch=0,
        grid=(n_blocks,),
        in_specs=[
            pl.BlockSpec((T, BB, D), lambda b: (0, b, 0)),                # x
            pl.BlockSpec((D, 2 * GATE_W), lambda b: (0, 0)),              # wih
            pl.BlockSpec((1, 2 * GATE_W), lambda b: (0, 0)),              # bih
            pl.BlockSpec((2 * STATE_W, 2 * GATE_W), lambda b: (0, 0)),    # whh
            pl.BlockSpec((2 * STATE_W, LP), lambda b: (0, 0)),            # wlin
            pl.BlockSpec((1, LP), lambda b: (0, 0)),                      # blin
        ],
        out_specs=pl.BlockSpec((T, BB, LP), lambda b: (0, b, 0)),
        scratch_shapes=[
            pltpu.VMEM((T, BB, GATE_W), jnp.float32),    # fwd input gates
            pltpu.VMEM((T, BB, GATE_W), jnp.float32),    # bwd input gates
            pltpu.VMEM((T, BB, STATE_W), jnp.bfloat16),  # fwd hidden sequence
            pltpu.VMEM((T, BB, STATE_W), jnp.bfloat16),  # bwd hidden sequence
        ],
    )
    out = pl.pallas_call(
        kernel,
        out_shape=jax.ShapeDtypeStruct((T, Bp, LP), jnp.float32),
        grid_spec=grid_spec,
        compiler_params=pltpu.CompilerParams(
            # Batch axis is independent -> shards across v7x's 2 TensorCores.
            dimension_semantics=("parallel",),
            # Budget below v7x's 64 MiB physical VMEM (fine on v5e/v6e too).
            vmem_limit_bytes=48 * 1024 * 1024,
        ),
    )(
        x,
        kparams["wih"], kparams["bih"], kparams["whh"],
        kparams["wlin"], kparams["blin"],
    )
    out = out[:, :B, :L]
    return jnp.transpose(out, (1, 0, 2))


# ----------------------------------------------------------------------------
# Pure-JAX reference (mirrors nn.LSTM(bidirectional, batch_first) + Linear with
# the same bf16-matmul / f32-accumulate precision choice as the kernel).
# ----------------------------------------------------------------------------
def bilstm_linear_ref(embed_btd, params, hidden_size, label_size):
    B, T, D = embed_btd.shape
    H, L = hidden_size, label_size
    xs = jnp.transpose(embed_btd, (1, 0, 2))   # [T, B, D]

    def run_dir(xs_dir, w_ih, w_hh, b_ih, b_hh):
        b = (b_ih + b_hh)[None, :]
        gin = jnp.dot(
            xs_dir.reshape(T * B, D).astype(jnp.bfloat16),
            w_ih.T.astype(jnp.bfloat16),
            preferred_element_type=jnp.float32,
        ).reshape(T, B, 4 * H) + b

        def step(carry, g_in):
            h, c = carry
            gates = g_in + jnp.dot(
                h.astype(jnp.bfloat16), w_hh.T.astype(jnp.bfloat16),
                preferred_element_type=jnp.float32)
            i = jax.nn.sigmoid(gates[:, 0 * H:1 * H])
            f = jax.nn.sigmoid(gates[:, 1 * H:2 * H])
            g = jnp.tanh(gates[:, 2 * H:3 * H])
            o = jax.nn.sigmoid(gates[:, 3 * H:4 * H])
            c = f * c + i * g
            h = o * jnp.tanh(c)
            return (h, c), h

        init = (jnp.zeros((B, H), jnp.float32), jnp.zeros((B, H), jnp.float32))
        _, hs = lax.scan(step, init, gin)
        return hs                                   # [T, B, H]

    hf = run_dir(xs, params["w_ih_f"], params["w_hh_f"],
                 params["b_ih_f"], params["b_hh_f"])
    hb = run_dir(xs[::-1], params["w_ih_b"], params["w_hh_b"],
                 params["b_ih_b"], params["b_hh_b"])[::-1]
    hcat = jnp.concatenate([hf, hb], axis=-1)       # [T, B, 2H]
    out = jnp.dot(
        hcat.reshape(T * B, 2 * H).astype(jnp.bfloat16),
        params["w_lin"].T.astype(jnp.bfloat16),
        preferred_element_type=jnp.float32,
    ) + params["b_lin"][None, :]
    return jnp.transpose(out.reshape(T, B, L), (1, 0, 2))


# ----------------------------------------------------------------------------
# Plain-JAX glue reproducing the rest of Model.forward (eval path).
# ----------------------------------------------------------------------------
def embedding_lookup(table, ids):
    # nn.Embedding forward (padding_idx=0 handled by a zeroed row 0).
    return jnp.take(table, ids, axis=0)


def build_embed(inputs, params, bi_flag=True):
    ids_uni, ids_bi = inputs
    if bi_flag:
        embed_uni = embedding_lookup(params["emb_uni"], ids_uni)
        embed_bi_left = embedding_lookup(params["emb_bi"], ids_bi[:, :-1])
        embed_bi_right = embedding_lookup(params["emb_bi"], ids_bi[:, 1:])
        return jnp.concatenate((embed_uni, embed_bi_left, embed_bi_right), axis=2)
    return embedding_lookup(params["emb_uni"], ids_uni)


def predict_extraction(linear_output, sentences_lens):
    # TODO(synk): `predict_extraction` is undefined in the reference source;
    # assumed semantics: gather the valid (t < len) timesteps of each sentence
    # into a flat [sum(lens), label_size] matrix.
    rows = [linear_output[b, : int(l), :] for b, l in enumerate(sentences_lens)]
    return jnp.concatenate(rows, axis=0)


def model_forward(inputs, y, sentences_lens, params, kparams,
                  hidden_size, label_size, bi_flag=True, training=False):
    embed = build_embed(inputs, params, bi_flag)
    # dropout is identity in eval mode
    linear_output = bilstm_linear_pallas(embed, kparams, hidden_size, label_size)
    y_predict = predict_extraction(linear_output, sentences_lens)
    if training:
        y_score = jax.nn.log_softmax(y_predict, axis=-1)
        loss = -jnp.mean(jnp.take_along_axis(y_score, y[:, None], axis=1))
        return loss
    max_id = jnp.argmax(y_predict, axis=1)
    correct_count = int(jnp.sum((max_id - y) == 0))
    return correct_count, int(y.shape[0]), max_id, y


# ----------------------------------------------------------------------------
# Deterministic parameter construction (mirrors the nn.Module __init__ shapes,
# in PyTorch layouts).
# ----------------------------------------------------------------------------
def make_params(key, V_uni, V_bi, d_uni, d_bi, H, L):
    D = d_uni + 2 * d_bi
    ks = jax.random.split(key, 12)
    s = 1.0 / jnp.sqrt(H)

    def u(k, shape):
        return jax.random.uniform(k, shape, jnp.float32, -s, s)

    emb_uni = jax.random.normal(ks[0], (V_uni, d_uni), jnp.float32).at[0].set(0.0)
    emb_bi = jax.random.normal(ks[1], (V_bi, d_bi), jnp.float32).at[0].set(0.0)

    return dict(
        emb_uni=emb_uni, emb_bi=emb_bi,
        # torch layouts: weight_ih [4H, D], weight_hh [4H, H], biases [4H]
        w_ih_f=u(ks[2], (4 * H, D)), w_hh_f=u(ks[3], (4 * H, H)),
        b_ih_f=u(ks[4], (4 * H,)), b_hh_f=u(ks[5], (4 * H,)),
        w_ih_b=u(ks[6], (4 * H, D)), w_hh_b=u(ks[7], (4 * H, H)),
        b_ih_b=u(ks[8], (4 * H,)), b_hh_b=u(ks[9], (4 * H,)),
        w_lin=u(ks[10], (L, 2 * H)), b_lin=u(ks[11], (L,)),
    )


if __name__ == "__main__":
    key = jax.random.PRNGKey(0)
    B, T = 2, 8
    V_uni, V_bi = 50, 60
    d_uni, d_bi = 16, 8
    H, L = 32, 4

    k_u, k_b, k_y, k_p = jax.random.split(key, 4)
    ids_uni = jax.random.randint(k_u, (B, T), 1, V_uni, dtype=jnp.int32)
    ids_bi = jax.random.randint(k_b, (B, T + 1), 1, V_bi, dtype=jnp.int32)
    sentences_lens = [T, T - 2]
    y = jax.random.randint(k_y, (sum(sentences_lens),), 0, L, dtype=jnp.int32)

    params = make_params(k_p, V_uni, V_bi, d_uni, d_bi, H, L)
    kparams = pack_params(params, H, L)

    # Correctness check of the fused Pallas kernel against the JAX reference.
    embed = build_embed((ids_uni, ids_bi), params, bi_flag=True)
    out_pallas = bilstm_linear_pallas(embed, kparams, H, L)
    out_ref = bilstm_linear_ref(embed, params, H, L)
    jax.block_until_ready(out_pallas)
    max_err = float(jnp.max(jnp.abs(out_pallas - out_ref)))
    assert max_err < 2e-2, f"kernel mismatch vs reference: max abs err {max_err}"

    correct, total, max_id, y_out = model_forward(
        (ids_uni, ids_bi), y, sentences_lens, params, kparams, H, L,
        bi_flag=True, training=False)
    jax.block_until_ready(max_id)
    assert max_id.shape == (sum(sentences_lens),)
    assert 0 <= correct <= total
    print("KERNEL_OK")
</pallas_src>

<mosaic_0001>
module attributes {stable_mosaic.version = 11 : i64} {
  func.func @bilstm_linear_kernel(%arg0: i32, %arg1: memref<8x8x32xf32, #tpu.memory_space<vmem>>, %arg2: memref<32x512xbf16, #tpu.memory_space<vmem>>, %arg3: memref<1x512xf32, #tpu.memory_space<vmem>>, %arg4: memref<256x512xbf16, #tpu.memory_space<vmem>>, %arg5: memref<256x128xbf16, #tpu.memory_space<vmem>>, %arg6: memref<1x128xf32, #tpu.memory_space<vmem>>, %arg7: memref<8x8x128xf32, #tpu.memory_space<vmem>>, %arg8: memref<8x8x256xf32, #tpu.memory_space<vmem>>, %arg9: memref<8x8x256xf32, #tpu.memory_space<vmem>>, %arg10: memref<8x8x128xbf16, #tpu.memory_space<vmem>>, %arg11: memref<8x8x128xbf16, #tpu.memory_space<vmem>>) attributes {dimension_semantics = [#tpu.dimension_semantics<parallel>], iteration_bounds = array<i64: 1>, scalar_prefetch = 0 : i64, scratch_operands = 4 : i64, tpu.core_type = #tpu.core_type<tc>, window_params = [{transform_indices = @transform_0, window_bounds = array<i64: 8, 8, 32>}, {pipeline_mode = #tpu.pipeline_mode<synchronous>, transform_indices = @transform_1, window_bounds = array<i64: 32, 512>}, {pipeline_mode = #tpu.pipeline_mode<synchronous>, transform_indices = @transform_2, window_bounds = array<i64: 1, 512>}, {pipeline_mode = #tpu.pipeline_mode<synchronous>, transform_indices = @transform_3, window_bounds = array<i64: 256, 512>}, {pipeline_mode = #tpu.pipeline_mode<synchronous>, transform_indices = @transform_4, window_bounds = array<i64: 256, 128>}, {pipeline_mode = #tpu.pipeline_mode<synchronous>, transform_indices = @transform_5, window_bounds = array<i64: 1, 128>}, {transform_indices = @transform_6, window_bounds = array<i64: 8, 8, 128>}]} {
    %c0 = arith.constant 0 : index
    %c0_0 = arith.constant 0 : index
    %c0_1 = arith.constant 0 : index
    %0 = vector.load %arg1[%c0, %c0_0, %c0_1] : memref<8x8x32xf32, #tpu.memory_space<vmem>>, vector<8x8x32xf32>
    %1 = vector.shape_cast %0 : vector<8x8x32xf32> to vector<64x32xf32>
    %2 = arith.truncf %1 : vector<64x32xf32> to vector<64x32xbf16>
    %c0_2 = arith.constant 0 : index
    %c0_3 = arith.constant 0 : index
    %3 = vector.load %arg2[%c0_2, %c0_3] : memref<32x512xbf16, #tpu.memory_space<vmem>>, vector<32x512xbf16>
    %cst = arith.constant dense<0.000000e+00> : vector<64x512xf32>
    %4 = tpu.matmul %2, %3, %cst {dimension_numbers = #tpu.dot_dimension_numbers<[1], [0], [0], [1], [0, 0, 1, 1], [], []>} : vector<64x32xbf16>, vector<32x512xbf16>, vector<64x512xf32> -> vector<64x512xf32>
    %c0_4 = arith.constant 0 : index
    %c0_5 = arith.constant 0 : index
    %5 = vector.load %arg3[%c0_4, %c0_5] : memref<1x512xf32, #tpu.memory_space<vmem>>, vector<1x512xf32>
    %6 = vector.broadcast %5 : vector<1x512xf32> to vector<64x512xf32>
    %7 = arith.addf %4, %6 : vector<64x512xf32>
    %8 = vector.extract_strided_slice %7 {offsets = [0, 0], sizes = [64, 256], strides = [1, 1]} : vector<64x512xf32> to vector<64x256xf32>
    %9 = vector.shape_cast %8 : vector<64x256xf32> to vector<8x8x256xf32>
    %c0_6 = arith.constant 0 : index
    %c0_7 = arith.constant 0 : index
    %c0_8 = arith.constant 0 : index
    %10 = vector.load %arg8[%c0_6, %c0_7, %c0_8] : memref<8x8x256xf32, #tpu.memory_space<vmem>>, vector<8x8x256xf32>
    tpu.vector_store %arg8[%c0_6, %c0_7, %c0_8], %9 {strides = array<i32>} : memref<8x8x256xf32, #tpu.memory_space<vmem>>, vector<8x8x256xf32>,
    %11 = vector.extract_strided_slice %7 {offsets = [0, 256], sizes = [64, 256], strides = [1, 1]} : vector<64x512xf32> to vector<64x256xf32>
    %12 = vector.shape_cast %11 : vector<64x256xf32> to vector<8x8x256xf32>
    %c0_9 = arith.constant 0 : index
    %c0_10 = arith.constant 0 : index
    %c0_11 = arith.constant 0 : index
    %13 = vector.load %arg9[%c0_9, %c0_10, %c0_11] : memref<8x8x256xf32, #tpu.memory_space<vmem>>, vector<8x8x256xf32>
    tpu.vector_store %arg9[%c0_9, %c0_10, %c0_11], %12 {strides = array<i32>} : memref<8x8x256xf32, #tpu.memory_space<vmem>>, vector<8x8x256xf32>,
    %14 = tpu.iota {dimensions = array<i32: 1>} : vector<8x128xi32>
    %c64_i32 = arith.constant 64 : i32
    %15 = vector.broadcast %c64_i32 : i32 to vector<8x128xi32>
    %16 = arith.cmpi sge, %14, %15 : vector<8x128xi32>
    %c96_i32 = arith.constant 96 : i32
    %17 = vector.broadcast %c96_i32 : i32 to vector<8x128xi32>
    %18 = arith.cmpi slt, %14, %17 : vector<8x128xi32>
    %19 = arith.andi %16, %18 : vector<8x128xi1>
    %c0_12 = arith.constant 0 : index
    %c0_13 = arith.constant 0 : index
    %20 = vector.load %arg4[%c0_12, %c0_13] : memref<256x512xbf16, #tpu.memory_space<vmem>>, vector<256x512xbf16>
    %cst_14 = arith.constant 0.000000e+00 : f32
    %21 = vector.broadcast %cst_14 : f32 to vector<8x128xf32>
    %cst_15 = arith.constant 0.000000e+00 : f32
    %22 = vector.broadcast %cst_15 : f32 to vector<8x256xf32>
    %c0_i32 = arith.constant 0 : i32
    %c7_i32 = arith.constant 7 : i32
    %23 = arith.subi %c7_i32, %c0_i32 : i32
    %24 = arith.index_cast %c0_i32 : i32 to index
    %c0_16 = arith.constant 0 : index
    %c0_17 = arith.constant 0 : index
    %25 = vector.load %arg8[%24, %c0_16, %c0_17] : memref<8x8x256xf32, #tpu.memory_space<vmem>>, vector<1x8x256xf32>
    %26 = vector.shape_cast %25 : vector<1x8x256xf32> to vector<8x256xf32>
    %27 = arith.index_cast %23 : i32 to index
    %c0_18 = arith.constant 0 : index
    %c0_19 = arith.constant 0 : index
    %28 = vector.load %arg9[%27, %c0_18, %c0_19] : memref<8x8x256xf32, #tpu.memory_space<vmem>>, vector<1x8x256xf32>
    %29 = vector.shape_cast %28 : vector<1x8x256xf32> to vector<8x256xf32>
    %30 = tpu.concatenate %26, %29 in 1 : vector<8x256xf32>, vector<8x256xf32> -> vector<8x512xf32>
    %31 = arith.truncf %22 : vector<8x256xf32> to vector<8x256xbf16>
    %cst_20 = arith.constant dense<0.000000e+00> : vector<8x512xf32>
    %32 = tpu.matmul %31, %20, %cst_20 {dimension_numbers = #tpu.dot_dimension_numbers<[1], [0], [0], [1], [0, 0, 1, 1], [], []>} : vector<8x256xbf16>, vector<256x512xbf16>, vector<8x512xf32> -> vector<8x512xf32>
    %33 = arith.addf %30, %32 : vector<8x512xf32>
    %34 = vector.extract_strided_slice %33 {offsets = [0, 0], sizes = [8, 128], strides = [1, 1]} : vector<8x512xf32> to vector<8x128xf32>
    %35 = vector.extract_strided_slice %33 {offsets = [0, 128], sizes = [8, 128], strides = [1, 1]} : vector<8x512xf32> to vector<8x128xf32>
    %36 = arith.negf %34 : vector<8x128xf32>
    %37 = math.exp %36 : vector<8x128xf32>
    %cst_21 = arith.constant 1.000000e+00 : f32
    %38 = vector.broadcast %cst_21 : f32 to vector<8x128xf32>
    %39 = arith.addf %38, %37 : vector<8x128xf32>
    %40 = arith.divf %38, %39 : vector<8x128xf32>
    %41 = arith.negf %35 : vector<8x128xf32>
    %42 = math.exp %41 : vector<8x128xf32>
    %cst_22 = arith.constant 1.000000e+00 : f32
    %43 = vector.broadcast %cst_22 : f32 to vector<8x128xf32>
    %44 = arith.addf %43, %42 : vector<8x128xf32>
    %45 = arith.divf %43, %44 : vector<8x128xf32>
    %cst_23 = arith.constant 2.000000e+00 : f32
    %46 = vector.broadcast %cst_23 : f32 to vector<8x128xf32>
    %47 = arith.mulf %46, %45 : vector<8x128xf32>
    %cst_24 = arith.constant 1.000000e+00 : f32
    %48 = vector.broadcast %cst_24 : f32 to vector<8x128xf32>
    %49 = arith.subf %47, %48 : vector<8x128xf32>
    %50 = arith.select %19, %49, %45 : vector<8x128xi1>, vector<8x128xf32>
    %51 = arith.mulf %40, %21 : vector<8x128xf32>
    %52 = arith.mulf %40, %50 : vector<8x128xf32>
    %c64_i32_25 = arith.constant 64 : i32
    %53 = tpu.dynamic_rotate %52 by %c64_i32_25 dim 1 : vector<8x128xf32>, i32 -> vector<8x128xf32>
    %54 = arith.addf %51, %53 : vector<8x128xf32>
    %55 = math.tanh %54 : vector<8x128xf32>
    %56 = arith.mulf %50, %55 : vector<8x128xf32>
    %57 = vector.extract_strided_slice %33 {offsets = [0, 256], sizes = [8, 128], strides = [1, 1]} : vector<8x512xf32> to vector<8x128xf32>
    %58 = vector.extract_strided_slice %33 {offsets = [0, 384], sizes = [8, 128], strides = [1, 1]} : vector<8x512xf32> to vector<8x128xf32>
    %59 = arith.negf %57 : vector<8x128xf32>
    %60 = math.exp %59 : vector<8x128xf32>
    %cst_26 = arith.constant 1.000000e+00 : f32
    %61 = vector.broadcast %cst_26 : f32 to vector<8x128xf32>
    %62 = arith.addf %61, %60 : vector<8x128xf32>
    %63 = arith.divf %61, %62 : vector<8x128xf32>
    %64 = arith.negf %58 : vector<8x128xf32>
    %65 = math.exp %64 : vector<8x128xf32>
    %cst_27 = arith.constant 1.000000e+00 : f32
    %66 = vector.broadcast %cst_27 : f32 to vector<8x128xf32>
    %67 = arith.addf %66, %65 : vector<8x128xf32>
    %68 = arith.divf %66, %67 : vector<8x128xf32>
    %cst_28 = arith.constant 2.000000e+00 : f32
    %69 = vector.broadcast %cst_28 : f32 to vector<8x128xf32>
    %70 = arith.mulf %69, %68 : vector<8x128xf32>
    %cst_29 = arith.constant 1.000000e+00 : f32
    %71 = vector.broadcast %cst_29 : f32 to vector<8x128xf32>
    %72 = arith.subf %70, %71 : vector<8x128xf32>
    %73 = arith.select %19, %72, %68 : vector<8x128xi1>, vector<8x128xf32>
    %74 = arith.mulf %63, %21 : vector<8x128xf32>
    %75 = arith.mulf %63, %73 : vector<8x128xf32>
    %c64_i32_30 = arith.constant 64 : i32
    %76 = tpu.dynamic_rotate %75 by %c64_i32_30 dim 1 : vector<8x128xf32>, i32 -> vector<8x128xf32>
    %77 = arith.addf %74, %76 : vector<8x128xf32>
    %78 = math.tanh %77 : vector<8x128xf32>
    %79 = arith.mulf %73, %78 : vector<8x128xf32>
    %80 = arith.truncf %56 : vector<8x128xf32> to vector<8x128xbf16>
    %81 = arith.index_cast %c0_i32 : i32 to index
    %c0_31 = arith.constant 0 : index
    %c0_32 = arith.constant 0 : index
    %82 = vector.load %arg10[%81, %c0_31, %c0_32] : memref<8x8x128xbf16, #tpu.memory_space<vmem>>, vector<1x8x128xbf16>
    %83 = vector.shape_cast %82 : vector<1x8x128xbf16> to vector<8x128xbf16>
    %84 = vector.shape_cast %80 : vector<8x128xbf16> to vector<1x8x128xbf16>
    tpu.vector_store %arg10[%81, %c0_31, %c0_32], %84 {strides = array<i32>} : memref<8x8x128xbf16, #tpu.memory_space<vmem>>, vector<1x8x128xbf16>,
    %85 = arith.truncf %79 : vector<8x128xf32> to vector<8x128xbf16>
    %86 = arith.index_cast %23 : i32 to index
    %c0_33 = arith.constant 0 : index
    %c0_34 = arith.constant 0 : index
    %87 = vector.load %arg11[%86, %c0_33, %c0_34] : memref<8x8x128xbf16, #tpu.memory_space<vmem>>, vector<1x8x128xbf16>
    %88 = vector.shape_cast %87 : vector<1x8x128xbf16> to vector<8x128xbf16>
    %89 = vector.shape_cast %85 : vector<8x128xbf16> to vector<1x8x128xbf16>
    tpu.vector_store %arg11[%86, %c0_33, %c0_34], %89 {strides = array<i32>} : memref<8x8x128xbf16, #tpu.memory_space<vmem>>, vector<1x8x128xbf16>,
    %90 = tpu.concatenate %56, %79 in 1 : vector<8x128xf32>, vector<8x128xf32> -> vector<8x256xf32>
    %c1_i32 = arith.constant 1 : i32
    %c7_i32_35 = arith.constant 7 : i32
    %91 = arith.subi %c7_i32_35, %c1_i32 : i32
    %92 = arith.index_cast %c1_i32 : i32 to index
    %c0_36 = arith.constant 0 : index
    %c0_37 = arith.constant 0 : index
    %93 = vector.load %arg8[%92, %c0_36, %c0_37] : memref<8x8x256xf32, #tpu.memory_space<vmem>>, vector<1x8x256xf32>
    %94 = vector.shape_cast %93 : vector<1x8x256xf32> to vector<8x256xf32>
    %95 = arith.index_cast %91 : i32 to index
    %c0_38 = arith.constant 0 : index
    %c0_39 = arith.constant 0 : index
    %96 = vector.load %arg9[%95, %c0_38, %c0_39] : memref<8x8x256xf32, #tpu.memory_space<vmem>>, vector<1x8x256xf32>
    %97 = vector.shape_cast %96 : vector<1x8x256xf32> to vector<8x256xf32>
    %98 = tpu.concatenate %94, %97 in 1 : vector<8x256xf32>, vector<8x256xf32> -> vector<8x512xf32>
    %99 = arith.truncf %90 : vector<8x256xf32> to vector<8x256xbf16>
    %cst_40 = arith.constant dense<0.000000e+00> : vector<8x512xf32>
    %100 = tpu.matmul %99, %20, %cst_40 {dimension_numbers = #tpu.dot_dimension_numbers<[1], [0], [0], [1], [0, 0, 1, 1], [], []>} : vector<8x256xbf16>, vector<256x512xbf16>, vector<8x512xf32> -> vector<8x512xf32>
    %101 = arith.addf %98, %100 : vector<8x512xf32>
    %102 = vector.extract_strided_slice %101 {offsets = [0, 0], sizes = [8, 128], strides = [1, 1]} : vector<8x512xf32> to vector<8x128xf32>
    %103 = vector.extract_strided_slice %101 {offsets = [0, 128], sizes = [8, 128], strides = [1, 1]} : vector<8x512xf32> to vector<8x128xf32>
    %104 = arith.negf %102 : vector<8x128xf32>
    %105 = math.exp %104 : vector<8x128xf32>
    %cst_41 = arith.constant 1.000000e+00 : f32
    %106 = vector.broadcast %cst_41 : f32 to vector<8x128xf32>
    %107 = arith.addf %106, %105 : vector<8x128xf32>
    %108 = arith.divf %106, %107 : vector<8x128xf32>
    %109 = arith.negf %103 : vector<8x128xf32>
    %110 = math.exp %109 : vector<8x128xf32>
    %cst_42 = arith.constant 1.000000e+00 : f32
    %111 = vector.broadcast %cst_42 : f32 to vector<8x128xf32>
    %112 = arith.addf %111, %110 : vector<8x128xf32>
    %113 = arith.divf %111, %112 : vector<8x128xf32>
    %cst_43 = arith.constant 2.000000e+00 : f32
    %114 = vector.broadcast %cst_43 : f32 to vector<8x128xf32>
    %115 = arith.mulf %114, %113 : vector<8x128xf32>
    %cst_44 = arith.constant 1.000000e+00 : f32
    %116 = vector.broadcast %cst_44 : f32 to vector<8x128xf32>
    %117 = arith.subf %115, %116 : vector<8x128xf32>
    %118 = arith.select %19, %117, %113 : vector<8x128xi1>, vector<8x128xf32>
    %119 = arith.mulf %108, %54 : vector<8x128xf32>
    %120 = arith.mulf %108, %118 : vector<8x128xf32>
    %c64_i32_45 = arith.constant 64 : i32
    %121 = tpu.dynamic_rotate %120 by %c64_i32_45 dim 1 : vector<8x128xf32>, i32 -> vector<8x128xf32>
    %122 = arith.addf %119, %121 : vector<8x128xf32>
    %123 = math.tanh %122 : vector<8x128xf32>
    %124 = arith.mulf %118, %123 : vector<8x128xf32>
    %125 = vector.extract_strided_slice %101 {offsets = [0, 256], sizes = [8, 128], strides = [1, 1]} : vector<8x512xf32> to vector<8x128xf32>
    %126 = vector.extract_strided_slice %101 {offsets = [0, 384], sizes = [8, 128], strides = [1, 1]} : vector<8x512xf32> to vector<8x128xf32>
    %127 = arith.negf %125 : vector<8x128xf32>
    %128 = math.exp %127 : vector<8x128xf32>
    %cst_46 = arith.constant 1.000000e+00 : f32
    %129 = vector.broadcast %cst_46 : f32 to vector<8x128xf32>
    %130 = arith.addf %129, %128 : vector<8x128xf32>
    %131 = arith.divf %129, %130 : vector<8x128xf32>
    %132 = arith.negf %126 : vector<8x128xf32>
    %133 = math.exp %132 : vector<8x128xf32>
    %cst_47 = arith.constant 1.000000e+00 : f32
    %134 = vector.broadcast %cst_47 : f32 to vector<8x128xf32>
    %135 = arith.addf %134, %133 : vector<8x128xf32>
    %136 = arith.divf %134, %135 : vector<8x128xf32>
    %cst_48 = arith.constant 2.000000e+00 : f32
    %137 = vector.broadcast %cst_48 : f32 to vector<8x128xf32>
    %138 = arith.mulf %137, %136 : vector<8x128xf32>
    %cst_49 = arith.constant 1.000000e+00 : f32
    %139 = vector.broadcast %cst_49 : f32 to vector<8x128xf32>
    %140 = arith.subf %138, %139 : vector<8x128xf32>
    %141 = arith.select %19, %140, %136 : vector<8x128xi1>, vector<8x128xf32>
    %142 = arith.mulf %131, %77 : vector<8x128xf32>
    %143 = arith.mulf %131, %141 : vector<8x128xf32>
    %c64_i32_50 = arith.constant 64 : i32
    %144 = tpu.dynamic_rotate %143 by %c64_i32_50 dim 1 : vector<8x128xf32>, i32 -> vector<8x128xf32>
    %145 = arith.addf %142, %144 : vector<8x128xf32>
    %146 = math.tanh %145 : vector<8x128xf32>
    %147 = arith.mulf %141, %146 : vector<8x128xf32>
    %148 = arith.truncf %124 : vector<8x128xf32> to vector<8x128xbf16>
    %149 = arith.index_cast %c1_i32 : i32 to index
    %c0_51 = arith.constant 0 : index
    %c0_52 = arith.constant 0 : index
    %150 = vector.load %arg10[%149, %c0_51, %c0_52] : memref<8x8x128xbf16, #tpu.memory_space<vmem>>, vector<1x8x128xbf16>
    %151 = vector.shape_cast %150 : vector<1x8x128xbf16> to vector<8x128xbf16>
    %152 = vector.shape_cast %148 : vector<8x128xbf16> to vector<1x8x128xbf16>
    tpu.vector_store %arg10[%149, %c0_51, %c0_52], %152 {strides = array<i32>} : memref<8x8x128xbf16, #tpu.memory_space<vmem>>, vector<1x8x128xbf16>,
    %153 = arith.truncf %147 : vector<8x128xf32> to vector<8x128xbf16>
    %154 = arith.index_cast %91 : i32 to index
    %c0_53 = arith.constant 0 : index
    %c0_54 = arith.constant 0 : index
    %155 = vector.load %arg11[%154, %c0_53, %c0_54] : memref<8x8x128xbf16, #tpu.memory_space<vmem>>, vector<1x8x128xbf16>
    %156 = vector.shape_cast %155 : vector<1x8x128xbf16> to vector<8x128xbf16>
    %157 = vector.shape_cast %153 : vector<8x128xbf16> to vector<1x8x128xbf16>
    tpu.vector_store %arg11[%154, %c0_53, %c0_54], %157 {strides = array<i32>} : memref<8x8x128xbf16, #tpu.memory_space<vmem>>, vector<1x8x128xbf16>,
    %158 = tpu.concatenate %124, %147 in 1 : vector<8x128xf32>, vector<8x128xf32> -> vector<8x256xf32>
    %c2_i32 = arith.constant 2 : i32
    %c7_i32_55 = arith.constant 7 : i32
    %159 = arith.subi %c7_i32_55, %c2_i32 : i32
    %160 = arith.index_cast %c2_i32 : i32 to index
    %c0_56 = arith.constant 0 : index
    %c0_57 = arith.constant 0 : index
    %161 = vector.load %arg8[%160, %c0_56, %c0_57] : memref<8x8x256xf32, #tpu.memory_space<vmem>>, vector<1x8x256xf32>
    %162 = vector.shape_cast %161 : vector<1x8x256xf32> to vector<8x256xf32>
    %163 = arith.index_cast %159 : i32 to index
    %c0_58 = arith.constant 0 : index
    %c0_59 = arith.constant 0 : index
    %164 = vector.load %arg9[%163, %c0_58, %c0_59] : memref<8x8x256xf32, #tpu.memory_space<vmem>>, vector<1x8x256xf32>
    %165 = vector.shape_cast %164 : vector<1x8x256xf32> to vector<8x256xf32>
    %166 = tpu.concatenate %162, %165 in 1 : vector<8x256xf32>, vector<8x256xf32> -> vector<8x512xf32>
    %167 = arith.truncf %158 : vector<8x256xf32> to vector<8x256xbf16>
    %cst_60 = arith.constant dense<0.000000e+00> : vector<8x512xf32>
    %168 = tpu.matmul %167, %20, %cst_60 {dimension_numbers = #tpu.dot_dimension_numbers<[1], [0], [0], [1], [0, 0, 1, 1], [], []>} : vector<8x256xbf16>, vector<256x512xbf16>, vector<8x512xf32> -> vector<8x512xf32>
    %169 = arith.addf %166, %168 : vector<8x512xf32>
    %170 = vector.extract_strided_slice %169 {offsets = [0, 0], sizes = [8, 128], strides = [1, 1]} : vector<8x512xf32> to vector<8x128xf32>
    %171 = vector.extract_strided_slice %169 {offsets = [0, 128], sizes = [8, 128], strides = [1, 1]} : vector<8x512xf32> to vector<8x128xf32>
    %172 = arith.negf %170 : vector<8x128xf32>
    %173 = math.exp %172 : vector<8x128xf32>
    %cst_61 = arith.constant 1.000000e+00 : f32
    %174 = vector.broadcast %cst_61 : f32 to vector<8x128xf32>
    %175 = arith.addf %174, %173 : vector<8x128xf32>
    %176 = arith.divf %174, %175 : vector<8x128xf32>
    %177 = arith.negf %171 : vector<8x128xf32>
    %178 = math.exp %177 : vector<8x128xf32>
    %cst_62 = arith.constant 1.000000e+00 : f32
    %179 = vector.broadcast %cst_62 : f32 to vector<8x128xf32>
    %180 = arith.addf %179, %178 : vector<8x128xf32>
    %181 = arith.divf %179, %180 : vector<8x128xf32>
    %cst_63 = arith.constant 2.000000e+00 : f32
    %182 = vector.broadcast %cst_63 : f32 to vector<8x128xf32>
    %183 = arith.mulf %182, %181 : vector<8x128xf32>
    %cst_64 = arith.constant 1.000000e+00 : f32
    %184 = vector.broadcast %cst_64 : f32 to vector<8x128xf32>
    %185 = arith.subf %183, %184 : vector<8x128xf32>
    %186 = arith.select %19, %185, %181 : vector<8x128xi1>, vector<8x128xf32>
    %187 = arith.mulf %176, %122 : vector<8x128xf32>
    %188 = arith.mulf %176, %186 : vector<8x128xf32>
    %c64_i32_65 = arith.constant 64 : i32
    %189 = tpu.dynamic_rotate %188 by %c64_i32_65 dim 1 : vector<8x128xf32>, i32 -> vector<8x128xf32>
    %190 = arith.addf %187, %189 : vector<8x128xf32>
    %191 = math.tanh %190 : vector<8x128xf32>
    %192 = arith.mulf %186, %191 : vector<8x128xf32>
    %193 = vector.extract_strided_slice %169 {offsets = [0, 256], sizes = [8, 128], strides = [1, 1]} : vector<8x512xf32> to vector<8x128xf32>
    %194 = vector.extract_strided_slice %169 {offsets = [0, 384], sizes = [8, 128], strides = [1, 1]} : vector<8x512xf32> to vector<8x128xf32>
    %195 = arith.negf %193 : vector<8x128xf32>
    %196 = math.exp %195 : vector<8x128xf32>
    %cst_66 = arith.constant 1.000000e+00 : f32
    %197 = vector.broadcast %cst_66 : f32 to vector<8x128xf32>
    %198 = arith.addf %197, %196 : vector<8x128xf32>
    %199 = arith.divf %197, %198 : vector<8x128xf32>
    %200 = arith.negf %194 : vector<8x128xf32>
    %201 = math.exp %200 : vector<8x128xf32>
    %cst_67 = arith.constant 1.000000e+00 : f32
    %202 = vector.broadcast %cst_67 : f32 to vector<8x128xf32>
    %203 = arith.addf %202, %201 : vector<8x128xf32>
    %204 = arith.divf %202, %203 : vector<8x128xf32>
    %cst_68 = arith.constant 2.000000e+00 : f32
    %205 = vector.broadcast %cst_68 : f32 to vector<8x128xf32>
    %206 = arith.mulf %205, %204 : vector<8x128xf32>
    %cst_69 = arith.constant 1.000000e+00 : f32
    %207 = vector.broadcast %cst_69 : f32 to vector<8x128xf32>
    %208 = arith.subf %206, %207 : vector<8x128xf32>
    %209 = arith.select %19, %208, %204 : vector<8x128xi1>, vector<8x128xf32>
    %210 = arith.mulf %199, %145 : vector<8x128xf32>
    %211 = arith.mulf %199, %209 : vector<8x128xf32>
    %c64_i32_70 = arith.constant 64 : i32
    %212 = tpu.dynamic_rotate %211 by %c64_i32_70 dim 1 : vector<8x128xf32>, i32 -> vector<8x128xf32>
    %213 = arith.addf %210, %212 : vector<8x128xf32>
    %214 = math.tanh %213 : vector<8x128xf32>
    %215 = arith.mulf %209, %214 : vector<8x128xf32>
    %216 = arith.truncf %192 : vector<8x128xf32> to vector<8x128xbf16>
    %217 = arith.index_cast %c2_i32 : i32 to index
    %c0_71 = arith.constant 0 : index
    %c0_72 = arith.constant 0 : index
    %218 = vector.load %arg10[%217, %c0_71, %c0_72] : memref<8x8x128xbf16, #tpu.memory_space<vmem>>, vector<1x8x128xbf16>
    %219 = vector.shape_cast %218 : vector<1x8x128xbf16> to vector<8x128xbf16>
    %220 = vector.shape_cast %216 : vector<8x128xbf16> to vector<1x8x128xbf16>
    tpu.vector_store %arg10[%217, %c0_71, %c0_72], %220 {strides = array<i32>} : memref<8x8x128xbf16, #tpu.memory_space<vmem>>, vector<1x8x128xbf16>,
    %221 = arith.truncf %215 : vector<8x128xf32> to vector<8x128xbf16>
    %222 = arith.index_cast %159 : i32 to index
    %c0_73 = arith.constant 0 : index
    %c0_74 = arith.constant 0 : index
    %223 = vector.load %arg11[%222, %c0_73, %c0_74] : memref<8x8x128xbf16, #tpu.memory_space<vmem>>, vector<1x8x128xbf16>
    %224 = vector.shape_cast %223 : vector<1x8x128xbf16> to vector<8x128xbf16>
    %225 = vector.shape_cast %221 : vector<8x128xbf16> to vector<1x8x128xbf16>
    tpu.vector_store %arg11[%222, %c0_73, %c0_74], %225 {strides = array<i32>} : memref<8x8x128xbf16, #tpu.memory_space<vmem>>, vector<1x8x128xbf16>,
    %226 = tpu.concatenate %192, %215 in 1 : vector<8x128xf32>, vector<8x128xf32> -> vector<8x256xf32>
    %c3_i32 = arith.constant 3 : i32
    %c7_i32_75 = arith.constant 7 : i32
    %227 = arith.subi %c7_i32_75, %c3_i32 : i32
    %228 = arith.index_cast %c3_i32 : i32 to index
    %c0_76 = arith.constant 0 : index
    %c0_77 = arith.constant 0 : index
    %229 = vector.load %arg8[%228, %c0_76, %c0_77] : memref<8x8x256xf32, #tpu.memory_space<vmem>>, vector<1x8x256xf32>
    %230 = vector.shape_cast %229 : vector<1x8x256xf32> to vector<8x256xf32>
    %231 = arith.index_cast %227 : i32 to index
    %c0_78 = arith.constant 0 : index
    %c0_79 = arith.constant 0 : index
    %232 = vector.load %arg9[%231, %c0_78, %c0_79] : memref<8x8x256xf32, #tpu.memory_space<vmem>>, vector<1x8x256xf32>
    %233 = vector.shape_cast %232 : vector<1x8x256xf32> to vector<8x256xf32>
    %234 = tpu.concatenate %230, %233 in 1 : vector<8x256xf32>, vector<8x256xf32> -> vector<8x512xf32>
    %235 = arith.truncf %226 : vector<8x256xf32> to vector<8x256xbf16>
    %cst_80 = arith.constant dense<0.000000e+00> : vector<8x512xf32>
    %236 = tpu.matmul %235, %20, %cst_80 {dimension_numbers = #tpu.dot_dimension_numbers<[1], [0], [0], [1], [0, 0, 1, 1], [], []>} : vector<8x256xbf16>, vector<256x512xbf16>, vector<8x512xf32> -> vector<8x512xf32>
    %237 = arith.addf %234, %236 : vector<8x512xf32>
    %238 = vector.extract_strided_slice %237 {offsets = [0, 0], sizes = [8, 128], strides = [1, 1]} : vector<8x512xf32> to vector<8x128xf32>
    %239 = vector.extract_strided_slice %237 {offsets = [0, 128], sizes = [8, 128], strides = [1, 1]} : vector<8x512xf32> to vector<8x128xf32>
    %240 = arith.negf %238 : vector<8x128xf32>
    %241 = math.exp %240 : vector<8x128xf32>
    %cst_81 = arith.constant 1.000000e+00 : f32
    %242 = vector.broadcast %cst_81 : f32 to vector<8x128xf32>
    %243 = arith.addf %242, %241 : vector<8x128xf32>
    %244 = arith.divf %242, %243 : vector<8x128xf32>
    %245 = arith.negf %239 : vector<8x128xf32>
    %246 = math.exp %245 : vector<8x128xf32>
    %cst_82 = arith.constant 1.000000e+00 : f32
    %247 = vector.broadcast %cst_82 : f32 to vector<8x128xf32>
    %248 = arith.addf %247, %246 : vector<8x128xf32>
    %249 = arith.divf %247, %248 : vector<8x128xf32>
    %cst_83 = arith.constant 2.000000e+00 : f32
    %250 = vector.broadcast %cst_83 : f32 to vector<8x128xf32>
    %251 = arith.mulf %250, %249 : vector<8x128xf32>
    %cst_84 = arith.constant 1.000000e+00 : f32
    %252 = vector.broadcast %cst_84 : f32 to vector<8x128xf32>
    %253 = arith.subf %251, %252 : vector<8x128xf32>
    %254 = arith.select %19, %253, %249 : vector<8x128xi1>, vector<8x128xf32>
    %255 = arith.mulf %244, %190 : vector<8x128xf32>
    %256 = arith.mulf %244, %254 : vector<8x128xf32>
    %c64_i32_85 = arith.constant 64 : i32
    %257 = tpu.dynamic_rotate %256 by %c64_i32_85 dim 1 : vector<8x128xf32>, i32 -> vector<8x128xf32>
    %258 = arith.addf %255, %257 : vector<8x128xf32>
    %259 = math.tanh %258 : vector<8x128xf32>
    %260 = arith.mulf %254, %259 : vector<8x128xf32>
    %261 = vector.extract_strided_slice %237 {offsets = [0, 256], sizes = [8, 128], strides = [1, 1]} : vector<8x512xf32> to vector<8x128xf32>
    %262 = vector.extract_strided_slice %237 {offsets = [0, 384], sizes = [8, 128], strides = [1, 1]} : vector<8x512xf32> to vector<8x128xf32>
    %263 = arith.negf %261 : vector<8x128xf32>
    %264 = math.exp %263 : vector<8x128xf32>
    %cst_86 = arith.constant 1.000000e+00 : f32
    %265 = vector.broadcast %cst_86 : f32 to vector<8x128xf32>
    %266 = arith.addf %265, %264 : vector<8x128xf32>
    %267 = arith.divf %265, %266 : vector<8x128xf32>
    %268 = arith.negf %262 : vector<8x128xf32>
    %269 = math.exp %268 : vector<8x128xf32>
    %cst_87 = arith.constant 1.000000e+00 : f32
    %270 = vector.broadcast %cst_87 : f32 to vector<8x128xf32>
    %271 = arith.addf %270, %269 : vector<8x128xf32>
    %272 = arith.divf %270, %271 : vector<8x128xf32>
    %cst_88 = arith.constant 2.000000e+00 : f32
    %273 = vector.broadcast %cst_88 : f32 to vector<8x128xf32>
    %274 = arith.mulf %273, %272 : vector<8x128xf32>
    %cst_89 = arith.constant 1.000000e+00 : f32
    %275 = vector.broadcast %cst_89 : f32 to vector<8x128xf32>
    %276 = arith.subf %274, %275 : vector<8x128xf32>
    %277 = arith.select %19, %276, %272 : vector<8x128xi1>, vector<8x128xf32>
    %278 = arith.mulf %267, %213 : vector<8x128xf32>
    %279 = arith.mulf %267, %277 : vector<8x128xf32>
    %c64_i32_90 = arith.constant 64 : i32
    %280 = tpu.dynamic_rotate %279 by %c64_i32_90 dim 1 : vector<8x128xf32>, i32 -> vector<8x128xf32>
    %281 = arith.addf %278, %280 : vector<8x128xf32>
    %282 = math.tanh %281 : vector<8x128xf32>
    %283 = arith.mulf %277, %282 : vector<8x128xf32>
    %284 = arith.truncf %260 : vector<8x128xf32> to vector<8x128xbf16>
    %285 = arith.index_cast %c3_i32 : i32 to index
    %c0_91 = arith.constant 0 : index
    %c0_92 = arith.constant 0 : index
    %286 = vector.load %arg10[%285, %c0_91, %c0_92] : memref<8x8x128xbf16, #tpu.memory_space<vmem>>, vector<1x8x128xbf16>
    %287 = vector.shape_cast %286 : vector<1x8x128xbf16> to vector<8x128xbf16>
    %288 = vector.shape_cast %284 : vector<8x128xbf16> to vector<1x8x128xbf16>
    tpu.vector_store %arg10[%285, %c0_91, %c0_92], %288 {strides = array<i32>} : memref<8x8x128xbf16, #tpu.memory_space<vmem>>, vector<1x8x128xbf16>,
    %289 = arith.truncf %283 : vector<8x128xf32> to vector<8x128xbf16>
    %290 = arith.index_cast %227 : i32 to index
    %c0_93 = arith.constant 0 : index
    %c0_94 = arith.constant 0 : index
    %291 = vector.load %arg11[%290, %c0_93, %c0_94] : memref<8x8x128xbf16, #tpu.memory_space<vmem>>, vector<1x8x128xbf16>
    %292 = vector.shape_cast %291 : vector<1x8x128xbf16> to vector<8x128xbf16>
    %293 = vector.shape_cast %289 : vector<8x128xbf16> to vector<1x8x128xbf16>
    tpu.vector_store %arg11[%290, %c0_93, %c0_94], %293 {strides = array<i32>} : memref<8x8x128xbf16, #tpu.memory_space<vmem>>, vector<1x8x128xbf16>,
    %294 = tpu.concatenate %260, %283 in 1 : vector<8x128xf32>, vector<8x128xf32> -> vector<8x256xf32>
    %c4_i32 = arith.constant 4 : i32
    %c7_i32_95 = arith.constant 7 : i32
    %295 = arith.subi %c7_i32_95, %c4_i32 : i32
    %296 = arith.index_cast %c4_i32 : i32 to index
    %c0_96 = arith.constant 0 : index
    %c0_97 = arith.constant 0 : index
    %297 = vector.load %arg8[%296, %c0_96, %c0_97] : memref<8x8x256xf32, #tpu.memory_space<vmem>>, vector<1x8x256xf32>
    %298 = vector.shape_cast %297 : vector<1x8x256xf32> to vector<8x256xf32>
    %299 = arith.index_cast %295 : i32 to index
    %c0_98 = arith.constant 0 : index
    %c0_99 = arith.constant 0 : index
    %300 = vector.load %arg9[%299, %c0_98, %c0_99] : memref<8x8x256xf32, #tpu.memory_space<vmem>>, vector<1x8x256xf32>
    %301 = vector.shape_cast %300 : vector<1x8x256xf32> to vector<8x256xf32>
    %302 = tpu.concatenate %298, %301 in 1 : vector<8x256xf32>, vector<8x256xf32> -> vector<8x512xf32>
    %303 = arith.truncf %294 : vector<8x256xf32> to vector<8x256xbf16>
    %cst_100 = arith.constant dense<0.000000e+00> : vector<8x512xf32>
    %304 = tpu.matmul %303, %20, %cst_100 {dimension_numbers = #tpu.dot_dimension_numbers<[1], [0], [0], [1], [0, 0, 1, 1], [], []>} : vector<8x256xbf16>, vector<256x512xbf16>, vector<8x512xf32> -> vector<8x512xf32>
    %305 = arith.addf %302, %304 : vector<8x512xf32>
    %306 = vector.extract_strided_slice %305 {offsets = [0, 0], sizes = [8, 128], strides = [1, 1]} : vector<8x512xf32> to vector<8x128xf32>
    %307 = vector.extract_strided_slice %305 {offsets = [0, 128], sizes = [8, 128], strides = [1, 1]} : vector<8x512xf32> to vector<8x128xf32>
    %308 = arith.negf %306 : vector<8x128xf32>
    %309 = math.exp %308 : vector<8x128xf32>
    %cst_101 = arith.constant 1.000000e+00 : f32
    %310 = vector.broadcast %cst_101 : f32 to vector<8x128xf32>
    %311 = arith.addf %310, %309 : vector<8x128xf32>
    %312 = arith.divf %310, %311 : vector<8x128xf32>
    %313 = arith.negf %307 : vector<8x128xf32>
    %314 = math.exp %313 : vector<8x128xf32>
    %cst_102 = arith.constant 1.000000e+00 : f32
    %315 = vector.broadcast %cst_102 : f32 to vector<8x128xf32>
    %316 = arith.addf %315, %314 : vector<8x128xf32>
    %317 = arith.divf %315, %316 : vector<8x128xf32>
    %cst_103 = arith.constant 2.000000e+00 : f32
    %318 = vector.broadcast %cst_103 : f32 to vector<8x128xf32>
    %319 = arith.mulf %318, %317 : vector<8x128xf32>
    %cst_104 = arith.constant 1.000000e+00 : f32
    %320 = vector.broadcast %cst_104 : f32 to vector<8x128xf32>
    %321 = arith.subf %319, %320 : vector<8x128xf32>
    %322 = arith.select %19, %321, %317 : vector<8x128xi1>, vector<8x128xf32>
    %323 = arith.mulf %312, %258 : vector<8x128xf32>
    %324 = arith.mulf %312, %322 : vector<8x128xf32>
    %c64_i32_105 = arith.constant 64 : i32
    %325 = tpu.dynamic_rotate %324 by %c64_i32_105 dim 1 : vector<8x128xf32>, i32 -> vector<8x128xf32>
    %326 = arith.addf %323, %325 : vector<8x128xf32>
    %327 = math.tanh %326 : vector<8x128xf32>
    %328 = arith.mulf %322, %327 : vector<8x128xf32>
    %329 = vector.extract_strided_slice %305 {offsets = [0, 256], sizes = [8, 128], strides = [1, 1]} : vector<8x512xf32> to vector<8x128xf32>
    %330 = vector.extract_strided_slice %305 {offsets = [0, 384], sizes = [8, 128], strides = [1, 1]} : vector<8x512xf32> to vector<8x128xf32>
    %331 = arith.negf %329 : vector<8x128xf32>
    %332 = math.exp %331 : vector<8x128xf32>
    %cst_106 = arith.constant 1.000000e+00 : f32
    %333 = vector.broadcast %cst_106 : f32 to vector<8x128xf32>
    %334 = arith.addf %333, %332 : vector<8x128xf32>
    %335 = arith.divf %333, %334 : vector<8x128xf32>
    %336 = arith.negf %330 : vector<8x128xf32>
    %337 = math.exp %336 : vector<8x128xf32>
    %cst_107 = arith.constant 1.000000e+00 : f32
    %338 = vector.broadcast %cst_107 : f32 to vector<8x128xf32>
    %339 = arith.addf %338, %337 : vector<8x128xf32>
    %340 = arith.divf %338, %339 : vector<8x128xf32>
    %cst_108 = arith.constant 2.000000e+00 : f32
    %341 = vector.broadcast %cst_108 : f32 to vector<8x128xf32>
    %342 = arith.mulf %341, %340 : vector<8x128xf32>
    %cst_109 = arith.constant 1.000000e+00 : f32
    %343 = vector.broadcast %cst_109 : f32 to vector<8x128xf32>
    %344 = arith.subf %342, %343 : vector<8x128xf32>
    %345 = arith.select %19, %344, %340 : vector<8x128xi1>, vector<8x128xf32>
    %346 = arith.mulf %335, %281 : vector<8x128xf32>
    %347 = arith.mulf %335, %345 : vector<8x128xf32>
    %c64_i32_110 = arith.constant 64 : i32
    %348 = tpu.dynamic_rotate %347 by %c64_i32_110 dim 1 : vector<8x128xf32>, i32 -> vector<8x128xf32>
    %349 = arith.addf %346, %348 : vector<8x128xf32>
    %350 = math.tanh %349 : vector<8x128xf32>
    %351 = arith.mulf %345, %350 : vector<8x128xf32>
    %352 = arith.truncf %328 : vector<8x128xf32> to vector<8x128xbf16>
    %353 = arith.index_cast %c4_i32 : i32 to index
    %c0_111 = arith.constant 0 : index
    %c0_112 = arith.constant 0 : index
    %354 = vector.load %arg10[%353, %c0_111, %c0_112] : memref<8x8x128xbf16, #tpu.memory_space<vmem>>, vector<1x8x128xbf16>
    %355 = vector.shape_cast %354 : vector<1x8x128xbf16> to vector<8x128xbf16>
    %356 = vector.shape_cast %352 : vector<8x128xbf16> to vector<1x8x128xbf16>
    tpu.vector_store %arg10[%353, %c0_111, %c0_112], %356 {strides = array<i32>} : memref<8x8x128xbf16, #tpu.memory_space<vmem>>, vector<1x8x128xbf16>,
    %357 = arith.truncf %351 : vector<8x128xf32> to vector<8x128xbf16>
    %358 = arith.index_cast %295 : i32 to index
    %c0_113 = arith.constant 0 : index
    %c0_114 = arith.constant 0 : index
    %359 = vector.load %arg11[%358, %c0_113, %c0_114] : memref<8x8x128xbf16, #tpu.memory_space<vmem>>, vector<1x8x128xbf16>
    %360 = vector.shape_cast %359 : vector<1x8x128xbf16> to vector<8x128xbf16>
    %361 = vector.shape_cast %357 : vector<8x128xbf16> to vector<1x8x128xbf16>
    tpu.vector_store %arg11[%358, %c0_113, %c0_114], %361 {strides = array<i32>} : memref<8x8x128xbf16, #tpu.memory_space<vmem>>, vector<1x8x128xbf16>,
    %362 = tpu.concatenate %328, %351 in 1 : vector<8x128xf32>, vector<8x128xf32> -> vector<8x256xf32>
    %c5_i32 = arith.constant 5 : i32
    %c7_i32_115 = arith.constant 7 : i32
    %363 = arith.subi %c7_i32_115, %c5_i32 : i32
    %364 = arith.index_cast %c5_i32 : i32 to index
    %c0_116 = arith.constant 0 : index
    %c0_117 = arith.constant 0 : index
    %365 = vector.load %arg8[%364, %c0_116, %c0_117] : memref<8x8x256xf32, #tpu.memory_space<vmem>>, vector<1x8x256xf32>
    %366 = vector.shape_cast %365 : vector<1x8x256xf32> to vector<8x256xf32>
    %367 = arith.index_cast %363 : i32 to index
    %c0_118 = arith.constant 0 : index
    %c0_119 = arith.constant 0 : index
    %368 = vector.load %arg9[%367, %c0_118, %c0_119] : memref<8x8x256xf32, #tpu.memory_space<vmem>>, vector<1x8x256xf32>
    %369 = vector.shape_cast %368 : vector<1x8x256xf32> to vector<8x256xf32>
    %370 = tpu.concatenate %366, %369 in 1 : vector<8x256xf32>, vector<8x256xf32> -> vector<8x512xf32>
    %371 = arith.truncf %362 : vector<8x256xf32> to vector<8x256xbf16>
    %cst_120 = arith.constant dense<0.000000e+00> : vector<8x512xf32>
    %372 = tpu.matmul %371, %20, %cst_120 {dimension_numbers = #tpu.dot_dimension_numbers<[1], [0], [0], [1], [0, 0, 1, 1], [], []>} : vector<8x256xbf16>, vector<256x512xbf16>, vector<8x512xf32> -> vector<8x512xf32>
    %373 = arith.addf %370, %372 : vector<8x512xf32>
    %374 = vector.extract_strided_slice %373 {offsets = [0, 0], sizes = [8, 128], strides = [1, 1]} : vector<8x512xf32> to vector<8x128xf32>
    %375 = vector.extract_strided_slice %373 {offsets = [0, 128], sizes = [8, 128], strides = [1, 1]} : vector<8x512xf32> to vector<8x128xf32>
    %376 = arith.negf %374 : vector<8x128xf32>
    %377 = math.exp %376 : vector<8x128xf32>
    %cst_121 = arith.constant 1.000000e+00 : f32
    %378 = vector.broadcast %cst_121 : f32 to vector<8x128xf32>
    %379 = arith.addf %378, %377 : vector<8x128xf32>
    %380 = arith.divf %378, %379 : vector<8x128xf32>
    %381 = arith.negf %375 : vector<8x128xf32>
    %382 = math.exp %381 : vector<8x128xf32>
    %cst_122 = arith.constant 1.000000e+00 : f32
    %383 = vector.broadcast %cst_122 : f32 to vector<8x128xf32>
    %384 = arith.addf %383, %382 : vector<8x128xf32>
    %385 = arith.divf %383, %384 : vector<8x128xf32>
    %cst_123 = arith.constant 2.000000e+00 : f32
    %386 = vector.broadcast %cst_123 : f32 to vector<8x128xf32>
    %387 = arith.mulf %386, %385 : vector<8x128xf32>
    %cst_124 = arith.constant 1.000000e+00 : f32
    %388 = vector.broadcast %cst_124 : f32 to vector<8x128xf32>
    %389 = arith.subf %387, %388 : vector<8x128xf32>
    %390 = arith.select %19, %389, %385 : vector<8x128xi1>, vector<8x128xf32>
    %391 = arith.mulf %380, %326 : vector<8x128xf32>
    %392 = arith.mulf %380, %390 : vector<8x128xf32>
    %c64_i32_125 = arith.constant 64 : i32
    %393 = tpu.dynamic_rotate %392 by %c64_i32_125 dim 1 : vector<8x128xf32>, i32 -> vector<8x128xf32>
    %394 = arith.addf %391, %393 : vector<8x128xf32>
    %395 = math.tanh %394 : vector<8x128xf32>
    %396 = arith.mulf %390, %395 : vector<8x128xf32>
    %397 = vector.extract_strided_slice %373 {offsets = [0, 256], sizes = [8, 128], strides = [1, 1]} : vector<8x512xf32> to vector<8x128xf32>
    %398 = vector.extract_strided_slice %373 {offsets = [0, 384], sizes = [8, 128], strides = [1, 1]} : vector<8x512xf32> to vector<8x128xf32>
    %399 = arith.negf %397 : vector<8x128xf32>
    %400 = math.exp %399 : vector<8x128xf32>
    %cst_126 = arith.constant 1.000000e+00 : f32
    %401 = vector.broadcast %cst_126 : f32 to vector<8x128xf32>
    %402 = arith.addf %401, %400 : vector<8x128xf32>
    %403 = arith.divf %401, %402 : vector<8x128xf32>
    %404 = arith.negf %398 : vector<8x128xf32>
    %405 = math.exp %404 : vector<8x128xf32>
    %cst_127 = arith.constant 1.000000e+00 : f32
    %406 = vector.broadcast %cst_127 : f32 to vector<8x128xf32>
    %407 = arith.addf %406, %405 : vector<8x128xf32>
    %408 = arith.divf %406, %407 : vector<8x128xf32>
    %cst_128 = arith.constant 2.000000e+00 : f32
    %409 = vector.broadcast %cst_128 : f32 to vector<8x128xf32>
    %410 = arith.mulf %409, %408 : vector<8x128xf32>
    %cst_129 = arith.constant 1.000000e+00 : f32
    %411 = vector.broadcast %cst_129 : f32 to vector<8x128xf32>
    %412 = arith.subf %410, %411 : vector<8x128xf32>
    %413 = arith.select %19, %412, %408 : vector<8x128xi1>, vector<8x128xf32>
    %414 = arith.mulf %403, %349 : vector<8x128xf32>
    %415 = arith.mulf %403, %413 : vector<8x128xf32>
    %c64_i32_130 = arith.constant 64 : i32
    %416 = tpu.dynamic_rotate %415 by %c64_i32_130 dim 1 : vector<8x128xf32>, i32 -> vector<8x128xf32>
    %417 = arith.addf %414, %416 : vector<8x128xf32>
    %418 = math.tanh %417 : vector<8x128xf32>
    %419 = arith.mulf %413, %418 : vector<8x128xf32>
    %420 = arith.truncf %396 : vector<8x128xf32> to vector<8x128xbf16>
    %421 = arith.index_cast %c5_i32 : i32 to index
    %c0_131 = arith.constant 0 : index
    %c0_132 = arith.constant 0 : index
    %422 = vector.load %arg10[%421, %c0_131, %c0_132] : memref<8x8x128xbf16, #tpu.memory_space<vmem>>, vector<1x8x128xbf16>
    %423 = vector.shape_cast %422 : vector<1x8x128xbf16> to vector<8x128xbf16>
    %424 = vector.shape_cast %420 : vector<8x128xbf16> to vector<1x8x128xbf16>
    tpu.vector_store %arg10[%421, %c0_131, %c0_132], %424 {strides = array<i32>} : memref<8x8x128xbf16, #tpu.memory_space<vmem>>, vector<1x8x128xbf16>,
    %425 = arith.truncf %419 : vector<8x128xf32> to vector<8x128xbf16>
    %426 = arith.index_cast %363 : i32 to index
    %c0_133 = arith.constant 0 : index
    %c0_134 = arith.constant 0 : index
    %427 = vector.load %arg11[%426, %c0_133, %c0_134] : memref<8x8x128xbf16, #tpu.memory_space<vmem>>, vector<1x8x128xbf16>
    %428 = vector.shape_cast %427 : vector<1x8x128xbf16> to vector<8x128xbf16>
    %429 = vector.shape_cast %425 : vector<8x128xbf16> to vector<1x8x128xbf16>
    tpu.vector_store %arg11[%426, %c0_133, %c0_134], %429 {strides = array<i32>} : memref<8x8x128xbf16, #tpu.memory_space<vmem>>, vector<1x8x128xbf16>,
    %430 = tpu.concatenate %396, %419 in 1 : vector<8x128xf32>, vector<8x128xf32> -> vector<8x256xf32>
    %c6_i32 = arith.constant 6 : i32
    %c7_i32_135 = arith.constant 7 : i32
    %431 = arith.subi %c7_i32_135, %c6_i32 : i32
    %432 = arith.index_cast %c6_i32 : i32 to index
    %c0_136 = arith.constant 0 : index
    %c0_137 = arith.constant 0 : index
    %433 = vector.load %arg8[%432, %c0_136, %c0_137] : memref<8x8x256xf32, #tpu.memory_space<vmem>>, vector<1x8x256xf32>
    %434 = vector.shape_cast %433 : vector<1x8x256xf32> to vector<8x256xf32>
    %435 = arith.index_cast %431 : i32 to index
    %c0_138 = arith.constant 0 : index
    %c0_139 = arith.constant 0 : index
    %436 = vector.load %arg9[%435, %c0_138, %c0_139] : memref<8x8x256xf32, #tpu.memory_space<vmem>>, vector<1x8x256xf32>
    %437 = vector.shape_cast %436 : vector<1x8x256xf32> to vector<8x256xf32>
    %438 = tpu.concatenate %434, %437 in 1 : vector<8x256xf32>, vector<8x256xf32> -> vector<8x512xf32>
    %439 = arith.truncf %430 : vector<8x256xf32> to vector<8x256xbf16>
    %cst_140 = arith.constant dense<0.000000e+00> : vector<8x512xf32>
    %440 = tpu.matmul %439, %20, %cst_140 {dimension_numbers = #tpu.dot_dimension_numbers<[1], [0], [0], [1], [0, 0, 1, 1], [], []>} : vector<8x256xbf16>, vector<256x512xbf16>, vector<8x512xf32> -> vector<8x512xf32>
    %441 = arith.addf %438, %440 : vector<8x512xf32>
    %442 = vector.extract_strided_slice %441 {offsets = [0, 0], sizes = [8, 128], strides = [1, 1]} : vector<8x512xf32> to vector<8x128xf32>
    %443 = vector.extract_strided_slice %441 {offsets = [0, 128], sizes = [8, 128], strides = [1, 1]} : vector<8x512xf32> to vector<8x128xf32>
    %444 = arith.negf %442 : vector<8x128xf32>
    %445 = math.exp %444 : vector<8x128xf32>
    %cst_141 = arith.constant 1.000000e+00 : f32
    %446 = vector.broadcast %cst_141 : f32 to vector<8x128xf32>
    %447 = arith.addf %446, %445 : vector<8x128xf32>
    %448 = arith.divf %446, %447 : vector<8x128xf32>
    %449 = arith.negf %443 : vector<8x128xf32>
    %450 = math.exp %449 : vector<8x128xf32>
    %cst_142 = arith.constant 1.000000e+00 : f32
    %451 = vector.broadcast %cst_142 : f32 to vector<8x128xf32>
    %452 = arith.addf %451, %450 : vector<8x128xf32>
    %453 = arith.divf %451, %452 : vector<8x128xf32>
    %cst_143 = arith.constant 2.000000e+00 : f32
    %454 = vector.broadcast %cst_143 : f32 to vector<8x128xf32>
    %455 = arith.mulf %454, %453 : vector<8x128xf32>
    %cst_144 = arith.constant 1.000000e+00 : f32
    %456 = vector.broadcast %cst_144 : f32 to vector<8x128xf32>
    %457 = arith.subf %455, %456 : vector<8x128xf32>
    %458 = arith.select %19, %457, %453 : vector<8x128xi1>, vector<8x128xf32>
    %459 = arith.mulf %448, %394 : vector<8x128xf32>
    %460 = arith.mulf %448, %458 : vector<8x128xf32>
    %c64_i32_145 = arith.constant 64 : i32
    %461 = tpu.dynamic_rotate %460 by %c64_i32_145 dim 1 : vector<8x128xf32>, i32 -> vector<8x128xf32>
    %462 = arith.addf %459, %461 : vector<8x128xf32>
    %463 = math.tanh %462 : vector<8x128xf32>
    %464 = arith.mulf %458, %463 : vector<8x128xf32>
    %465 = vector.extract_strided_slice %441 {offsets = [0, 256], sizes = [8, 128], strides = [1, 1]} : vector<8x512xf32> to vector<8x128xf32>
    %466 = vector.extract_strided_slice %441 {offsets = [0, 384], sizes = [8, 128], strides = [1, 1]} : vector<8x512xf32> to vector<8x128xf32>
    %467 = arith.negf %465 : vector<8x128xf32>
    %468 = math.exp %467 : vector<8x128xf32>
    %cst_146 = arith.constant 1.000000e+00 : f32
    %469 = vector.broadcast %cst_146 : f32 to vector<8x128xf32>
    %470 = arith.addf %469, %468 : vector<8x128xf32>
    %471 = arith.divf %469, %470 : vector<8x128xf32>
    %472 = arith.negf %466 : vector<8x128xf32>
    %473 = math.exp %472 : vector<8x128xf32>
    %cst_147 = arith.constant 1.000000e+00 : f32
    %474 = vector.broadcast %cst_147 : f32 to vector<8x128xf32>
    %475 = arith.addf %474, %473 : vector<8x128xf32>
    %476 = arith.divf %474, %475 : vector<8x128xf32>
    %cst_148 = arith.constant 2.000000e+00 : f32
    %477 = vector.broadcast %cst_148 : f32 to vector<8x128xf32>
    %478 = arith.mulf %477, %476 : vector<8x128xf32>
    %cst_149 = arith.constant 1.000000e+00 : f32
    %479 = vector.broadcast %cst_149 : f32 to vector<8x128xf32>
    %480 = arith.subf %478, %479 : vector<8x128xf32>
    %481 = arith.select %19, %480, %476 : vector<8x128xi1>, vector<8x128xf32>
    %482 = arith.mulf %471, %417 : vector<8x128xf32>
    %483 = arith.mulf %471, %481 : vector<8x128xf32>
    %c64_i32_150 = arith.constant 64 : i32
    %484 = tpu.dynamic_rotate %483 by %c64_i32_150 dim 1 : vector<8x128xf32>, i32 -> vector<8x128xf32>
    %485 = arith.addf %482, %484 : vector<8x128xf32>
    %486 = math.tanh %485 : vector<8x128xf32>
    %487 = arith.mulf %481, %486 : vector<8x128xf32>
    %488 = arith.truncf %464 : vector<8x128xf32> to vector<8x128xbf16>
    %489 = arith.index_cast %c6_i32 : i32 to index
    %c0_151 = arith.constant 0 : index
    %c0_152 = arith.constant 0 : index
    %490 = vector.load %arg10[%489, %c0_151, %c0_152] : memref<8x8x128xbf16, #tpu.memory_space<vmem>>, vector<1x8x128xbf16>
    %491 = vector.shape_cast %490 : vector<1x8x128xbf16> to vector<8x128xbf16>
    %492 = vector.shape_cast %488 : vector<8x128xbf16> to vector<1x8x128xbf16>
    tpu.vector_store %arg10[%489, %c0_151, %c0_152], %492 {strides = array<i32>} : memref<8x8x128xbf16, #tpu.memory_space<vmem>>, vector<1x8x128xbf16>,
    %493 = arith.truncf %487 : vector<8x128xf32> to vector<8x128xbf16>
    %494 = arith.index_cast %431 : i32 to index
    %c0_153 = arith.constant 0 : index
    %c0_154 = arith.constant 0 : index
    %495 = vector.load %arg11[%494, %c0_153, %c0_154] : memref<8x8x128xbf16, #tpu.memory_space<vmem>>, vector<1x8x128xbf16>
    %496 = vector.shape_cast %495 : vector<1x8x128xbf16> to vector<8x128xbf16>
    %497 = vector.shape_cast %493 : vector<8x128xbf16> to vector<1x8x128xbf16>
    tpu.vector_store %arg11[%494, %c0_153, %c0_154], %497 {strides = array<i32>} : memref<8x8x128xbf16, #tpu.memory_space<vmem>>, vector<1x8x128xbf16>,
    %498 = tpu.concatenate %464, %487 in 1 : vector<8x128xf32>, vector<8x128xf32> -> vector<8x256xf32>
    %c7_i32_155 = arith.constant 7 : i32
    %c7_i32_156 = arith.constant 7 : i32
    %499 = arith.subi %c7_i32_156, %c7_i32_155 : i32
    %500 = arith.index_cast %c7_i32_155 : i32 to index
    %c0_157 = arith.constant 0 : index
    %c0_158 = arith.constant 0 : index
    %501 = vector.load %arg8[%500, %c0_157, %c0_158] : memref<8x8x256xf32, #tpu.memory_space<vmem>>, vector<1x8x256xf32>
    %502 = vector.shape_cast %501 : vector<1x8x256xf32> to vector<8x256xf32>
    %503 = arith.index_cast %499 : i32 to index
    %c0_159 = arith.constant 0 : index
    %c0_160 = arith.constant 0 : index
    %504 = vector.load %arg9[%503, %c0_159, %c0_160] : memref<8x8x256xf32, #tpu.memory_space<vmem>>, vector<1x8x256xf32>
    %505 = vector.shape_cast %504 : vector<1x8x256xf32> to vector<8x256xf32>
    %506 = tpu.concatenate %502, %505 in 1 : vector<8x256xf32>, vector<8x256xf32> -> vector<8x512xf32>
    %507 = arith.truncf %498 : vector<8x256xf32> to vector<8x256xbf16>
    %cst_161 = arith.constant dense<0.000000e+00> : vector<8x512xf32>
    %508 = tpu.matmul %507, %20, %cst_161 {dimension_numbers = #tpu.dot_dimension_numbers<[1], [0], [0], [1], [0, 0, 1, 1], [], []>} : vector<8x256xbf16>, vector<256x512xbf16>, vector<8x512xf32> -> vector<8x512xf32>
    %509 = arith.addf %506, %508 : vector<8x512xf32>
    %510 = vector.extract_strided_slice %509 {offsets = [0, 0], sizes = [8, 128], strides = [1, 1]} : vector<8x512xf32> to vector<8x128xf32>
    %511 = vector.extract_strided_slice %509 {offsets = [0, 128], sizes = [8, 128], strides = [1, 1]} : vector<8x512xf32> to vector<8x128xf32>
    %512 = arith.negf %510 : vector<8x128xf32>
    %513 = math.exp %512 : vector<8x128xf32>
    %cst_162 = arith.constant 1.000000e+00 : f32
    %514 = vector.broadcast %cst_162 : f32 to vector<8x128xf32>
    %515 = arith.addf %514, %513 : vector<8x128xf32>
    %516 = arith.divf %514, %515 : vector<8x128xf32>
    %517 = arith.negf %511 : vector<8x128xf32>
    %518 = math.exp %517 : vector<8x128xf32>
    %cst_163 = arith.constant 1.000000e+00 : f32
    %519 = vector.broadcast %cst_163 : f32 to vector<8x128xf32>
    %520 = arith.addf %519, %518 : vector<8x128xf32>
    %521 = arith.divf %519, %520 : vector<8x128xf32>
    %cst_164 = arith.constant 2.000000e+00 : f32
    %522 = vector.broadcast %cst_164 : f32 to vector<8x128xf32>
    %523 = arith.mulf %522, %521 : vector<8x128xf32>
    %cst_165 = arith.constant 1.000000e+00 : f32
    %524 = vector.broadcast %cst_165 : f32 to vector<8x128xf32>
    %525 = arith.subf %523, %524 : vector<8x128xf32>
    %526 = arith.select %19, %525, %521 : vector<8x128xi1>, vector<8x128xf32>
    %527 = arith.mulf %516, %462 : vector<8x128xf32>
    %528 = arith.mulf %516, %526 : vector<8x128xf32>
    %c64_i32_166 = arith.constant 64 : i32
    %529 = tpu.dynamic_rotate %528 by %c64_i32_166 dim 1 : vector<8x128xf32>, i32 -> vector<8x128xf32>
    %530 = arith.addf %527, %529 : vector<8x128xf32>
    %531 = math.tanh %530 : vector<8x128xf32>
    %532 = arith.mulf %526, %531 : vector<8x128xf32>
    %533 = vector.extract_strided_slice %509 {offsets = [0, 256], sizes = [8, 128], strides = [1, 1]} : vector<8x512xf32> to vector<8x128xf32>
    %534 = vector.extract_strided_slice %509 {offsets = [0, 384], sizes = [8, 128], strides = [1, 1]} : vector<8x512xf32> to vector<8x128xf32>
    %535 = arith.negf %533 : vector<8x128xf32>
    %536 = math.exp %535 : vector<8x128xf32>
    %cst_167 = arith.constant 1.000000e+00 : f32
    %537 = vector.broadcast %cst_167 : f32 to vector<8x128xf32>
    %538 = arith.addf %537, %536 : vector<8x128xf32>
    %539 = arith.divf %537, %538 : vector<8x128xf32>
    %540 = arith.negf %534 : vector<8x128xf32>
    %541 = math.exp %540 : vector<8x128xf32>
    %cst_168 = arith.constant 1.000000e+00 : f32
    %542 = vector.broadcast %cst_168 : f32 to vector<8x128xf32>
    %543 = arith.addf %542, %541 : vector<8x128xf32>
    %544 = arith.divf %542, %543 : vector<8x128xf32>
    %cst_169 = arith.constant 2.000000e+00 : f32
    %545 = vector.broadcast %cst_169 : f32 to vector<8x128xf32>
    %546 = arith.mulf %545, %544 : vector<8x128xf32>
    %cst_170 = arith.constant 1.000000e+00 : f32
    %547 = vector.broadcast %cst_170 : f32 to vector<8x128xf32>
    %548 = arith.subf %546, %547 : vector<8x128xf32>
    %549 = arith.select %19, %548, %544 : vector<8x128xi1>, vector<8x128xf32>
    %550 = arith.mulf %539, %485 : vector<8x128xf32>
    %551 = arith.mulf %539, %549 : vector<8x128xf32>
    %c64_i32_171 = arith.constant 64 : i32
    %552 = tpu.dynamic_rotate %551 by %c64_i32_171 dim 1 : vector<8x128xf32>, i32 -> vector<8x128xf32>
    %553 = arith.addf %550, %552 : vector<8x128xf32>
    %554 = math.tanh %553 : vector<8x128xf32>
    %555 = arith.mulf %549, %554 : vector<8x128xf32>
    %556 = arith.truncf %532 : vector<8x128xf32> to vector<8x128xbf16>
    %557 = arith.index_cast %c7_i32_155 : i32 to index
    %c0_172 = arith.constant 0 : index
    %c0_173 = arith.constant 0 : index
    %558 = vector.load %arg10[%557, %c0_172, %c0_173] : memref<8x8x128xbf16, #tpu.memory_space<vmem>>, vector<1x8x128xbf16>
    %559 = vector.shape_cast %558 : vector<1x8x128xbf16> to vector<8x128xbf16>
    %560 = vector.shape_cast %556 : vector<8x128xbf16> to vector<1x8x128xbf16>
    tpu.vector_store %arg10[%557, %c0_172, %c0_173], %560 {strides = array<i32>} : memref<8x8x128xbf16, #tpu.memory_space<vmem>>, vector<1x8x128xbf16>,
    %561 = arith.truncf %555 : vector<8x128xf32> to vector<8x128xbf16>
    %562 = arith.index_cast %499 : i32 to index
    %c0_174 = arith.constant 0 : index
    %c0_175 = arith.constant 0 : index
    %563 = vector.load %arg11[%562, %c0_174, %c0_175] : memref<8x8x128xbf16, #tpu.memory_space<vmem>>, vector<1x8x128xbf16>
    %564 = vector.shape_cast %563 : vector<1x8x128xbf16> to vector<8x128xbf16>
    %565 = vector.shape_cast %561 : vector<8x128xbf16> to vector<1x8x128xbf16>
    tpu.vector_store %arg11[%562, %c0_174, %c0_175], %565 {strides = array<i32>} : memref<8x8x128xbf16, #tpu.memory_space<vmem>>, vector<1x8x128xbf16>,
    %566 = tpu.concatenate %532, %555 in 1 : vector<8x128xf32>, vector<8x128xf32> -> vector<8x256xf32>
    %c8_i32 = arith.constant 8 : i32
    %c0_176 = arith.constant 0 : index
    %c0_177 = arith.constant 0 : index
    %c0_178 = arith.constant 0 : index
    %567 = vector.load %arg10[%c0_176, %c0_177, %c0_178] : memref<8x8x128xbf16, #tpu.memory_space<vmem>>, vector<8x8x128xbf16>
    %568 = vector.shape_cast %567 : vector<8x8x128xbf16> to vector<64x128xbf16>
    %c0_179 = arith.constant 0 : index
    %c0_180 = arith.constant 0 : index
    %c0_181 = arith.constant 0 : index
    %569 = vector.load %arg11[%c0_179, %c0_180, %c0_181] : memref<8x8x128xbf16, #tpu.memory_space<vmem>>, vector<8x8x128xbf16>
    %570 = vector.shape_cast %569 : vector<8x8x128xbf16> to vector<64x128xbf16>
    %571 = tpu.concatenate %568, %570 in 1 : vector<64x128xbf16>, vector<64x128xbf16> -> vector<64x256xbf16>
    %c0_182 = arith.constant 0 : index
    %c0_183 = arith.constant 0 : index
    %572 = vector.load %arg5[%c0_182, %c0_183] : memref<256x128xbf16, #tpu.memory_space<vmem>>, vector<256x128xbf16>
    %cst_184 = arith.constant dense<0.000000e+00> : vector<64x128xf32>
    %573 = tpu.matmul %571, %572, %cst_184 {dimension_numbers = #tpu.dot_dimension_numbers<[1], [0], [0], [1], [0, 0, 1, 1], [], []>} : vector<64x256xbf16>, vector<256x128xbf16>, vector<64x128xf32> -> vector<64x128xf32>
    %c0_185 = arith.constant 0 : index
    %c0_186 = arith.constant 0 : index
    %574 = vector.load %arg6[%c0_185, %c0_186] : memref<1x128xf32, #tpu.memory_space<vmem>>, vector<1x128xf32>
    %575 = vector.broadcast %574 : vector<1x128xf32> to vector<64x128xf32>
    %576 = arith.addf %573, %575 : vector<64x128xf32>
    %577 = vector.shape_cast %576 : vector<64x128xf32> to vector<8x8x128xf32>
    %c0_187 = arith.constant 0 : index
    %c0_188 = arith.constant 0 : index
    %c0_189 = arith.constant 0 : index
    %578 = vector.load %arg7[%c0_187, %c0_188, %c0_189] : memref<8x8x128xf32, #tpu.memory_space<vmem>>, vector<8x8x128xf32>
    tpu.vector_store %arg7[%c0_187, %c0_188, %c0_189], %577 {strides = array<i32>} : memref<8x8x128xf32, #tpu.memory_space<vmem>>, vector<8x8x128xf32>,
    return
  }
  func.func @transform_0(%arg0: i32) -> (i32, i32, i32) {
    %c0_i32 = arith.constant 0 : i32
    %c0_i32_0 = arith.constant 0 : i32
    %c0_i32_1 = arith.constant 0 : i32
    return %c0_i32, %arg0, %c0_i32_0 : i32, i32, i32
  }
  func.func @transform_1(%arg0: i32) -> (i32, i32) {
    %c0_i32 = arith.constant 0 : i32
    %c0_i32_0 = arith.constant 0 : i32
    %c0_i32_1 = arith.constant 0 : i32
    return %c0_i32, %c0_i32_0 : i32, i32
  }
  func.func @transform_2(%arg0: i32) -> (i32, i32) {
    %c0_i32 = arith.constant 0 : i32
    %c0_i32_0 = arith.constant 0 : i32
    %c0_i32_1 = arith.constant 0 : i32
    return %c0_i32, %c0_i32_0 : i32, i32
  }
  func.func @transform_3(%arg0: i32) -> (i32, i32) {
    %c0_i32 = arith.constant 0 : i32
    %c0_i32_0 = arith.constant 0 : i32
    %c0_i32_1 = arith.constant 0 : i32
    return %c0_i32, %c0_i32_0 : i32, i32
  }
  func.func @transform_4(%arg0: i32) -> (i32, i32) {
    %c0_i32 = arith.constant 0 : i32
    %c0_i32_0 = arith.constant 0 : i32
    %c0_i32_1 = arith.constant 0 : i32
    return %c0_i32, %c0_i32_0 : i32, i32
  }
  func.func @transform_5(%arg0: i32) -> (i32, i32) {
    %c0_i32 = arith.constant 0 : i32
    %c0_i32_0 = arith.constant 0 : i32
    %c0_i32_1 = arith.constant 0 : i32
    return %c0_i32, %c0_i32_0 : i32, i32
  }
  func.func @transform_6(%arg0: i32) -> (i32, i32, i32) {
    %c0_i32 = arith.constant 0 : i32
    %c0_i32_0 = arith.constant 0 : i32
    %c0_i32_1 = arith.constant 0 : i32
    return %c0_i32, %arg0, %c0_i32_0 : i32, i32, i32
  }
}

</mosaic_0001>

<llo_original>
// kernel: tpu_custom_call.1
$region0: #{tpu_custom_call.1}
  #allocation0 [shape = 'u32[]', space=smem, size = 0x4, offset = 0x4, fixed_abs, tag = 'smem constant byte address 0x4 - core index']
  #allocation1 [shape = 'u32[72,128]{1,0:T(1,128)}', space=vmem, size = 0x9000, scoped, tag = 'internal scratch']
  #allocation2 [shape = 'f32[8,8,256]{2,1,0:T(8,128)}', space=vmem, size = 0x10000, scoped, tag = 'scratch operand']
  #allocation3 [shape = 'f32[8,8,256]{2,1,0:T(8,128)}', space=vmem, size = 0x10000, scoped, tag = 'scratch operand']
  #allocation4 [shape = 'bf16[8,8,128]{2,1,0:T(8,128)(2,1)}', space=vmem, size = 0x4000, scoped, tag = 'scratch operand']
  #allocation5 [shape = 'bf16[8,8,128]{2,1,0:T(8,128)(2,1)}', space=vmem, size = 0x4000, scoped, tag = 'scratch operand']
  %s0 = inlined_call_operand.hbm [shape: f32[8,8,32], index: 0, kind: input, shape index: {}]
  %s1 = inlined_call_operand.hbm [shape: bf16[32,512], index: 1, kind: input, shape index: {}]
  %s2 = inlined_call_operand.hbm [shape: f32[1,512], index: 2, kind: input, shape index: {}]
  %s3 = inlined_call_operand.hbm [shape: bf16[256,512], index: 3, kind: input, shape index: {}]
  %s4 = inlined_call_operand.hbm [shape: bf16[256,128], index: 4, kind: input, shape index: {}]
  %s5 = inlined_call_operand.vmem [shape: f32[1,128], index: 5, kind: input, shape index: {}]
  %s6 = inlined_call_operand.hbm [shape: f32[8,8,128], index: 6, kind: output, shape index: {}]
  %s7 = sld [smem:[#allocation0]]
  $region54: #{tpu_custom_call.1} parent=0
    _
  %s9 = ssub.s32 1, %s7
  %s10 = scalar_select 0, %s9, %s7
  $region1: #{tpu_custom_call.1} parent=0
    #allocation6 [shape = 'u8[32768]{0}', space=vmem, size = 0x8000, scoped, tag = 'input window, operand 0, single buffered']
    #allocation7 [shape = 's32[1]{0}', space=sflag, size = 0x4, scoped, tag = 'scoped memory for tpu_custom_call.1']
    #allocation8 [shape = 's32[1]{0}', space=sflag, size = 0x4, scoped, tag = 'scoped memory for tpu_custom_call.1']
    #allocation9 [shape = 'u8[32768]{0}', space=vmem, size = 0x8000, scoped, tag = 'input window, operand 1, single buffered']
    #allocation10 [shape = 's32[1]{0}', space=sflag, size = 0x4, scoped, tag = 'scoped memory for tpu_custom_call.1']
    #allocation11 [shape = 'u8[2048]{0}', space=vmem, size = 0x800, scoped, tag = 'input window, operand 2, single buffered']
    #allocation12 [shape = 'u8[262144]{0}', space=vmem, size = 0x40000, scoped, tag = 'input window, operand 3, single buffered']
    #allocation13 [shape = 's32[1]{0}', space=sflag, size = 0x4, scoped, tag = 'scoped memory for tpu_custom_call.1']
    #allocation14 [shape = 'u8[65536]{0}', space=vmem, size = 0x10000, scoped, tag = 'input window, operand 4, single buffered']
    #allocation15 [shape = 'u8[32768]{0}', space=vmem, size = 0x8000, scoped, tag = 'output window, operand 0, single buffered']
    %11 = vsyncpa [#allocation7], 0
    %12 = vsyncpa [#allocation10], 0
    %13 = vsyncpa [#allocation13], 0
    %14 = vsyncpa [#allocation8], 0
    // Predicated region
    $region2: #{tpu_custom_call.1} parent=1 // pred_check
      _
    $region3: #{tpu_custom_call.1} parent=1 // pred_check_branch
      %16 = sbr.rel (0) target = $region5
    $region4: #{tpu_custom_call.1} parent=1 // pred_region
      %18 = vsyncadd [#allocation7], 0
      %s19 = sshll.u32 %s0, 4
      %s20 = int_to_ptr.hbm [resolvable:$true] %s19
      %s21 = sshll.u32 [#allocation6], 4
      %s22 = int_to_ptr.vmem [resolvable:$true] %s21
      %27 = dma.hbm_to_vmem [thread:$0]  %s20, 1024, %s22, [#allocation7], 128, 128, 8
    $region5: #{tpu_custom_call.1} parent=1 // pred_fallthru
      _
    // Predicated region
    $region6: #{tpu_custom_call.1} parent=1 // pred_check
      _
    $region7: #{tpu_custom_call.1} parent=1 // pred_check_branch
      %29 = sbr.rel (0) target = $region9
    $region8: #{tpu_custom_call.1} parent=1 // pred_region
      %31 = vsyncadd [#allocation10], 0
      %s32 = sshll.u32 %s1, 4
      %s33 = int_to_ptr.hbm [resolvable:$true] %s32
      %s34 = sshll.u32 [#allocation9], 4
      %s35 = int_to_ptr.vmem [resolvable:$true] %s34
      %40 = dma.hbm_to_vmem [thread:$0]  %s33, 1024, %s35, [#allocation10], 256, 256, 16
    $region9: #{tpu_custom_call.1} parent=1 // pred_fallthru
      _
    // Predicated region
    $region10: #{tpu_custom_call.1} parent=1 // pred_check
      _
    $region11: #{tpu_custom_call.1} parent=1 // pred_check_branch
      %42 = sbr.rel (0) target = $region13
    $region12: #{tpu_custom_call.1} parent=1 // pred_region
      %44 = vsyncadd [#allocation10], 0
      %s46 = sshll.u32 %s2, 4
      %s47 = int_to_ptr.hbm [resolvable:$true] %s46
      %s48 = sshll.u32 [#allocation11], 4
      %s49 = int_to_ptr.vmem [resolvable:$true] %s48
      %51 = dma.hbm_to_vmem [thread:$0]  %s47, 64, %s49, [#allocation10]
    $region13: #{tpu_custom_call.1} parent=1 // pred_fallthru
      _
    // Predicated region
    $region14: #{tpu_custom_call.1} parent=1 // pred_check
      _
    $region15: #{tpu_custom_call.1} parent=1 // pred_check_branch
      %53 = sbr.rel (0) target = $region17
    $region16: #{tpu_custom_call.1} parent=1 // pred_region
      %55 = vsyncadd [#allocation13], 0
      %s56 = sshll.u32 %s3, 4
      %s57 = int_to_ptr.hbm [resolvable:$true] %s56
      %s58 = sshll.u32 [#allocation12], 4
      %s59 = int_to_ptr.vmem [resolvable:$true] %s58
      %64 = dma.hbm_to_vmem [thread:$0]  %s57, 8192, %s59, [#allocation13], 256, 256, 16
    $region17: #{tpu_custom_call.1} parent=1 // pred_fallthru
      _
    // Predicated region
    $region18: #{tpu_custom_call.1} parent=1 // pred_check
      _
    $region19: #{tpu_custom_call.1} parent=1 // pred_check_branch
      %66 = sbr.rel (0) target = $region21
    $region20: #{tpu_custom_call.1} parent=1 // pred_region
      %68 = vsyncadd [#allocation13], 0
      %s69 = sshll.u32 %s4, 4
      %s70 = int_to_ptr.hbm [resolvable:$true] %s69
      %s71 = sshll.u32 [#allocation14], 4
      %s72 = int_to_ptr.vmem [resolvable:$true] %s71
      %77 = dma.hbm_to_vmem [thread:$0]  %s70, 2048, %s72, [#allocation13], 64, 64, 4
    $region21: #{tpu_custom_call.1} parent=1 // pred_fallthru
      _
    // Predicated region
    $region22: #{tpu_custom_call.1} parent=1 // pred_check
      _
    $region23: #{tpu_custom_call.1} parent=1 // pred_check_branch
      %79 = sbr.rel (0) target = $region25
    $region24: #{tpu_custom_call.1} parent=1 // pred_region
      _
    $region25: #{tpu_custom_call.1} parent=1 // pred_fallthru
      _
    // Predicated region
    $region26: #{tpu_custom_call.1} parent=1 // pred_check
      _
    $region27: #{tpu_custom_call.1} parent=1 // pred_check_branch
      %81 = sbr.rel (0) target = $region29
    $region28: #{tpu_custom_call.1} parent=1 // pred_region
      %83 = dma.done [#allocation7], 1024
    $region29: #{tpu_custom_call.1} parent=1 // pred_fallthru
      _
    // Predicated region
    $region30: #{tpu_custom_call.1} parent=1 // pred_check
      _
    $region31: #{tpu_custom_call.1} parent=1 // pred_check_branch
      %85 = sbr.rel (0) target = $region33
    $region32: #{tpu_custom_call.1} parent=1 // pred_region
      %87 = dma.done [#allocation10], 1024
    $region33: #{tpu_custom_call.1} parent=1 // pred_fallthru
      _
    // Predicated region
    $region34: #{tpu_custom_call.1} parent=1 // pred_check
      _
    $region35: #{tpu_custom_call.1} parent=1 // pred_check_branch
      %89 = sbr.rel (0) target = $region37
    $region36: #{tpu_custom_call.1} parent=1 // pred_region
      %91 = dma.done [#allocation10], 64
    $region37: #{tpu_custom_call.1} parent=1 // pred_fallthru
      _
    // Predicated region
    $region38: #{tpu_custom_call.1} parent=1 // pred_check
      _
    $region39: #{tpu_custom_call.1} parent=1 // pred_check_branch
      %93 = sbr.rel (0) target = $region41
    $region40: #{tpu_custom_call.1} parent=1 // pred_region
      %95 = dma.done [#allocation13], 8192
    $region41: #{tpu_custom_call.1} parent=1 // pred_fallthru
      _
    // Predicated region
    $region42: #{tpu_custom_call.1} parent=1 // pred_check
      _
    $region43: #{tpu_custom_call.1} parent=1 // pred_check_branch
      %97 = sbr.rel (0) target = $region45
    $region44: #{tpu_custom_call.1} parent=1 // pred_region
      %99 = dma.done [#allocation13], 2048
    $region45: #{tpu_custom_call.1} parent=1 // pred_fallthru
      _
    %v101 = vld [vmem:[#allocation6] sm:$0xff]
    %v102 = vld [vmem:[#allocation6 + $0x8] sm:$0xff]
    %v103 = vld [vmem:[#allocation6 + $0x10] sm:$0xff]
    %v104 = vld [vmem:[#allocation6 + $0x18] sm:$0xff]
    %v105 = vld [vmem:[#allocation6 + $0x20] sm:$0xff]
    %v106 = vld [vmem:[#allocation6 + $0x28] sm:$0xff]
    %v107 = vld [vmem:[#allocation6 + $0x30] sm:$0xff]
    %v108 = vld [vmem:[#allocation6 + $0x38] sm:$0xff]
    %v109 = vpack.c.bf16 %v102, %v101
    %v110 = vpack.c.bf16 %v104, %v103
    %v111 = vpack.c.bf16 %v106, %v105
    %v112 = vpack.c.bf16 %v108, %v107
    %v113 = vld [vmem:[#allocation9] sm:$0xff]
    %v114 = vld [vmem:[#allocation9 + $0x8] sm:$0xff]
    %v115 = vld [vmem:[#allocation9 + $0x10] sm:$0xff]
    %v116 = vld [vmem:[#allocation9 + $0x18] sm:$0xff]
    %v117 = vld [vmem:[#allocation9 + $0x20] sm:$0xff]
    %v118 = vld [vmem:[#allocation9 + $0x28] sm:$0xff]
    %v119 = vld [vmem:[#allocation9 + $0x30] sm:$0xff]
    %v120 = vld [vmem:[#allocation9 + $0x38] sm:$0xff]
    %v121 = vld [vmem:[#allocation11] sm:$0xf]
    %v123 = vperm.slane %v121, 0
    %v124 = vperm.slane %v121, 1
    %v125 = vperm.slane %v121, 2
    %v126 = vperm.slane %v121, 3
    %v139 = vunpack.c.l.b16 %v113
    %v140 = vunpack.c.h.b16 %v113
    %v141 = vunpack.c.l.b16 %v114
    %v142 = vunpack.c.h.b16 %v114
    %v143 = vunpack.c.l.b16 %v115
    %v144 = vunpack.c.h.b16 %v115
    %v145 = vunpack.c.l.b16 %v116
    %v146 = vunpack.c.h.b16 %v116
    %v147 = vunpack.c.l.b16 %v117
    %v148 = vunpack.c.h.b16 %v117
    %v149 = vunpack.c.l.b16 %v118
    %v150 = vunpack.c.h.b16 %v118
    %v151 = vunpack.c.l.b16 %v119
    %v152 = vunpack.c.h.b16 %v119
    %v153 = vunpack.c.l.b16 %v120
    %v154 = vunpack.c.h.b16 %v120
    %v155 = vpack.c.b16 %v143, %v139
    %v156 = vpack.c.b16 %v144, %v140
    %v157 = vpack.c.b16 %v145, %v141
    %v158 = vpack.c.b16 %v146, %v142
    %v159 = vpack.c.b16 %v151, %v147
    %v160 = vpack.c.b16 %v152, %v148
    %v161 = vpack.c.b16 %v153, %v149
    %v162 = vpack.c.b16 %v154, %v150
    %vm171 = vcmask 261120
    %v173 = vsel %vm171, %v109, 0
    %v176 = vsel %vm171, %v110, 0
    %v179 = vsel %vm171, %v111, 0
    %v182 = vsel %vm171, %v112, 0
    %184 = vmatpush.bf16.msra.mxu0 0
    %185 = vmatpush.bf16.msra.mxu0 0
    %186 = vmatpush.bf16.msra.mxu0 0
    %187 = vmatpush.bf16.msra.mxu0 0
    %188 = vmatpush.bf16.msra.mxu0 0
    %189 = vmatpush.bf16.msra.mxu0 0
    %190 = vmatpush.bf16.msra.mxu0 %v159
    %191 = vmatpush.bf16.msra.mxu0 %v155
    %192 = vmatmul.bf16.gmra.mxu0 %v173
    %v193 = vpop.f32.mrf.mxu0
    %v194 = vadd.f32 %v123, %v193
    %v195 = vpop.f32.mrf.mxu0
    %v196 = vadd.f32 %v123, %v195
    %197 = vmatmul.bf16.gmra.mxu0 %v176
    %v198 = vpop.f32.mrf.mxu0
    %v199 = vadd.f32 %v123, %v198
    %v200 = vpop.f32.mrf.mxu0
    %v201 = vadd.f32 %v123, %v200
    %202 = vmatmul.bf16.gmra.mxu0 %v179
    %v203 = vpop.f32.mrf.mxu0
    %v204 = vadd.f32 %v123, %v203
    %v205 = vpop.f32.mrf.mxu0
    %v206 = vadd.f32 %v123, %v205
    %207 = vmatmul.bf16.gmra.mxu0 %v182
    %v208 = vpop.f32.mrf.mxu0
    %v209 = vadd.f32 %v123, %v208
    %v210 = vpop.f32.mrf.mxu0
    %v211 = vadd.f32 %v123, %v210
    %212 = vdwg.mxu0
    %213 = vmatpush.bf16.msra.mxu0 0
    %214 = vmatpush.bf16.msra.mxu0 0
    %215 = vmatpush.bf16.msra.mxu0 0
    %216 = vmatpush.bf16.msra.mxu0 0
    %217 = vmatpush.bf16.msra.mxu0 0
    %218 = vmatpush.bf16.msra.mxu0 0
    %219 = vmatpush.bf16.msra.mxu0 %v160
    %220 = vmatpush.bf16.msra.mxu0 %v156
    %221 = vmatmul.bf16.gmra.mxu0 %v173
    %v222 = vpop.f32.mrf.mxu0
    %v223 = vadd.f32 %v124, %v222
    %v224 = vpop.f32.mrf.mxu0
    %v225 = vadd.f32 %v124, %v224
    %226 = vmatmul.bf16.gmra.mxu0 %v176
    %v227 = vpop.f32.mrf.mxu0
    %v228 = vadd.f32 %v124, %v227
    %v229 = vpop.f32.mrf.mxu0
    %v230 = vadd.f32 %v124, %v229
    %231 = vmatmul.bf16.gmra.mxu0 %v179
    %v232 = vpop.f32.mrf.mxu0
    %v233 = vadd.f32 %v124, %v232
    %v234 = vpop.f32.mrf.mxu0
    %v235 = vadd.f32 %v124, %v234
    %236 = vmatmul.bf16.gmra.mxu0 %v182
    %v237 = vpop.f32.mrf.mxu0
    %v238 = vadd.f32 %v124, %v237
    %v239 = vpop.f32.mrf.mxu0
    %v240 = vadd.f32 %v124, %v239
    %241 = vdwg.mxu0
    %242 = vmatpush.bf16.msra.mxu0 0
    %243 = vmatpush.bf16.msra.mxu0 0
    %244 = vmatpush.bf16.msra.mxu0 0
    %245 = vmatpush.bf16.msra.mxu0 0
    %246 = vmatpush.bf16.msra.mxu0 0
    %247 = vmatpush.bf16.msra.mxu0 0
    %248 = vmatpush.bf16.msra.mxu0 %v161
    %249 = vmatpush.bf16.msra.mxu0 %v157
    %250 = vmatmul.bf16.gmra.mxu0 %v173
    %v251 = vpop.f32.mrf.mxu0
    %v252 = vadd.f32 %v125, %v251
    %v253 = vpop.f32.mrf.mxu0
    %v254 = vadd.f32 %v125, %v253
    %255 = vmatmul.bf16.gmra.mxu0 %v176
    %v256 = vpop.f32.mrf.mxu0
    %v257 = vadd.f32 %v125, %v256
    %v258 = vpop.f32.mrf.mxu0
    %v259 = vadd.f32 %v125, %v258
    %260 = vmatmul.bf16.gmra.mxu0 %v179
    %v261 = vpop.f32.mrf.mxu0
    %v262 = vadd.f32 %v125, %v261
    %v263 = vpop.f32.mrf.mxu0
    %v264 = vadd.f32 %v125, %v263
    %265 = vmatmul.bf16.gmra.mxu0 %v182
    %v266 = vpop.f32.mrf.mxu0
    %v267 = vadd.f32 %v125, %v266
    %v268 = vpop.f32.mrf.mxu0
    %v269 = vadd.f32 %v125, %v268
    %270 = vdwg.mxu0
    %271 = vmatpush.bf16.msra.mxu0 0
    %272 = vmatpush.bf16.msra.mxu0 0
    %273 = vmatpush.bf16.msra.mxu0 0
    %274 = vmatpush.bf16.msra.mxu0 0
    %275 = vmatpush.bf16.msra.mxu0 0
    %276 = vmatpush.bf16.msra.mxu0 0
    %277 = vmatpush.bf16.msra.mxu0 %v162
    %278 = vmatpush.bf16.msra.mxu0 %v158
    %279 = vmatmul.bf16.gmra.mxu0 %v173
    %v280 = vpop.f32.mrf.mxu0
    %v281 = vadd.f32 %v126, %v280
    %v282 = vpop.f32.mrf.mxu0
    %v283 = vadd.f32 %v126, %v282
    %284 = vmatmul.bf16.gmra.mxu0 %v176
    %v285 = vpop.f32.mrf.mxu0
    %v286 = vadd.f32 %v126, %v285
    %v287 = vpop.f32.mrf.mxu0
    %v288 = vadd.f32 %v126, %v287
    %289 = vmatmul.bf16.gmra.mxu0 %v179
    %v290 = vpop.f32.mrf.mxu0
    %v291 = vadd.f32 %v126, %v290
    %v292 = vpop.f32.mrf.mxu0
    %v293 = vadd.f32 %v126, %v292
    %294 = vmatmul.bf16.gmra.mxu0 %v182
    %v295 = vpop.f32.mrf.mxu0
    %v296 = vadd.f32 %v126, %v295
    %v297 = vpop.f32.mrf.mxu0
    %v298 = vadd.f32 %v126, %v297
    %299 = vdwg.mxu0
    %300 = vst [vmem:[#allocation2] sm:$0xff] %v194
    %301 = vst [vmem:[#allocation2 + $0x8] sm:$0xff] %v223
    %302 = vst [vmem:[#allocation2 + $0x10] sm:$0xff] %v196
    %303 = vst [vmem:[#allocation2 + $0x18] sm:$0xff] %v225
    %304 = vst [vmem:[#allocation2 + $0x20] sm:$0xff] %v199
    %305 = vst [vmem:[#allocation2 + $0x28] sm:$0xff] %v228
    %306 = vst [vmem:[#allocation2 + $0x30] sm:$0xff] %v201
    %307 = vst [vmem:[#allocation2 + $0x38] sm:$0xff] %v230
    %308 = vst [vmem:[#allocation2 + $0x40] sm:$0xff] %v204
    %309 = vst [vmem:[#allocation2 + $0x48] sm:$0xff] %v233
    %310 = vst [vmem:[#allocation2 + $0x50] sm:$0xff] %v206
    %311 = vst [vmem:[#allocation2 + $0x58] sm:$0xff] %v235
    %312 = vst [vmem:[#allocation2 + $0x60] sm:$0xff] %v209
    %313 = vst [vmem:[#allocation2 + $0x68] sm:$0xff] %v238
    %314 = vst [vmem:[#allocation2 + $0x70] sm:$0xff] %v211
    %315 = vst [vmem:[#allocation2 + $0x78] sm:$0xff] %v240
    %316 = vst [vmem:[#allocation3] sm:$0xff] %v252
    %317 = vst [vmem:[#allocation3 + $0x8] sm:$0xff] %v281
    %318 = vst [vmem:[#allocation3 + $0x10] sm:$0xff] %v254
    %319 = vst [vmem:[#allocation3 + $0x18] sm:$0xff] %v283
    %320 = vst [vmem:[#allocation3 + $0x20] sm:$0xff] %v257
    %321 = vst [vmem:[#allocation3 + $0x28] sm:$0xff] %v286
    %322 = vst [vmem:[#allocation3 + $0x30] sm:$0xff] %v259
    %323 = vst [vmem:[#allocation3 + $0x38] sm:$0xff] %v288
    %324 = vst [vmem:[#allocation3 + $0x40] sm:$0xff] %v262
    %325 = vst [vmem:[#allocation3 + $0x48] sm:$0xff] %v291
    %326 = vst [vmem:[#allocation3 + $0x50] sm:$0xff] %v264
    %327 = vst [vmem:[#allocation3 + $0x58] sm:$0xff] %v293
    %328 = vst [vmem:[#allocation3 + $0x60] sm:$0xff] %v267
    %329 = vst [vmem:[#allocation3 + $0x68] sm:$0xff] %v296
    %330 = vst [vmem:[#allocation3 + $0x70] sm:$0xff] %v269
    %331 = vst [vmem:[#allocation3 + $0x78] sm:$0xff] %v298
    %v332 = vlaneseq
    %v333 = vand.u32 %v332, 127
    %vm334 = vcmp.ge.s32.totalorder %v333, 64
    %vm335 = vcmp.lt.s32.totalorder %v333, 96
    %vm336 = vmand %vm334, %vm335
    %v337 = vld [vmem:[#allocation12] sm:$0xff]
    %v338 = vld [vmem:[#allocation12 + $0x8] sm:$0xff]
    %v339 = vld [vmem:[#allocation12 + $0x10] sm:$0xff]
    %v340 = vld [vmem:[#allocation12 + $0x18] sm:$0xff]
    %v341 = vld [vmem:[#allocation12 + $0x20] sm:$0xff]
    %v342 = vld [vmem:[#allocation12 + $0x28] sm:$0xff]
    %v343 = vld [vmem:[#allocation12 + $0x30] sm:$0xff]
    %v344 = vld [vmem:[#allocation12 + $0x38] sm:$0xff]
    %v345 = vld [vmem:[#allocation12 + $0x40] sm:$0xff]
    %v346 = vld [vmem:[#allocation12 + $0x48] sm:$0xff]
    %v347 = vld [vmem:[#allocation12 + $0x50] sm:$0xff]
    %v348 = vld [vmem:[#allocation12 + $0x58] sm:$0xff]
    %v349 = vld [vmem:[#allocation12 + $0x60] sm:$0xff]
    %v350 = vld [vmem:[#allocation12 + $0x68] sm:$0xff]
    %v351 = vld [vmem:[#allocation12 + $0x70] sm:$0xff]
    %v352 = vld [vmem:[#allocation12 + $0x78] sm:$0xff]
    %v353 = vld [vmem:[#allocation12 + $0x80] sm:$0xff]
    %v354 = vld [vmem:[#allocation12 + $0x88] sm:$0xff]
    %v355 = vld [vmem:[#allocation12 + $0x90] sm:$0xff]
    %v356 = vld [vmem:[#allocation12 + $0x98] sm:$0xff]
    %v357 = vld [vmem:[#allocation12 + $0xa0] sm:$0xff]
    %v358 = vld [vmem:[#allocation12 + $0xa8] sm:$0xff]
    %v359 = vld [vmem:[#allocation12 + $0xb0] sm:$0xff]
    %v360 = vld [vmem:[#allocation12 + $0xb8] sm:$0xff]
    %v361 = vld [vmem:[#allocation12 + $0xc0] sm:$0xff]
    %v362 = vld [vmem:[#allocation12 + $0xc8] sm:$0xff]
    %v363 = vld [vmem:[#allocation12 + $0xd0] sm:$0xff]
    %v364 = vld [vmem:[#allocation12 + $0xd8] sm:$0xff]
    %v365 = vld [vmem:[#allocation12 + $0xe0] sm:$0xff]
    %v366 = vld [vmem:[#allocation12 + $0xe8] sm:$0xff]
    %v367 = vld [vmem:[#allocation12 + $0xf0] sm:$0xff]
    %v368 = vld [vmem:[#allocation12 + $0xf8] sm:$0xff]
    %v369 = vld [vmem:[#allocation12 + $0x100] sm:$0xff]
    %v370 = vld [vmem:[#allocation12 + $0x108] sm:$0xff]
    %v371 = vld [vmem:[#allocation12 + $0x110] sm:$0xff]
    %v372 = vld [vmem:[#allocation12 + $0x118] sm:$0xff]
    %v373 = vld [vmem:[#allocation12 + $0x120] sm:$0xff]
    %v374 = vld [vmem:[#allocation12 + $0x128] sm:$0xff]
    %v375 = vld [vmem:[#allocation12 + $0x130] sm:$0xff]
    %v376 = vld [vmem:[#allocation12 + $0x138] sm:$0xff]
    %v377 = vld [vmem:[#allocation12 + $0x140] sm:$0xff]
    %v378 = vld [vmem:[#allocation12 + $0x148] sm:$0xff]
    %v379 = vld [vmem:[#allocation12 + $0x150] sm:$0xff]
    %v380 = vld [vmem:[#allocation12 + $0x158] sm:$0xff]
    %v381 = vld [vmem:[#allocation12 + $0x160] sm:$0xff]
    %v382 = vld [vmem:[#allocation12 + $0x168] sm:$0xff]
    %v383 = vld [vmem:[#allocation12 + $0x170] sm:$0xff]
    %v384 = vld [vmem:[#allocation12 + $0x178] sm:$0xff]
    %v385 = vld [vmem:[#allocation12 + $0x180] sm:$0xff]
    %v386 = vld [vmem:[#allocation12 + $0x188] sm:$0xff]
    %v387 = vld [vmem:[#allocation12 + $0x190] sm:$0xff]
    %v388 = vld [vmem:[#allocation12 + $0x198] sm:$0xff]
    %v389 = vld [vmem:[#allocation12 + $0x1a0] sm:$0xff]
    %v390 = vld [vmem:[#allocation12 + $0x1a8] sm:$0xff]
    %v391 = vld [vmem:[#allocation12 + $0x1b0] sm:$0xff]
    %v392 = vld [vmem:[#allocation12 + $0x1b8] sm:$0xff]
    %v393 = vld [vmem:[#allocation12 + $0x1c0] sm:$0xff]
    %v394 = vld [vmem:[#allocation12 + $0x1c8] sm:$0xff]
    %v395 = vld [vmem:[#allocation12 + $0x1d0] sm:$0xff]
    %v396 = vld [vmem:[#allocation12 + $0x1d8] sm:$0xff]
    %v397 = vld [vmem:[#allocation12 + $0x1e0] sm:$0xff]
    %v398 = vld [vmem:[#allocation12 + $0x1e8] sm:$0xff]
    %v399 = vld [vmem:[#allocation12 + $0x1f0] sm:$0xff]
    %v400 = vld [vmem:[#allocation12 + $0x1f8] sm:$0xff]
    %v401 = vld [vmem:[#allocation2] sm:$0xff]
    %v402 = vld [vmem:[#allocation2 + $0x8] sm:$0xff]
    %s403 = scalar_lea.vmem [#allocation3], 112
    %v404 = vld [vmem:[%s403] sm:$0xff]
    %v405 = vld [vmem:[%s403 + $0x8] sm:$0xff]
    %v470 = vunpack.c.l.b16 %v337
    %v471 = vunpack.c.h.b16 %v337
    %v472 = vunpack.c.l.b16 %v338
    %v473 = vunpack.c.h.b16 %v338
    %v474 = vunpack.c.l.b16 %v339
    %v475 = vunpack.c.h.b16 %v339
    %v476 = vunpack.c.l.b16 %v340
    %v477 = vunpack.c.h.b16 %v340
    %v478 = vunpack.c.l.b16 %v341
    %v479 = vunpack.c.h.b16 %v341
    %v480 = vunpack.c.l.b16 %v342
    %v481 = vunpack.c.h.b16 %v342
    %v482 = vunpack.c.l.b16 %v343
    %v483 = vunpack.c.h.b16 %v343
    %v484 = vunpack.c.l.b16 %v344
    %v485 = vunpack.c.h.b16 %v344
    %v486 = vunpack.c.l.b16 %v345
    %v487 = vunpack.c.h.b16 %v345
    %v488 = vunpack.c.l.b16 %v346
    %v489 = vunpack.c.h.b16 %v346
    %v490 = vunpack.c.l.b16 %v347
    %v491 = vunpack.c.h.b16 %v347
    %v492 = vunpack.c.l.b16 %v348
    %v493 = vunpack.c.h.b16 %v348
    %v494 = vunpack.c.l.b16 %v349
    %v495 = vunpack.c.h.b16 %v349
    %v496 = vunpack.c.l.b16 %v350
    %v497 = vunpack.c.h.b16 %v350
    %v498 = vunpack.c.l.b16 %v351
    %v499 = vunpack.c.h.b16 %v351
    %v500 = vunpack.c.l.b16 %v352
    %v501 = vunpack.c.h.b16 %v352
    %v502 = vunpack.c.l.b16 %v353
    %v503 = vunpack.c.h.b16 %v353
    %v504 = vunpack.c.l.b16 %v354
    %v505 = vunpack.c.h.b16 %v354
    %v506 = vunpack.c.l.b16 %v355
    %v507 = vunpack.c.h.b16 %v355
    %v508 = vunpack.c.l.b16 %v356
    %v509 = vunpack.c.h.b16 %v356
    %v510 = vunpack.c.l.b16 %v357
    %v511 = vunpack.c.h.b16 %v357
    %v512 = vunpack.c.l.b16 %v358
    %v513 = vunpack.c.h.b16 %v358
    %v514 = vunpack.c.l.b16 %v359
    %v515 = vunpack.c.h.b16 %v359
    %v516 = vunpack.c.l.b16 %v360
    %v517 = vunpack.c.h.b16 %v360
    %v518 = vunpack.c.l.b16 %v361
    %v519 = vunpack.c.h.b16 %v361
    %v520 = vunpack.c.l.b16 %v362
    %v521 = vunpack.c.h.b16 %v362
    %v522 = vunpack.c.l.b16 %v363
    %v523 = vunpack.c.h.b16 %v363
    %v524 = vunpack.c.l.b16 %v364
    %v525 = vunpack.c.h.b16 %v364
    %v526 = vunpack.c.l.b16 %v365
    %v527 = vunpack.c.h.b16 %v365
    %v528 = vunpack.c.l.b16 %v366
    %v529 = vunpack.c.h.b16 %v366
    %v530 = vunpack.c.l.b16 %v367
    %v531 = vunpack.c.h.b16 %v367
    %v532 = vunpack.c.l.b16 %v368
    %v533 = vunpack.c.h.b16 %v368
    %v534 = vunpack.c.l.b16 %v369
    %v535 = vunpack.c.h.b16 %v369
    %v536 = vunpack.c.l.b16 %v370
    %v537 = vunpack.c.h.b16 %v370
    %v538 = vunpack.c.l.b16 %v371
    %v539 = vunpack.c.h.b16 %v371
    %v540 = vunpack.c.l.b16 %v372
    %v541 = vunpack.c.h.b16 %v372
    %v542 = vunpack.c.l.b16 %v373
    %v543 = vunpack.c.h.b16 %v373
    %v544 = vunpack.c.l.b16 %v374
    %v545 = vunpack.c.h.b16 %v374
    %v546 = vunpack.c.l.b16 %v375
    %v547 = vunpack.c.h.b16 %v375
    %v548 = vunpack.c.l.b16 %v376
    %v549 = vunpack.c.h.b16 %v376
    %v550 = vunpack.c.l.b16 %v377
    %v551 = vunpack.c.h.b16 %v377
    %v552 = vunpack.c.l.b16 %v378
    %v553 = vunpack.c.h.b16 %v378
    %v554 = vunpack.c.l.b16 %v379
    %v555 = vunpack.c.h.b16 %v379
    %v556 = vunpack.c.l.b16 %v380
    %v557 = vunpack.c.h.b16 %v380
    %v558 = vunpack.c.l.b16 %v381
    %v559 = vunpack.c.h.b16 %v381
    %v560 = vunpack.c.l.b16 %v382
    %v561 = vunpack.c.h.b16 %v382
    %v562 = vunpack.c.l.b16 %v383
    %v563 = vunpack.c.h.b16 %v383
    %v564 = vunpack.c.l.b16 %v384
    %v565 = vunpack.c.h.b16 %v384
    %v566 = vunpack.c.l.b16 %v385
    %v567 = vunpack.c.h.b16 %v385
    %v568 = vunpack.c.l.b16 %v386
    %v569 = vunpack.c.h.b16 %v386
    %v570 = vunpack.c.l.b16 %v387
    %v571 = vunpack.c.h.b16 %v387
    %v572 = vunpack.c.l.b16 %v388
    %v573 = vunpack.c.h.b16 %v388
    %v574 = vunpack.c.l.b16 %v389
    %v575 = vunpack.c.h.b16 %v389
    %v576 = vunpack.c.l.b16 %v390
    %v577 = vunpack.c.h.b16 %v390
    %v578 = vunpack.c.l.b16 %v391
    %v579 = vunpack.c.h.b16 %v391
    %v580 = vunpack.c.l.b16 %v392
    %v581 = vunpack.c.h.b16 %v392
    %v582 = vunpack.c.l.b16 %v393
    %v583 = vunpack.c.h.b16 %v393
    %v584 = vunpack.c.l.b16 %v394
    %v585 = vunpack.c.h.b16 %v394
    %v586 = vunpack.c.l.b16 %v395
    %v587 = vunpack.c.h.b16 %v395
    %v588 = vunpack.c.l.b16 %v396
    %v589 = vunpack.c.h.b16 %v396
    %v590 = vunpack.c.l.b16 %v397
    %v591 = vunpack.c.h.b16 %v397
    %v592 = vunpack.c.l.b16 %v398
    %v593 = vunpack.c.h.b16 %v398
    %v594 = vunpack.c.l.b16 %v399
    %v595 = vunpack.c.h.b16 %v399
    %v596 = vunpack.c.l.b16 %v400
    %v597 = vunpack.c.h.b16 %v400
    %v598 = vpack.c.b16 %v474, %v470
    %v599 = vpack.c.b16 %v475, %v471
    %v600 = vpack.c.b16 %v476, %v472
    %v601 = vpack.c.b16 %v477, %v473
    %v602 = vpack.c.b16 %v482, %v478
    %v603 = vpack.c.b16 %v483, %v479
    %v604 = vpack.c.b16 %v484, %v480
    %v605 = vpack.c.b16 %v485, %v481
    %v606 = vpack.c.b16 %v490, %v486
    %v607 = vpack.c.b16 %v491, %v487
    %v608 = vpack.c.b16 %v492, %v488
    %v609 = vpack.c.b16 %v493, %v489
    %v610 = vpack.c.b16 %v498, %v494
    %v611 = vpack.c.b16 %v499, %v495
    %v612 = vpack.c.b16 %v500, %v496
    %v613 = vpack.c.b16 %v501, %v497
    %v614 = vpack.c.b16 %v506, %v502
    %v615 = vpack.c.b16 %v507, %v503
    %v616 = vpack.c.b16 %v508, %v504
    %v617 = vpack.c.b16 %v509, %v505
    %v618 = vpack.c.b16 %v514, %v510
    %v619 = vpack.c.b16 %v515, %v511
    %v620 = vpack.c.b16 %v516, %v512
    %v621 = vpack.c.b16 %v517, %v513
    %v622 = vpack.c.b16 %v522, %v518
    %v623 = vpack.c.b16 %v523, %v519
    %v624 = vpack.c.b16 %v524, %v520
    %v625 = vpack.c.b16 %v525, %v521
    %v626 = vpack.c.b16 %v530, %v526
    %v627 = vpack.c.b16 %v531, %v527
    %v628 = vpack.c.b16 %v532, %v528
    %v629 = vpack.c.b16 %v533, %v529
    %v630 = vpack.c.b16 %v538, %v534
    %v631 = vpack.c.b16 %v539, %v535
    %v632 = vpack.c.b16 %v540, %v536
    %v633 = vpack.c.b16 %v541, %v537
    %v634 = vpack.c.b16 %v546, %v542
    %v635 = vpack.c.b16 %v547, %v543
    %v636 = vpack.c.b16 %v548, %v544
    %v637 = vpack.c.b16 %v549, %v545
    %v638 = vpack.c.b16 %v554, %v550
    %v639 = vpack.c.b16 %v555, %v551
    %v640 = vpack.c.b16 %v556, %v552
    %v641 = vpack.c.b16 %v557, %v553
    %v642 = vpack.c.b16 %v562, %v558
    %v643 = vpack.c.b16 %v563, %v559
    %v644 = vpack.c.b16 %v564, %v560
    %v645 = vpack.c.b16 %v565, %v561
    %v646 = vpack.c.b16 %v570, %v566
    %v647 = vpack.c.b16 %v571, %v567
    %v648 = vpack.c.b16 %v572, %v568
    %v649 = vpack.c.b16 %v573, %v569
    %v650 = vpack.c.b16 %v578, %v574
    %v651 = vpack.c.b16 %v579, %v575
    %v652 = vpack.c.b16 %v580, %v576
    %v653 = vpack.c.b16 %v581, %v577
    %v654 = vpack.c.b16 %v586, %v582
    %v655 = vpack.c.b16 %v587, %v583
    %v656 = vpack.c.b16 %v588, %v584
    %v657 = vpack.c.b16 %v589, %v585
    %v658 = vpack.c.b16 %v594, %v590
    %v659 = vpack.c.b16 %v595, %v591
    %v660 = vpack.c.b16 %v596, %v592
    %v661 = vpack.c.b16 %v597, %v593
    %726 = vmatpush.bf16.msra.mxu0 %v626
    %727 = vmatpush.bf16.msra.mxu0 %v622
    %728 = vmatpush.bf16.msra.mxu0 %v618
    %729 = vmatpush.bf16.msra.mxu0 %v614
    %730 = vmatpush.bf16.msra.mxu0 %v610
    %731 = vmatpush.bf16.msra.mxu0 %v606
    %732 = vmatpush.bf16.msra.mxu0 %v602
    %733 = vmatpush.bf16.msra.mxu0 %v598
    %734 = vmatmul.bf16.gmra.mxu0 0
    %v735 = vpop.f32.mrf.mxu0
    %v736 = vadd.f32 0.0, %v735
    %v737 = vpop.f32.mrf.mxu0
    %738 = vdwg.mxu0
    %739 = vmatpush.bf16.msra.mxu0 %v658
    %740 = vmatpush.bf16.msra.mxu0 %v654
    %741 = vmatpush.bf16.msra.mxu0 %v650
    %742 = vmatpush.bf16.msra.mxu0 %v646
    %743 = vmatpush.bf16.msra.mxu0 %v642
    %744 = vmatpush.bf16.msra.mxu0 %v638
    %745 = vmatpush.bf16.msra.mxu0 %v634
    %746 = vmatpush.bf16.msra.mxu0 %v630
    %747 = vmatmul.bf16.gmra.mxu0 0
    %v748 = vpop.f32.mrf.mxu0
    %v749 = vadd.f32 %v736, %v748
    %v750 = vpop.f32.mrf.mxu0
    %751 = vdwg.mxu0
    %752 = vmatpush.bf16.msra.mxu0 %v627
    %753 = vmatpush.bf16.msra.mxu0 %v623
    %754 = vmatpush.bf16.msra.mxu0 %v619
    %755 = vmatpush.bf16.msra.mxu0 %v615
    %756 = vmatpush.bf16.msra.mxu0 %v611
    %757 = vmatpush.bf16.msra.mxu0 %v607
    %758 = vmatpush.bf16.msra.mxu0 %v603
    %759 = vmatpush.bf16.msra.mxu0 %v599
    %760 = vmatmul.bf16.gmra.mxu0 0
    %v761 = vpop.f32.mrf.mxu0
    %v762 = vadd.f32 0.0, %v761
    %v763 = vpop.f32.mrf.mxu0
    %764 = vdwg.mxu0
    %765 = vmatpush.bf16.msra.mxu0 %v659
    %766 = vmatpush.bf16.msra.mxu0 %v655
    %767 = vmatpush.bf16.msra.mxu0 %v651
    %768 = vmatpush.bf16.msra.mxu0 %v647
    %769 = vmatpush.bf16.msra.mxu0 %v643
    %770 = vmatpush.bf16.msra.mxu0 %v639
    %771 = vmatpush.bf16.msra.mxu0 %v635
    %772 = vmatpush.bf16.msra.mxu0 %v631
    %773 = vmatmul.bf16.gmra.mxu0 0
    %v774 = vpop.f32.mrf.mxu0
    %v775 = vadd.f32 %v762, %v774
    %v776 = vpop.f32.mrf.mxu0
    %777 = vdwg.mxu0
    %778 = vmatpush.bf16.msra.mxu0 %v628
    %779 = vmatpush.bf16.msra.mxu0 %v624
    %780 = vmatpush.bf16.msra.mxu0 %v620
    %781 = vmatpush.bf16.msra.mxu0 %v616
    %782 = vmatpush.bf16.msra.mxu0 %v612
    %783 = vmatpush.bf16.msra.mxu0 %v608
    %784 = vmatpush.bf16.msra.mxu0 %v604
    %785 = vmatpush.bf16.msra.mxu0 %v600
    %786 = vmatmul.bf16.gmra.mxu0 0
    %v787 = vpop.f32.mrf.mxu0
    %v788 = vadd.f32 0.0, %v787
    %v789 = vpop.f32.mrf.mxu0
    %790 = vdwg.mxu0
    %791 = vmatpush.bf16.msra.mxu0 %v660
    %792 = vmatpush.bf16.msra.mxu0 %v656
    %793 = vmatpush.bf16.msra.mxu0 %v652
    %794 = vmatpush.bf16.msra.mxu0 %v648
    %795 = vmatpush.bf16.msra.mxu0 %v644
    %796 = vmatpush.bf16.msra.mxu0 %v640
    %797 = vmatpush.bf16.msra.mxu0 %v636
    %798 = vmatpush.bf16.msra.mxu0 %v632
    %799 = vmatmul.bf16.gmra.mxu0 0
    %v800 = vpop.f32.mrf.mxu0
    %v801 = vadd.f32 %v788, %v800
    %v802 = vpop.f32.mrf.mxu0
    %803 = vdwg.mxu0
    %804 = vmatpush.bf16.msra.mxu0 %v629
    %805 = vmatpush.bf16.msra.mxu0 %v625
    %806 = vmatpush.bf16.msra.mxu0 %v621
    %807 = vmatpush.bf16.msra.mxu0 %v617
    %808 = vmatpush.bf16.msra.mxu0 %v613
    %809 = vmatpush.bf16.msra.mxu0 %v609
    %810 = vmatpush.bf16.msra.mxu0 %v605
    %811 = vmatpush.bf16.msra.mxu0 %v601
    %812 = vmatmul.bf16.gmra.mxu0 0
    %v813 = vpop.f32.mrf.mxu0
    %v814 = vadd.f32 0.0, %v813
    %v815 = vpop.f32.mrf.mxu0
    %816 = vdwg.mxu0
    %817 = vmatpush.bf16.msra.mxu0 %v661
    %818 = vmatpush.bf16.msra.mxu0 %v657
    %819 = vmatpush.bf16.msra.mxu0 %v653
    %820 = vmatpush.bf16.msra.mxu0 %v649
    %821 = vmatpush.bf16.msra.mxu0 %v645
    %822 = vmatpush.bf16.msra.mxu0 %v641
    %823 = vmatpush.bf16.msra.mxu0 %v637
    %824 = vmatpush.bf16.msra.mxu0 %v633
    %825 = vmatmul.bf16.gmra.mxu0 0
    %v826 = vpop.f32.mrf.mxu0
    %v827 = vadd.f32 %v814, %v826
    %v828 = vpop.f32.mrf.mxu0
    %829 = vdwg.mxu0
    %v830 = vadd.f32 %v401, %v749
    %v831 = vadd.f32 %v402, %v775
    %v832 = vadd.f32 %v404, %v801
    %v833 = vadd.f32 %v405, %v827
    %v834 = vxor.u32 %v830, 2147483648
    %v835 = vmul.f32 %v834, 1.442695
    %v836 = vpow.pop %v835
    %v837 = vadd.f32 %v836, 1.0
    %v838 = vrcp.pop %v837
    %v839 = vmul.f32 %v837, %v838
    %v840 = vsub.f32 1.0, %v839
    %v841 = vmul.f32 %v838, %v840
    %v842 = vadd.f32 %v838, %v841
    %vm843 = vweird.f32 %v837
    %vm844 = vweird.f32 %v838
    %vm845 = vmor %vm843, %vm844
    %v846 = vsel %vm845, %v838, %v842
    %v847 = vand.u32 2147483647, %v837
    %vm848 = vcmp.eq.f32.partialorder %v847, 8.507059e+37
    %v849 = vand.u32 %v837, 2147483648
    %v850 = vor.u32 1.1754944e-38, %v849
    %v851 = vsel %vm848, %v850, %v846
    %v852 = vmul.f32 1.0, %v851
    %v853 = vxor.u32 %v831, 2147483648
    %v854 = vmul.f32 %v853, 1.442695
    %v855 = vpow.pop %v854
    %v856 = vadd.f32 %v855, 1.0
    %v857 = vrcp.pop %v856
    %v858 = vmul.f32 %v856, %v857
    %v859 = vsub.f32 1.0, %v858
    %v860 = vmul.f32 %v857, %v859
    %v861 = vadd.f32 %v857, %v860
    %vm862 = vweird.f32 %v856
    %vm863 = vweird.f32 %v857
    %vm864 = vmor %vm862, %vm863
    %v865 = vsel %vm864, %v857, %v861
    %v866 = vand.u32 2147483647, %v856
    %vm867 = vcmp.eq.f32.partialorder %v866, 8.507059e+37
    %v868 = vand.u32 %v856, 2147483648
    %v869 = vor.u32 1.1754944e-38, %v868
    %v870 = vsel %vm867, %v869, %v865
    %v871 = vmul.f32 1.0, %v870
    %v872 = vmul.f32 %v871, 2.0
    %v873 = vsub.f32 %v872, 1.0
    %v874 = vsel %vm336, %v873, %v871
    %v875 = vmul.f32 %v852, 0.0
    %v876 = vmul.f32 %v852, %v874
    %877 = vrot.lane.b32.xlu0 %v876, 64
    %v878 = vpop.permute.xlu0 %877
    %v879 = vadd.f32 %v875, %v878
    %v880 = vtanh.pop %v879
    %v881 = vmul.f32 %v874, %v880
    %v882 = vxor.u32 %v832, 2147483648
    %v883 = vmul.f32 %v882, 1.442695
    %v884 = vpow.pop %v883
    %v885 = vadd.f32 %v884, 1.0
    %v886 = vrcp.pop %v885
    %v887 = vmul.f32 %v885, %v886
    %v888 = vsub.f32 1.0, %v887
    %v889 = vmul.f32 %v886, %v888
    %v890 = vadd.f32 %v886, %v889
    %vm891 = vweird.f32 %v885
    %vm892 = vweird.f32 %v886
    %vm893 = vmor %vm891, %vm892
    %v894 = vsel %vm893, %v886, %v890
    %v895 = vand.u32 2147483647, %v885
    %vm896 = vcmp.eq.f32.partialorder %v895, 8.507059e+37
    %v897 = vand.u32 %v885, 2147483648
    %v898 = vor.u32 1.1754944e-38, %v897
    %v899 = vsel %vm896, %v898, %v894
    %v900 = vmul.f32 1.0, %v899
    %v901 = vxor.u32 %v833, 2147483648
    %v902 = vmul.f32 %v901, 1.442695
    %v903 = vpow.pop %v902
    %v904 = vadd.f32 %v903, 1.0
    %v905 = vrcp.pop %v904
    %v906 = vmul.f32 %v904, %v905
    %v907 = vsub.f32 1.0, %v906
    %v908 = vmul.f32 %v905, %v907
    %v909 = vadd.f32 %v905, %v908
    %vm910 = vweird.f32 %v904
    %vm911 = vweird.f32 %v905
    %vm912 = vmor %vm910, %vm911
    %v913 = vsel %vm912, %v905, %v909
    %v914 = vand.u32 2147483647, %v904
    %vm915 = vcmp.eq.f32.partialorder %v914, 8.507059e+37
    %v916 = vand.u32 %v904, 2147483648
    %v917 = vor.u32 1.1754944e-38, %v916
    %v918 = vsel %vm915, %v917, %v913
    %v919 = vmul.f32 1.0, %v918
    %v920 = vmul.f32 %v919, 2.0
    %v921 = vsub.f32 %v920, 1.0
    %v922 = vsel %vm336, %v921, %v919
    %v923 = vmul.f32 %v900, 0.0
    %v924 = vmul.f32 %v900, %v922
    %925 = vrot.lane.b32.xlu0 %v924, 64
    %v926 = vpop.permute.xlu0 %925
    %v927 = vadd.f32 %v923, %v926
    %v928 = vtanh.pop %v927
    %v929 = vmul.f32 %v922, %v928
    %v930 = vpack.c.bf16 %v881, %v881
    %931 = vst [vmem:[#allocation4] sm:$0xf] %v930
    %v932 = vpack.c.bf16 %v929, %v929
    %s933 = scalar_lea.vmem [#allocation5], 28
    %934 = vst [vmem:[%s933] sm:$0xf] %v932
    %s935 = scalar_lea.vmem [#allocation2], 16
    %v936 = vld [vmem:[%s935] sm:$0xff]
    %v937 = vld [vmem:[%s935 + $0x8] sm:$0xff]
    %s938 = scalar_lea.vmem [#allocation3], 96
    %v939 = vld [vmem:[%s938] sm:$0xff]
    %v940 = vld [vmem:[%s938 + $0x8] sm:$0xff]
    %941 = vmatpush.bf16.msra.mxu0 %v626
    %942 = vmatpush.bf16.msra.mxu0 %v622
    %943 = vmatpush.bf16.msra.mxu0 %v618
    %944 = vmatpush.bf16.msra.mxu0 %v614
    %945 = vmatpush.bf16.msra.mxu0 %v610
    %946 = vmatpush.bf16.msra.mxu0 %v606
    %947 = vmatpush.bf16.msra.mxu0 %v602
    %948 = vmatpush.bf16.msra.mxu0 %v598
    %949 = vmatmul.bf16.gmra.mxu0 %v930
    %v950 = vpop.f32.mrf.mxu0
    %v951 = vadd.f32 0.0, %v950
    %v952 = vpop.f32.mrf.mxu0
    %953 = vdwg.mxu0
    %954 = vmatpush.bf16.msra.mxu0 %v658
    %955 = vmatpush.bf16.msra.mxu0 %v654
    %956 = vmatpush.bf16.msra.mxu0 %v650
    %957 = vmatpush.bf16.msra.mxu0 %v646
    %958 = vmatpush.bf16.msra.mxu0 %v642
    %959 = vmatpush.bf16.msra.mxu0 %v638
    %960 = vmatpush.bf16.msra.mxu0 %v634
    %961 = vmatpush.bf16.msra.mxu0 %v630
    %962 = vmatmul.bf16.gmra.mxu0 %v932
    %v963 = vpop.f32.mrf.mxu0
    %v964 = vadd.f32 %v951, %v963
    %v965 = vpop.f32.mrf.mxu0
    %966 = vdwg.mxu0
    %967 = vmatpush.bf16.msra.mxu0 %v627
    %968 = vmatpush.bf16.msra.mxu0 %v623
    %969 = vmatpush.bf16.msra.mxu0 %v619
    %970 = vmatpush.bf16.msra.mxu0 %v615
    %971 = vmatpush.bf16.msra.mxu0 %v611
    %972 = vmatpush.bf16.msra.mxu0 %v607
    %973 = vmatpush.bf16.msra.mxu0 %v603
    %974 = vmatpush.bf16.msra.mxu0 %v599
    %975 = vmatmul.bf16.gmra.mxu0 %v930
    %v976 = vpop.f32.mrf.mxu0
    %v977 = vadd.f32 0.0, %v976
    %v978 = vpop.f32.mrf.mxu0
    %979 = vdwg.mxu0
    %980 = vmatpush.bf16.msra.mxu0 %v659
    %981 = vmatpush.bf16.msra.mxu0 %v655
    %982 = vmatpush.bf16.msra.mxu0 %v651
    %983 = vmatpush.bf16.msra.mxu0 %v647
    %984 = vmatpush.bf16.msra.mxu0 %v643
    %985 = vmatpush.bf16.msra.mxu0 %v639
    %986 = vmatpush.bf16.msra.mxu0 %v635
    %987 = vmatpush.bf16.msra.mxu0 %v631
    %988 = vmatmul.bf16.gmra.mxu0 %v932
    %v989 = vpop.f32.mrf.mxu0
    %v990 = vadd.f32 %v977, %v989
    %v991 = vpop.f32.mrf.mxu0
    %992 = vdwg.mxu0
    %993 = vmatpush.bf16.msra.mxu0 %v628
    %994 = vmatpush.bf16.msra.mxu0 %v624
    %995 = vmatpush.bf16.msra.mxu0 %v620
    %996 = vmatpush.bf16.msra.mxu0 %v616
    %997 = vmatpush.bf16.msra.mxu0 %v612
    %998 = vmatpush.bf16.msra.mxu0 %v608
    %999 = vmatpush.bf16.msra.mxu0 %v604
    %1000 = vmatpush.bf16.msra.mxu0 %v600
    %1001 = vmatmul.bf16.gmra.mxu0 %v930
    %v1002 = vpop.f32.mrf.mxu0
    %v1003 = vadd.f32 0.0, %v1002
    %v1004 = vpop.f32.mrf.mxu0
    %1005 = vdwg.mxu0
    %1006 = vmatpush.bf16.msra.mxu0 %v660
    %1007 = vmatpush.bf16.msra.mxu0 %v656
    %1008 = vmatpush.bf16.msra.mxu0 %v652
    %1009 = vmatpush.bf16.msra.mxu0 %v648
    %1010 = vmatpush.bf16.msra.mxu0 %v644
    %1011 = vmatpush.bf16.msra.mxu0 %v640
    %1012 = vmatpush.bf16.msra.mxu0 %v636
    %1013 = vmatpush.bf16.msra.mxu0 %v632
    %1014 = vmatmul.bf16.gmra.mxu0 %v932
    %v1015 = vpop.f32.mrf.mxu0
    %v1016 = vadd.f32 %v1003, %v1015
    %v1017 = vpop.f32.mrf.mxu0
    %1018 = vdwg.mxu0
    %1019 = vmatpush.bf16.msra.mxu0 %v629
    %1020 = vmatpush.bf16.msra.mxu0 %v625
    %1021 = vmatpush.bf16.msra.mxu0 %v621
    %1022 = vmatpush.bf16.msra.mxu0 %v617
    %1023 = vmatpush.bf16.msra.mxu0 %v613
    %1024 = vmatpush.bf16.msra.mxu0 %v609
    %1025 = vmatpush.bf16.msra.mxu0 %v605
    %1026 = vmatpush.bf16.msra.mxu0 %v601
    %1027 = vmatmul.bf16.gmra.mxu0 %v930
    %v1028 = vpop.f32.mrf.mxu0
    %v1029 = vadd.f32 0.0, %v1028
    %v1030 = vpop.f32.mrf.mxu0
    %1031 = vdwg.mxu0
    %1032 = vmatpush.bf16.msra.mxu0 %v661
    %1033 = vmatpush.bf16.msra.mxu0 %v657
    %1034 = vmatpush.bf16.msra.mxu0 %v653
    %1035 = vmatpush.bf16.msra.mxu0 %v649
    %1036 = vmatpush.bf16.msra.mxu0 %v645
    %1037 = vmatpush.bf16.msra.mxu0 %v641
    %1038 = vmatpush.bf16.msra.mxu0 %v637
    %1039 = vmatpush.bf16.msra.mxu0 %v633
    %1040 = vmatmul.bf16.gmra.mxu0 %v932
    %v1041 = vpop.f32.mrf.mxu0
    %v1042 = vadd.f32 %v1029, %v1041
    %v1043 = vpop.f32.mrf.mxu0
    %1044 = vdwg.mxu0
    %v1045 = vadd.f32 %v936, %v964
    %v1046 = vadd.f32 %v937, %v990
    %v1047 = vadd.f32 %v939, %v1016
    %v1048 = vadd.f32 %v940, %v1042
    %v1049 = vxor.u32 %v1045, 2147483648
    %v1050 = vmul.f32 %v1049, 1.442695
    %v1051 = vpow.pop %v1050
    %v1052 = vadd.f32 %v1051, 1.0
    %v1053 = vrcp.pop %v1052
    %v1054 = vmul.f32 %v1052, %v1053
    %v1055 = vsub.f32 1.0, %v1054
    %v1056 = vmul.f32 %v1053, %v1055
    %v1057 = vadd.f32 %v1053, %v1056
    %vm1058 = vweird.f32 %v1052
    %vm1059 = vweird.f32 %v1053
    %vm1060 = vmor %vm1058, %vm1059
    %v1061 = vsel %vm1060, %v1053, %v1057
    %v1062 = vand.u32 2147483647, %v1052
    %vm1063 = vcmp.eq.f32.partialorder %v1062, 8.507059e+37
    %v1064 = vand.u32 %v1052, 2147483648
    %v1065 = vor.u32 1.1754944e-38, %v1064
    %v1066 = vsel %vm1063, %v1065, %v1061
    %v1067 = vmul.f32 1.0, %v1066
    %v1068 = vxor.u32 %v1046, 2147483648
    %v1069 = vmul.f32 %v1068, 1.442695
    %v1070 = vpow.pop %v1069
    %v1071 = vadd.f32 %v1070, 1.0
    %v1072 = vrcp.pop %v1071
    %v1073 = vmul.f32 %v1071, %v1072
    %v1074 = vsub.f32 1.0, %v1073
    %v1075 = vmul.f32 %v1072, %v1074
    %v1076 = vadd.f32 %v1072, %v1075
    %vm1077 = vweird.f32 %v1071
    %vm1078 = vweird.f32 %v1072
    %vm1079 = vmor %vm1077, %vm1078
    %v1080 = vsel %vm1079, %v1072, %v1076
    %v1081 = vand.u32 2147483647, %v1071
    %vm1082 = vcmp.eq.f32.partialorder %v1081, 8.507059e+37
    %v1083 = vand.u32 %v1071, 2147483648
    %v1084 = vor.u32 1.1754944e-38, %v1083
    %v1085 = vsel %vm1082, %v1084, %v1080
    %v1086 = vmul.f32 1.0, %v1085
    %v1087 = vmul.f32 %v1086, 2.0
    %v1088 = vsub.f32 %v1087, 1.0
    %v1089 = vsel %vm336, %v1088, %v1086
    %v1090 = vmul.f32 %v1067, %v879
    %v1091 = vmul.f32 %v1067, %v1089
    %1092 = vrot.lane.b32.xlu0 %v1091, 64
    %v1093 = vpop.permute.xlu0 %1092
    %v1094 = vadd.f32 %v1090, %v1093
    %v1095 = vtanh.pop %v1094
    %v1096 = vmul.f32 %v1089, %v1095
    %v1097 = vxor.u32 %v1047, 2147483648
    %v1098 = vmul.f32 %v1097, 1.442695
    %v1099 = vpow.pop %v1098
    %v1100 = vadd.f32 %v1099, 1.0
    %v1101 = vrcp.pop %v1100
    %v1102 = vmul.f32 %v1100, %v1101
    %v1103 = vsub.f32 1.0, %v1102
    %v1104 = vmul.f32 %v1101, %v1103
    %v1105 = vadd.f32 %v1101, %v1104
    %vm1106 = vweird.f32 %v1100
    %vm1107 = vweird.f32 %v1101
    %vm1108 = vmor %vm1106, %vm1107
    %v1109 = vsel %vm1108, %v1101, %v1105
    %v1110 = vand.u32 2147483647, %v1100
    %vm1111 = vcmp.eq.f32.partialorder %v1110, 8.507059e+37
    %v1112 = vand.u32 %v1100, 2147483648
    %v1113 = vor.u32 1.1754944e-38, %v1112
    %v1114 = vsel %vm1111, %v1113, %v1109
    %v1115 = vmul.f32 1.0, %v1114
    %v1116 = vxor.u32 %v1048, 2147483648
    %v1117 = vmul.f32 %v1116, 1.442695
    %v1118 = vpow.pop %v1117
    %v1119 = vadd.f32 %v1118, 1.0
    %v1120 = vrcp.pop %v1119
    %v1121 = vmul.f32 %v1119, %v1120
    %v1122 = vsub.f32 1.0, %v1121
    %v1123 = vmul.f32 %v1120, %v1122
    %v1124 = vadd.f32 %v1120, %v1123
    %vm1125 = vweird.f32 %v1119
    %vm1126 = vweird.f32 %v1120
    %vm1127 = vmor %vm1125, %vm1126
    %v1128 = vsel %vm1127, %v1120, %v1124
    %v1129 = vand.u32 2147483647, %v1119
    %vm1130 = vcmp.eq.f32.partialorder %v1129, 8.507059e+37
    %v1131 = vand.u32 %v1119, 2147483648
    %v1132 = vor.u32 1.1754944e-38, %v1131
    %v1133 = vsel %vm1130, %v1132, %v1128
    %v1134 = vmul.f32 1.0, %v1133
    %v1135 = vmul.f32 %v1134, 2.0
    %v1136 = vsub.f32 %v1135, 1.0
    %v1137 = vsel %vm336, %v1136, %v1134
    %v1138 = vmul.f32 %v1115, %v927
    %v1139 = vmul.f32 %v1115, %v1137
    %1140 = vrot.lane.b32.xlu0 %v1139, 64
    %v1141 = vpop.permute.xlu0 %1140
    %v1142 = vadd.f32 %v1138, %v1141
    %v1143 = vtanh.pop %v1142
    %v1144 = vmul.f32 %v1137, %v1143
    %v1145 = vpack.c.bf16 %v1096, %v1096
    %s1146 = scalar_lea.vmem [#allocation4], 4
    %1147 = vst [vmem:[%s1146] sm:$0xf] %v1145
    %v1148 = vpack.c.bf16 %v1144, %v1144
    %s1149 = scalar_lea.vmem [#allocation5], 24
    %1150 = vst [vmem:[%s1149] sm:$0xf] %v1148
    %s1151 = scalar_lea.vmem [#allocation2], 32
    %v1152 = vld [vmem:[%s1151] sm:$0xff]
    %v1153 = vld [vmem:[%s1151 + $0x8] sm:$0xff]
    %s1154 = scalar_lea.vmem [#allocation3], 80
    %v1155 = vld [vmem:[%s1154] sm:$0xff]
    %v1156 = vld [vmem:[%s1154 + $0x8] sm:$0xff]
    %1157 = vmatpush.bf16.msra.mxu0 %v626
    %1158 = vmatpush.bf16.msra.mxu0 %v622
    %1159 = vmatpush.bf16.msra.mxu0 %v618
    %1160 = vmatpush.bf16.msra.mxu0 %v614
    %1161 = vmatpush.bf16.msra.mxu0 %v610
    %1162 = vmatpush.bf16.msra.mxu0 %v606
    %1163 = vmatpush.bf16.msra.mxu0 %v602
    %1164 = vmatpush.bf16.msra.mxu0 %v598
    %1165 = vmatmul.bf16.gmra.mxu0 %v1145
    %v1166 = vpop.f32.mrf.mxu0
    %v1167 = vadd.f32 0.0, %v1166
    %v1168 = vpop.f32.mrf.mxu0
    %1169 = vdwg.mxu0
    %1170 = vmatpush.bf16.msra.mxu0 %v658
    %1171 = vmatpush.bf16.msra.mxu0 %v654
    %1172 = vmatpush.bf16.msra.mxu0 %v650
    %1173 = vmatpush.bf16.msra.mxu0 %v646
    %1174 = vmatpush.bf16.msra.mxu0 %v642
    %1175 = vmatpush.bf16.msra.mxu0 %v638
    %1176 = vmatpush.bf16.msra.mxu0 %v634
    %1177 = vmatpush.bf16.msra.mxu0 %v630
    %1178 = vmatmul.bf16.gmra.mxu0 %v1148
    %v1179 = vpop.f32.mrf.mxu0
    %v1180 = vadd.f32 %v1167, %v1179
    %v1181 = vpop.f32.mrf.mxu0
    %1182 = vdwg.mxu0
    %1183 = vmatpush.bf16.msra.mxu0 %v627
    %1184 = vmatpush.bf16.msra.mxu0 %v623
    %1185 = vmatpush.bf16.msra.mxu0 %v619
    %1186 = vmatpush.bf16.msra.mxu0 %v615
    %1187 = vmatpush.bf16.msra.mxu0 %v611
    %1188 = vmatpush.bf16.msra.mxu0 %v607
    %1189 = vmatpush.bf16.msra.mxu0 %v603
    %1190 = vmatpush.bf16.msra.mxu0 %v599
    %1191 = vmatmul.bf16.gmra.mxu0 %v1145
    %v1192 = vpop.f32.mrf.mxu0
    %v1193 = vadd.f32 0.0, %v1192
    %v1194 = vpop.f32.mrf.mxu0
    %1195 = vdwg.mxu0
    %1196 = vmatpush.bf16.msra.mxu0 %v659
    %1197 = vmatpush.bf16.msra.mxu0 %v655
    %1198 = vmatpush.bf16.msra.mxu0 %v651
    %1199 = vmatpush.bf16.msra.mxu0 %v647
    %1200 = vmatpush.bf16.msra.mxu0 %v643
    %1201 = vmatpush.bf16.msra.mxu0 %v639
    %1202 = vmatpush.bf16.msra.mxu0 %v635
    %1203 = vmatpush.bf16.msra.mxu0 %v631
    %1204 = vmatmul.bf16.gmra.mxu0 %v1148
    %v1205 = vpop.f32.mrf.mxu0
    %v1206 = vadd.f32 %v1193, %v1205
    %v1207 = vpop.f32.mrf.mxu0
    %1208 = vdwg.mxu0
    %1209 = vmatpush.bf16.msra.mxu0 %v628
    %1210 = vmatpush.bf16.msra.mxu0 %v624
    %1211 = vmatpush.bf16.msra.mxu0 %v620
    %1212 = vmatpush.bf16.msra.mxu0 %v616
    %1213 = vmatpush.bf16.msra.mxu0 %v612
    %1214 = vmatpush.bf16.msra.mxu0 %v608
    %1215 = vmatpush.bf16.msra.mxu0 %v604
    %1216 = vmatpush.bf16.msra.mxu0 %v600
    %1217 = vmatmul.bf16.gmra.mxu0 %v1145
    %v1218 = vpop.f32.mrf.mxu0
    %v1219 = vadd.f32 0.0, %v1218
    %v1220 = vpop.f32.mrf.mxu0
    %1221 = vdwg.mxu0
    %1222 = vmatpush.bf16.msra.mxu0 %v660
    %1223 = vmatpush.bf16.msra.mxu0 %v656
    %1224 = vmatpush.bf16.msra.mxu0 %v652
    %1225 = vmatpush.bf16.msra.mxu0 %v648
    %1226 = vmatpush.bf16.msra.mxu0 %v644
    %1227 = vmatpush.bf16.msra.mxu0 %v640
    %1228 = vmatpush.bf16.msra.mxu0 %v636
    %1229 = vmatpush.bf16.msra.mxu0 %v632
    %1230 = vmatmul.bf16.gmra.mxu0 %v1148
    %v1231 = vpop.f32.mrf.mxu0
    %v1232 = vadd.f32 %v1219, %v1231
    %v1233 = vpop.f32.mrf.mxu0
    %1234 = vdwg.mxu0
    %1235 = vmatpush.bf16.msra.mxu0 %v629
    %1236 = vmatpush.bf16.msra.mxu0 %v625
    %1237 = vmatpush.bf16.msra.mxu0 %v621
    %1238 = vmatpush.bf16.msra.mxu0 %v617
    %1239 = vmatpush.bf16.msra.mxu0 %v613
    %1240 = vmatpush.bf16.msra.mxu0 %v609
    %1241 = vmatpush.bf16.msra.mxu0 %v605
    %1242 = vmatpush.bf16.msra.mxu0 %v601
    %1243 = vmatmul.bf16.gmra.mxu0 %v1145
    %v1244 = vpop.f32.mrf.mxu0
    %v1245 = vadd.f32 0.0, %v1244
    %v1246 = vpop.f32.mrf.mxu0
    %1247 = vdwg.mxu0
    %1248 = vmatpush.bf16.msra.mxu0 %v661
    %1249 = vmatpush.bf16.msra.mxu0 %v657
    %1250 = vmatpush.bf16.msra.mxu0 %v653
    %1251 = vmatpush.bf16.msra.mxu0 %v649
    %1252 = vmatpush.bf16.msra.mxu0 %v645
    %1253 = vmatpush.bf16.msra.mxu0 %v641
    %1254 = vmatpush.bf16.msra.mxu0 %v637
    %1255 = vmatpush.bf16.msra.mxu0 %v633
    %1256 = vmatmul.bf16.gmra.mxu0 %v1148
    %v1257 = vpop.f32.mrf.mxu0
    %v1258 = vadd.f32 %v1245, %v1257
    %v1259 = vpop.f32.mrf.mxu0
    %1260 = vdwg.mxu0
    %v1261 = vadd.f32 %v1152, %v1180
    %v1262 = vadd.f32 %v1153, %v1206
    %v1263 = vadd.f32 %v1155, %v1232
    %v1264 = vadd.f32 %v1156, %v1258
    %v1265 = vxor.u32 %v1261, 2147483648
    %v1266 = vmul.f32 %v1265, 1.442695
    %v1267 = vpow.pop %v1266
    %v1268 = vadd.f32 %v1267, 1.0
    %v1269 = vrcp.pop %v1268
    %v1270 = vmul.f32 %v1268, %v1269
    %v1271 = vsub.f32 1.0, %v1270
    %v1272 = vmul.f32 %v1269, %v1271
    %v1273 = vadd.f32 %v1269, %v1272
    %vm1274 = vweird.f32 %v1268
    %vm1275 = vweird.f32 %v1269
    %vm1276 = vmor %vm1274, %vm1275
    %v1277 = vsel %vm1276, %v1269, %v1273
    %v1278 = vand.u32 2147483647, %v1268
    %vm1279 = vcmp.eq.f32.partialorder %v1278, 8.507059e+37
    %v1280 = vand.u32 %v1268, 2147483648
    %v1281 = vor.u32 1.1754944e-38, %v1280
    %v1282 = vsel %vm1279, %v1281, %v1277
    %v1283 = vmul.f32 1.0, %v1282
    %v1284 = vxor.u32 %v1262, 2147483648
    %v1285 = vmul.f32 %v1284, 1.442695
    %v1286 = vpow.pop %v1285
    %v1287 = vadd.f32 %v1286, 1.0
    %v1288 = vrcp.pop %v1287
    %v1289 = vmul.f32 %v1287, %v1288
    %v1290 = vsub.f32 1.0, %v1289
    %v1291 = vmul.f32 %v1288, %v1290
    %v1292 = vadd.f32 %v1288, %v1291
    %vm1293 = vweird.f32 %v1287
    %vm1294 = vweird.f32 %v1288
    %vm1295 = vmor %vm1293, %vm1294
    %v1296 = vsel %vm1295, %v1288, %v1292
    %v1297 = vand.u32 2147483647, %v1287
    %vm1298 = vcmp.eq.f32.partialorder %v1297, 8.507059e+37
    %v1299 = vand.u32 %v1287, 2147483648
    %v1300 = vor.u32 1.1754944e-38, %v1299
    %v1301 = vsel %vm1298, %v1300, %v1296
    %v1302 = vmul.f32 1.0, %v1301
    %v1303 = vmul.f32 %v1302, 2.0
    %v1304 = vsub.f32 %v1303, 1.0
    %v1305 = vsel %vm336, %v1304, %v1302
    %v1306 = vmul.f32 %v1283, %v1094
    %v1307 = vmul.f32 %v1283, %v1305
    %1308 = vrot.lane.b32.xlu0 %v1307, 64
    %v1309 = vpop.permute.xlu0 %1308
    %v1310 = vadd.f32 %v1306, %v1309
    %v1311 = vtanh.pop %v1310
    %v1312 = vmul.f32 %v1305, %v1311
    %v1313 = vxor.u32 %v1263, 2147483648
    %v1314 = vmul.f32 %v1313, 1.442695
    %v1315 = vpow.pop %v1314
    %v1316 = vadd.f32 %v1315, 1.0
    %v1317 = vrcp.pop %v1316
    %v1318 = vmul.f32 %v1316, %v1317
    %v1319 = vsub.f32 1.0, %v1318
    %v1320 = vmul.f32 %v1317, %v1319
    %v1321 = vadd.f32 %v1317, %v1320
    %vm1322 = vweird.f32 %v1316
    %vm1323 = vweird.f32 %v1317
    %vm1324 = vmor %vm1322, %vm1323
    %v1325 = vsel %vm1324, %v1317, %v1321
    %v1326 = vand.u32 2147483647, %v1316
    %vm1327 = vcmp.eq.f32.partialorder %v1326, 8.507059e+37
    %v1328 = vand.u32 %v1316, 2147483648
    %v1329 = vor.u32 1.1754944e-38, %v1328
    %v1330 = vsel %vm1327, %v1329, %v1325
    %v1331 = vmul.f32 1.0, %v1330
    %v1332 = vxor.u32 %v1264, 2147483648
    %v1333 = vmul.f32 %v1332, 1.442695
    %v1334 = vpow.pop %v1333
    %v1335 = vadd.f32 %v1334, 1.0
    %v1336 = vrcp.pop %v1335
    %v1337 = vmul.f32 %v1335, %v1336
    %v1338 = vsub.f32 1.0, %v1337
    %v1339 = vmul.f32 %v1336, %v1338
    %v1340 = vadd.f32 %v1336, %v1339
    %vm1341 = vweird.f32 %v1335
    %vm1342 = vweird.f32 %v1336
    %vm1343 = vmor %vm1341, %vm1342
    %v1344 = vsel %vm1343, %v1336, %v1340
    %v1345 = vand.u32 2147483647, %v1335
    %vm1346 = vcmp.eq.f32.partialorder %v1345, 8.507059e+37
    %v1347 = vand.u32 %v1335, 2147483648
    %v1348 = vor.u32 1.1754944e-38, %v1347
    %v1349 = vsel %vm1346, %v1348, %v1344
    %v1350 = vmul.f32 1.0, %v1349
    %v1351 = vmul.f32 %v1350, 2.0
    %v1352 = vsub.f32 %v1351, 1.0
    %v1353 = vsel %vm336, %v1352, %v1350
    %v1354 = vmul.f32 %v1331, %v1142
    %v1355 = vmul.f32 %v1331, %v1353
    %1356 = vrot.lane.b32.xlu0 %v1355, 64
    %v1357 = vpop.permute.xlu0 %1356
    %v1358 = vadd.f32 %v1354, %v1357
    %v1359 = vtanh.pop %v1358
    %v1360 = vmul.f32 %v1353, %v1359
    %v1361 = vpack.c.bf16 %v1312, %v1312
    %s1362 = scalar_lea.vmem [#allocation4], 8
    %1363 = vst [vmem:[%s1362] sm:$0xf] %v1361
    %v1364 = vpack.c.bf16 %v1360, %v1360
    %s1365 = scalar_lea.vmem [#allocation5], 20
    %1366 = vst [vmem:[%s1365] sm:$0xf] %v1364
    %s1367 = scalar_lea.vmem [#allocation2], 48
    %v1368 = vld [vmem:[%s1367] sm:$0xff]
    %v1369 = vld [vmem:[%s1367 + $0x8] sm:$0xff]
    %s1370 = scalar_lea.vmem [#allocation3], 64
    %v1371 = vld [vmem:[%s1370] sm:$0xff]
    %v1372 = vld [vmem:[%s1370 + $0x8] sm:$0xff]
    %1373 = vmatpush.bf16.msra.mxu0 %v626
    %1374 = vmatpush.bf16.msra.mxu0 %v622
    %1375 = vmatpush.bf16.msra.mxu0 %v618
    %1376 = vmatpush.bf16.msra.mxu0 %v614
    %1377 = vmatpush.bf16.msra.mxu0 %v610
    %1378 = vmatpush.bf16.msra.mxu0 %v606
    %1379 = vmatpush.bf16.msra.mxu0 %v602
    %1380 = vmatpush.bf16.msra.mxu0 %v598
    %1381 = vmatmul.bf16.gmra.mxu0 %v1361
    %v1382 = vpop.f32.mrf.mxu0
    %v1383 = vadd.f32 0.0, %v1382
    %v1384 = vpop.f32.mrf.mxu0
    %1385 = vdwg.mxu0
    %1386 = vmatpush.bf16.msra.mxu0 %v658
    %1387 = vmatpush.bf16.msra.mxu0 %v654
    %1388 = vmatpush.bf16.msra.mxu0 %v650
    %1389 = vmatpush.bf16.msra.mxu0 %v646
    %1390 = vmatpush.bf16.msra.mxu0 %v642
    %1391 = vmatpush.bf16.msra.mxu0 %v638
    %1392 = vmatpush.bf16.msra.mxu0 %v634
    %1393 = vmatpush.bf16.msra.mxu0 %v630
    %1394 = vmatmul.bf16.gmra.mxu0 %v1364
    %v1395 = vpop.f32.mrf.mxu0
    %v1396 = vadd.f32 %v1383, %v1395
    %v1397 = vpop.f32.mrf.mxu0
    %1398 = vdwg.mxu0
    %1399 = vmatpush.bf16.msra.mxu0 %v627
    %1400 = vmatpush.bf16.msra.mxu0 %v623
    %1401 = vmatpush.bf16.msra.mxu0 %v619
    %1402 = vmatpush.bf16.msra.mxu0 %v615
    %1403 = vmatpush.bf16.msra.mxu0 %v611
    %1404 = vmatpush.bf16.msra.mxu0 %v607
    %1405 = vmatpush.bf16.msra.mxu0 %v603
    %1406 = vmatpush.bf16.msra.mxu0 %v599
    %1407 = vmatmul.bf16.gmra.mxu0 %v1361
    %v1408 = vpop.f32.mrf.mxu0
    %v1409 = vadd.f32 0.0, %v1408
    %v1410 = vpop.f32.mrf.mxu0
    %1411 = vdwg.mxu0
    %1412 = vmatpush.bf16.msra.mxu0 %v659
    %1413 = vmatpush.bf16.msra.mxu0 %v655
    %1414 = vmatpush.bf16.msra.mxu0 %v651
    %1415 = vmatpush.bf16.msra.mxu0 %v647
    %1416 = vmatpush.bf16.msra.mxu0 %v643
    %1417 = vmatpush.bf16.msra.mxu0 %v639
    %1418 = vmatpush.bf16.msra.mxu0 %v635
    %1419 = vmatpush.bf16.msra.mxu0 %v631
    %1420 = vmatmul.bf16.gmra.mxu0 %v1364
    %v1421 = vpop.f32.mrf.mxu0
    %v1422 = vadd.f32 %v1409, %v1421
    %v1423 = vpop.f32.mrf.mxu0
    %1424 = vdwg.mxu0
    %1425 = vmatpush.bf16.msra.mxu0 %v628
    %1426 = vmatpush.bf16.msra.mxu0 %v624
    %1427 = vmatpush.bf16.msra.mxu0 %v620
    %1428 = vmatpush.bf16.msra.mxu0 %v616
    %1429 = vmatpush.bf16.msra.mxu0 %v612
    %1430 = vmatpush.bf16.msra.mxu0 %v608
    %1431 = vmatpush.bf16.msra.mxu0 %v604
    %1432 = vmatpush.bf16.msra.mxu0 %v600
    %1433 = vmatmul.bf16.gmra.mxu0 %v1361
    %v1434 = vpop.f32.mrf.mxu0
    %v1435 = vadd.f32 0.0, %v1434
    %v1436 = vpop.f32.mrf.mxu0
    %1437 = vdwg.mxu0
    %1438 = vmatpush.bf16.msra.mxu0 %v660
    %1439 = vmatpush.bf16.msra.mxu0 %v656
    %1440 = vmatpush.bf16.msra.mxu0 %v652
    %1441 = vmatpush.bf16.msra.mxu0 %v648
    %1442 = vmatpush.bf16.msra.mxu0 %v644
    %1443 = vmatpush.bf16.msra.mxu0 %v640
    %1444 = vmatpush.bf16.msra.mxu0 %v636
    %1445 = vmatpush.bf16.msra.mxu0 %v632
    %1446 = vmatmul.bf16.gmra.mxu0 %v1364
    %v1447 = vpop.f32.mrf.mxu0
    %v1448 = vadd.f32 %v1435, %v1447
    %v1449 = vpop.f32.mrf.mxu0
    %1450 = vdwg.mxu0
    %1451 = vmatpush.bf16.msra.mxu0 %v629
    %1452 = vmatpush.bf16.msra.mxu0 %v625
    %1453 = vmatpush.bf16.msra.mxu0 %v621
    %1454 = vmatpush.bf16.msra.mxu0 %v617
    %1455 = vmatpush.bf16.msra.mxu0 %v613
    %1456 = vmatpush.bf16.msra.mxu0 %v609
    %1457 = vmatpush.bf16.msra.mxu0 %v605
    %1458 = vmatpush.bf16.msra.mxu0 %v601
    %1459 = vmatmul.bf16.gmra.mxu0 %v1361
    %v1460 = vpop.f32.mrf.mxu0
    %v1461 = vadd.f32 0.0, %v1460
    %v1462 = vpop.f32.mrf.mxu0
    %1463 = vdwg.mxu0
    %1464 = vmatpush.bf16.msra.mxu0 %v661
    %1465 = vmatpush.bf16.msra.mxu0 %v657
    %1466 = vmatpush.bf16.msra.mxu0 %v653
    %1467 = vmatpush.bf16.msra.mxu0 %v649
    %1468 = vmatpush.bf16.msra.mxu0 %v645
    %1469 = vmatpush.bf16.msra.mxu0 %v641
    %1470 = vmatpush.bf16.msra.mxu0 %v637
    %1471 = vmatpush.bf16.msra.mxu0 %v633
    %1472 = vmatmul.bf16.gmra.mxu0 %v1364
    %v1473 = vpop.f32.mrf.mxu0
    %v1474 = vadd.f32 %v1461, %v1473
    %v1475 = vpop.f32.mrf.mxu0
    %1476 = vdwg.mxu0
    %v1477 = vadd.f32 %v1368, %v1396
    %v1478 = vadd.f32 %v1369, %v1422
    %v1479 = vadd.f32 %v1371, %v1448
    %v1480 = vadd.f32 %v1372, %v1474
    %v1481 = vxor.u32 %v1477, 2147483648
    %v1482 = vmul.f32 %v1481, 1.442695
    %v1483 = vpow.pop %v1482
    %v1484 = vadd.f32 %v1483, 1.0
    %v1485 = vrcp.pop %v1484
    %v1486 = vmul.f32 %v1484, %v1485
    %v1487 = vsub.f32 1.0, %v1486
    %v1488 = vmul.f32 %v1485, %v1487
    %v1489 = vadd.f32 %v1485, %v1488
    %vm1490 = vweird.f32 %v1484
    %vm1491 = vweird.f32 %v1485
    %vm1492 = vmor %vm1490, %vm1491
    %v1493 = vsel %vm1492, %v1485, %v1489
    %v1494 = vand.u32 2147483647, %v1484
    %vm1495 = vcmp.eq.f32.partialorder %v1494, 8.507059e+37
    %v1496 = vand.u32 %v1484, 2147483648
    %v1497 = vor.u32 1.1754944e-38, %v1496
    %v1498 = vsel %vm1495, %v1497, %v1493
    %v1499 = vmul.f32 1.0, %v1498
    %v1500 = vxor.u32 %v1478, 2147483648
    %v1501 = vmul.f32 %v1500, 1.442695
    %v1502 = vpow.pop %v1501
    %v1503 = vadd.f32 %v1502, 1.0
    %v1504 = vrcp.pop %v1503
    %v1505 = vmul.f32 %v1503, %v1504
    %v1506 = vsub.f32 1.0, %v1505
    %v1507 = vmul.f32 %v1504, %v1506
    %v1508 = vadd.f32 %v1504, %v1507
    %vm1509 = vweird.f32 %v1503
    %vm1510 = vweird.f32 %v1504
    %vm1511 = vmor %vm1509, %vm1510
    %v1512 = vsel %vm1511, %v1504, %v1508
    %v1513 = vand.u32 2147483647, %v1503
    %vm1514 = vcmp.eq.f32.partialorder %v1513, 8.507059e+37
    %v1515 = vand.u32 %v1503, 2147483648
    %v1516 = vor.u32 1.1754944e-38, %v1515
    %v1517 = vsel %vm1514, %v1516, %v1512
    %v1518 = vmul.f32 1.0, %v1517
    %v1519 = vmul.f32 %v1518, 2.0
    %v1520 = vsub.f32 %v1519, 1.0
    %v1521 = vsel %vm336, %v1520, %v1518
    %v1522 = vmul.f32 %v1499, %v1310
    %v1523 = vmul.f32 %v1499, %v1521
    %1524 = vrot.lane.b32.xlu0 %v1523, 64
    %v1525 = vpop.permute.xlu0 %1524
    %v1526 = vadd.f32 %v1522, %v1525
    %v1527 = vtanh.pop %v1526
    %v1528 = vmul.f32 %v1521, %v1527
    %v1529 = vxor.u32 %v1479, 2147483648
    %v1530 = vmul.f32 %v1529, 1.442695
    %v1531 = vpow.pop %v1530
    %v1532 = vadd.f32 %v1531, 1.0
    %v1533 = vrcp.pop %v1532
    %v1534 = vmul.f32 %v1532, %v1533
    %v1535 = vsub.f32 1.0, %v1534
    %v1536 = vmul.f32 %v1533, %v1535
    %v1537 = vadd.f32 %v1533, %v1536
    %vm1538 = vweird.f32 %v1532
    %vm1539 = vweird.f32 %v1533
    %vm1540 = vmor %vm1538, %vm1539
    %v1541 = vsel %vm1540, %v1533, %v1537
    %v1542 = vand.u32 2147483647, %v1532
    %vm1543 = vcmp.eq.f32.partialorder %v1542, 8.507059e+37
    %v1544 = vand.u32 %v1532, 2147483648
    %v1545 = vor.u32 1.1754944e-38, %v1544
    %v1546 = vsel %vm1543, %v1545, %v1541
    %v1547 = vmul.f32 1.0, %v1546
    %v1548 = vxor.u32 %v1480, 2147483648
    %v1549 = vmul.f32 %v1548, 1.442695
    %v1550 = vpow.pop %v1549
    %v1551 = vadd.f32 %v1550, 1.0
    %v1552 = vrcp.pop %v1551
    %v1553 = vmul.f32 %v1551, %v1552
    %v1554 = vsub.f32 1.0, %v1553
    %v1555 = vmul.f32 %v1552, %v1554
    %v1556 = vadd.f32 %v1552, %v1555
    %vm1557 = vweird.f32 %v1551
    %vm1558 = vweird.f32 %v1552
    %vm1559 = vmor %vm1557, %vm1558
    %v1560 = vsel %vm1559, %v1552, %v1556
    %v1561 = vand.u32 2147483647, %v1551
    %vm1562 = vcmp.eq.f32.partialorder %v1561, 8.507059e+37
    %v1563 = vand.u32 %v1551, 2147483648
    %v1564 = vor.u32 1.1754944e-38, %v1563
    %v1565 = vsel %vm1562, %v1564, %v1560
    %v1566 = vmul.f32 1.0, %v1565
    %v1567 = vmul.f32 %v1566, 2.0
    %v1568 = vsub.f32 %v1567, 1.0
    %v1569 = vsel %vm336, %v1568, %v1566
    %v1570 = vmul.f32 %v1547, %v1358
    %v1571 = vmul.f32 %v1547, %v1569
    %1572 = vrot.lane.b32.xlu0 %v1571, 64
    %v1573 = vpop.permute.xlu0 %1572
    %v1574 = vadd.f32 %v1570, %v1573
    %v1575 = vtanh.pop %v1574
    %v1576 = vmul.f32 %v1569, %v1575
    %v1577 = vpack.c.bf16 %v1528, %v1528
    %s1578 = scalar_lea.vmem [#allocation4], 12
    %1579 = vst [vmem:[%s1578] sm:$0xf] %v1577
    %v1580 = vpack.c.bf16 %v1576, %v1576
    %s1581 = scalar_lea.vmem [#allocation5], 16
    %1582 = vst [vmem:[%s1581] sm:$0xf] %v1580
    %s1583 = scalar_lea.vmem [#allocation2], 64
    %v1584 = vld [vmem:[%s1583] sm:$0xff]
    %v1585 = vld [vmem:[%s1583 + $0x8] sm:$0xff]
    %s1586 = scalar_lea.vmem [#allocation3], 48
    %v1587 = vld [vmem:[%s1586] sm:$0xff]
    %v1588 = vld [vmem:[%s1586 + $0x8] sm:$0xff]
    %1589 = vmatpush.bf16.msra.mxu0 %v626
    %1590 = vmatpush.bf16.msra.mxu0 %v622
    %1591 = vmatpush.bf16.msra.mxu0 %v618
    %1592 = vmatpush.bf16.msra.mxu0 %v614
    %1593 = vmatpush.bf16.msra.mxu0 %v610
    %1594 = vmatpush.bf16.msra.mxu0 %v606
    %1595 = vmatpush.bf16.msra.mxu0 %v602
    %1596 = vmatpush.bf16.msra.mxu0 %v598
    %1597 = vmatmul.bf16.gmra.mxu0 %v1577
    %v1598 = vpop.f32.mrf.mxu0
    %v1599 = vadd.f32 0.0, %v1598
    %v1600 = vpop.f32.mrf.mxu0
    %1601 = vdwg.mxu0
    %1602 = vmatpush.bf16.msra.mxu0 %v658
    %1603 = vmatpush.bf16.msra.mxu0 %v654
    %1604 = vmatpush.bf16.msra.mxu0 %v650
    %1605 = vmatpush.bf16.msra.mxu0 %v646
    %1606 = vmatpush.bf16.msra.mxu0 %v642
    %1607 = vmatpush.bf16.msra.mxu0 %v638
    %1608 = vmatpush.bf16.msra.mxu0 %v634
    %1609 = vmatpush.bf16.msra.mxu0 %v630
    %1610 = vmatmul.bf16.gmra.mxu0 %v1580
    %v1611 = vpop.f32.mrf.mxu0
    %v1612 = vadd.f32 %v1599, %v1611
    %v1613 = vpop.f32.mrf.mxu0
    %1614 = vdwg.mxu0
    %1615 = vmatpush.bf16.msra.mxu0 %v627
    %1616 = vmatpush.bf16.msra.mxu0 %v623
    %1617 = vmatpush.bf16.msra.mxu0 %v619
    %1618 = vmatpush.bf16.msra.mxu0 %v615
    %1619 = vmatpush.bf16.msra.mxu0 %v611
    %1620 = vmatpush.bf16.msra.mxu0 %v607
    %1621 = vmatpush.bf16.msra.mxu0 %v603
    %1622 = vmatpush.bf16.msra.mxu0 %v599
    %1623 = vmatmul.bf16.gmra.mxu0 %v1577
    %v1624 = vpop.f32.mrf.mxu0
    %v1625 = vadd.f32 0.0, %v1624
    %v1626 = vpop.f32.mrf.mxu0
    %1627 = vdwg.mxu0
    %1628 = vmatpush.bf16.msra.mxu0 %v659
    %1629 = vmatpush.bf16.msra.mxu0 %v655
    %1630 = vmatpush.bf16.msra.mxu0 %v651
    %1631 = vmatpush.bf16.msra.mxu0 %v647
    %1632 = vmatpush.bf16.msra.mxu0 %v643
    %1633 = vmatpush.bf16.msra.mxu0 %v639
    %1634 = vmatpush.bf16.msra.mxu0 %v635
    %1635 = vmatpush.bf16.msra.mxu0 %v631
    %1636 = vmatmul.bf16.gmra.mxu0 %v1580
    %v1637 = vpop.f32.mrf.mxu0
    %v1638 = vadd.f32 %v1625, %v1637
    %v1639 = vpop.f32.mrf.mxu0
    %1640 = vdwg.mxu0
    %1641 = vmatpush.bf16.msra.mxu0 %v628
    %1642 = vmatpush.bf16.msra.mxu0 %v624
    %1643 = vmatpush.bf16.msra.mxu0 %v620
    %1644 = vmatpush.bf16.msra.mxu0 %v616
    %1645 = vmatpush.bf16.msra.mxu0 %v612
    %1646 = vmatpush.bf16.msra.mxu0 %v608
    %1647 = vmatpush.bf16.msra.mxu0 %v604
    %1648 = vmatpush.bf16.msra.mxu0 %v600
    %1649 = vmatmul.bf16.gmra.mxu0 %v1577
    %v1650 = vpop.f32.mrf.mxu0
    %v1651 = vadd.f32 0.0, %v1650
    %v1652 = vpop.f32.mrf.mxu0
    %1653 = vdwg.mxu0
    %1654 = vmatpush.bf16.msra.mxu0 %v660
    %1655 = vmatpush.bf16.msra.mxu0 %v656
    %1656 = vmatpush.bf16.msra.mxu0 %v652
    %1657 = vmatpush.bf16.msra.mxu0 %v648
    %1658 = vmatpush.bf16.msra.mxu0 %v644
    %1659 = vmatpush.bf16.msra.mxu0 %v640
    %1660 = vmatpush.bf16.msra.mxu0 %v636
    %1661 = vmatpush.bf16.msra.mxu0 %v632
    %1662 = vmatmul.bf16.gmra.mxu0 %v1580
    %v1663 = vpop.f32.mrf.mxu0
    %v1664 = vadd.f32 %v1651, %v1663
    %v1665 = vpop.f32.mrf.mxu0
    %1666 = vdwg.mxu0
    %1667 = vmatpush.bf16.msra.mxu0 %v629
    %1668 = vmatpush.bf16.msra.mxu0 %v625
    %1669 = vmatpush.bf16.msra.mxu0 %v621
    %1670 = vmatpush.bf16.msra.mxu0 %v617
    %1671 = vmatpush.bf16.msra.mxu0 %v613
    %1672 = vmatpush.bf16.msra.mxu0 %v609
    %1673 = vmatpush.bf16.msra.mxu0 %v605
    %1674 = vmatpush.bf16.msra.mxu0 %v601
    %1675 = vmatmul.bf16.gmra.mxu0 %v1577
    %v1676 = vpop.f32.mrf.mxu0
    %v1677 = vadd.f32 0.0, %v1676
    %v1678 = vpop.f32.mrf.mxu0
    %1679 = vdwg.mxu0
    %1680 = vmatpush.bf16.msra.mxu0 %v661
    %1681 = vmatpush.bf16.msra.mxu0 %v657
    %1682 = vmatpush.bf16.msra.mxu0 %v653
    %1683 = vmatpush.bf16.msra.mxu0 %v649
    %1684 = vmatpush.bf16.msra.mxu0 %v645
    %1685 = vmatpush.bf16.msra.mxu0 %v641
    %1686 = vmatpush.bf16.msra.mxu0 %v637
    %1687 = vmatpush.bf16.msra.mxu0 %v633
    %1688 = vmatmul.bf16.gmra.mxu0 %v1580
    %v1689 = vpop.f32.mrf.mxu0
    %v1690 = vadd.f32 %v1677, %v1689
    %v1691 = vpop.f32.mrf.mxu0
    %1692 = vdwg.mxu0
    %v1693 = vadd.f32 %v1584, %v1612
    %v1694 = vadd.f32 %v1585, %v1638
    %v1695 = vadd.f32 %v1587, %v1664
    %v1696 = vadd.f32 %v1588, %v1690
    %v1697 = vxor.u32 %v1693, 2147483648
    %v1698 = vmul.f32 %v1697, 1.442695
    %v1699 = vpow.pop %v1698
    %v1700 = vadd.f32 %v1699, 1.0
    %v1701 = vrcp.pop %v1700
    %v1702 = vmul.f32 %v1700, %v1701
    %v1703 = vsub.f32 1.0, %v1702
    %v1704 = vmul.f32 %v1701, %v1703
    %v1705 = vadd.f32 %v1701, %v1704
    %vm1706 = vweird.f32 %v1700
    %vm1707 = vweird.f32 %v1701
    %vm1708 = vmor %vm1706, %vm1707
    %v1709 = vsel %vm1708, %v1701, %v1705
    %v1710 = vand.u32 2147483647, %v1700
    %vm1711 = vcmp.eq.f32.partialorder %v1710, 8.507059e+37
    %v1712 = vand.u32 %v1700, 2147483648
    %v1713 = vor.u32 1.1754944e-38, %v1712
    %v1714 = vsel %vm1711, %v1713, %v1709
    %v1715 = vmul.f32 1.0, %v1714
    %v1716 = vxor.u32 %v1694, 2147483648
    %v1717 = vmul.f32 %v1716, 1.442695
    %v1718 = vpow.pop %v1717
    %v1719 = vadd.f32 %v1718, 1.0
    %v1720 = vrcp.pop %v1719
    %v1721 = vmul.f32 %v1719, %v1720
    %v1722 = vsub.f32 1.0, %v1721
    %v1723 = vmul.f32 %v1720, %v1722
    %v1724 = vadd.f32 %v1720, %v1723
    %vm1725 = vweird.f32 %v1719
    %vm1726 = vweird.f32 %v1720
    %vm1727 = vmor %vm1725, %vm1726
    %v1728 = vsel %vm1727, %v1720, %v1724
    %v1729 = vand.u32 2147483647, %v1719
    %vm1730 = vcmp.eq.f32.partialorder %v1729, 8.507059e+37
    %v1731 = vand.u32 %v1719, 2147483648
    %v1732 = vor.u32 1.1754944e-38, %v1731
    %v1733 = vsel %vm1730, %v1732, %v1728
    %v1734 = vmul.f32 1.0, %v1733
    %v1735 = vmul.f32 %v1734, 2.0
    %v1736 = vsub.f32 %v1735, 1.0
    %v1737 = vsel %vm336, %v1736, %v1734
    %v1738 = vmul.f32 %v1715, %v1526
    %v1739 = vmul.f32 %v1715, %v1737
    %1740 = vrot.lane.b32.xlu0 %v1739, 64
    %v1741 = vpop.permute.xlu0 %1740
    %v1742 = vadd.f32 %v1738, %v1741
    %v1743 = vtanh.pop %v1742
    %v1744 = vmul.f32 %v1737, %v1743
    %v1745 = vxor.u32 %v1695, 2147483648
    %v1746 = vmul.f32 %v1745, 1.442695
    %v1747 = vpow.pop %v1746
    %v1748 = vadd.f32 %v1747, 1.0
    %v1749 = vrcp.pop %v1748
    %v1750 = vmul.f32 %v1748, %v1749
    %v1751 = vsub.f32 1.0, %v1750
    %v1752 = vmul.f32 %v1749, %v1751
    %v1753 = vadd.f32 %v1749, %v1752
    %vm1754 = vweird.f32 %v1748
    %vm1755 = vweird.f32 %v1749
    %vm1756 = vmor %vm1754, %vm1755
    %v1757 = vsel %vm1756, %v1749, %v1753
    %v1758 = vand.u32 2147483647, %v1748
    %vm1759 = vcmp.eq.f32.partialorder %v1758, 8.507059e+37
    %v1760 = vand.u32 %v1748, 2147483648
    %v1761 = vor.u32 1.1754944e-38, %v1760
    %v1762 = vsel %vm1759, %v1761, %v1757
    %v1763 = vmul.f32 1.0, %v1762
    %v1764 = vxor.u32 %v1696, 2147483648
    %v1765 = vmul.f32 %v1764, 1.442695
    %v1766 = vpow.pop %v1765
    %v1767 = vadd.f32 %v1766, 1.0
    %v1768 = vrcp.pop %v1767
    %v1769 = vmul.f32 %v1767, %v1768
    %v1770 = vsub.f32 1.0, %v1769
    %v1771 = vmul.f32 %v1768, %v1770
    %v1772 = vadd.f32 %v1768, %v1771
    %vm1773 = vweird.f32 %v1767
    %vm1774 = vweird.f32 %v1768
    %vm1775 = vmor %vm1773, %vm1774
    %v1776 = vsel %vm1775, %v1768, %v1772
    %v1777 = vand.u32 2147483647, %v1767
    %vm1778 = vcmp.eq.f32.partialorder %v1777, 8.507059e+37
    %v1779 = vand.u32 %v1767, 2147483648
    %v1780 = vor.u32 1.1754944e-38, %v1779
    %v1781 = vsel %vm1778, %v1780, %v1776
    %v1782 = vmul.f32 1.0, %v1781
    %v1783 = vmul.f32 %v1782, 2.0
    %v1784 = vsub.f32 %v1783, 1.0
    %v1785 = vsel %vm336, %v1784, %v1782
    %v1786 = vmul.f32 %v1763, %v1574
    %v1787 = vmul.f32 %v1763, %v1785
    %1788 = vrot.lane.b32.xlu0 %v1787, 64
    %v1789 = vpop.permute.xlu0 %1788
    %v1790 = vadd.f32 %v1786, %v1789
    %v1791 = vtanh.pop %v1790
    %v1792 = vmul.f32 %v1785, %v1791
    %v1793 = vpack.c.bf16 %v1744, %v1744
    %s1794 = scalar_lea.vmem [#allocation4], 16
    %1795 = vst [vmem:[%s1794] sm:$0xf] %v1793
    %v1796 = vpack.c.bf16 %v1792, %v1792
    %s1797 = scalar_lea.vmem [#allocation5], 12
    %1798 = vst [vmem:[%s1797] sm:$0xf] %v1796
    %s1799 = scalar_lea.vmem [#allocation2], 80
    %v1800 = vld [vmem:[%s1799] sm:$0xff]
    %v1801 = vld [vmem:[%s1799 + $0x8] sm:$0xff]
    %s1802 = scalar_lea.vmem [#allocation3], 32
    %v1803 = vld [vmem:[%s1802] sm:$0xff]
    %v1804 = vld [vmem:[%s1802 + $0x8] sm:$0xff]
    %1805 = vmatpush.bf16.msra.mxu0 %v626
    %1806 = vmatpush.bf16.msra.mxu0 %v622
    %1807 = vmatpush.bf16.msra.mxu0 %v618
    %1808 = vmatpush.bf16.msra.mxu0 %v614
    %1809 = vmatpush.bf16.msra.mxu0 %v610
    %1810 = vmatpush.bf16.msra.mxu0 %v606
    %1811 = vmatpush.bf16.msra.mxu0 %v602
    %1812 = vmatpush.bf16.msra.mxu0 %v598
    %1813 = vmatmul.bf16.gmra.mxu0 %v1793
    %v1814 = vpop.f32.mrf.mxu0
    %v1815 = vadd.f32 0.0, %v1814
    %v1816 = vpop.f32.mrf.mxu0
    %1817 = vdwg.mxu0
    %1818 = vmatpush.bf16.msra.mxu0 %v658
    %1819 = vmatpush.bf16.msra.mxu0 %v654
    %1820 = vmatpush.bf16.msra.mxu0 %v650
    %1821 = vmatpush.bf16.msra.mxu0 %v646
    %1822 = vmatpush.bf16.msra.mxu0 %v642
    %1823 = vmatpush.bf16.msra.mxu0 %v638
    %1824 = vmatpush.bf16.msra.mxu0 %v634
    %1825 = vmatpush.bf16.msra.mxu0 %v630
    %1826 = vmatmul.bf16.gmra.mxu0 %v1796
    %v1827 = vpop.f32.mrf.mxu0
    %v1828 = vadd.f32 %v1815, %v1827
    %v1829 = vpop.f32.mrf.mxu0
    %1830 = vdwg.mxu0
    %1831 = vmatpush.bf16.msra.mxu0 %v627
    %1832 = vmatpush.bf16.msra.mxu0 %v623
    %1833 = vmatpush.bf16.msra.mxu0 %v619
    %1834 = vmatpush.bf16.msra.mxu0 %v615
    %1835 = vmatpush.bf16.msra.mxu0 %v611
    %1836 = vmatpush.bf16.msra.mxu0 %v607
    %1837 = vmatpush.bf16.msra.mxu0 %v603
    %1838 = vmatpush.bf16.msra.mxu0 %v599
    %1839 = vmatmul.bf16.gmra.mxu0 %v1793
    %v1840 = vpop.f32.mrf.mxu0
    %v1841 = vadd.f32 0.0, %v1840
    %v1842 = vpop.f32.mrf.mxu0
    %1843 = vdwg.mxu0
    %1844 = vmatpush.bf16.msra.mxu0 %v659
    %1845 = vmatpush.bf16.msra.mxu0 %v655
    %1846 = vmatpush.bf16.msra.mxu0 %v651
    %1847 = vmatpush.bf16.msra.mxu0 %v647
    %1848 = vmatpush.bf16.msra.mxu0 %v643
    %1849 = vmatpush.bf16.msra.mxu0 %v639
    %1850 = vmatpush.bf16.msra.mxu0 %v635
    %1851 = vmatpush.bf16.msra.mxu0 %v631
    %1852 = vmatmul.bf16.gmra.mxu0 %v1796
    %v1853 = vpop.f32.mrf.mxu0
    %v1854 = vadd.f32 %v1841, %v1853
    %v1855 = vpop.f32.mrf.mxu0
    %1856 = vdwg.mxu0
    %1857 = vmatpush.bf16.msra.mxu0 %v628
    %1858 = vmatpush.bf16.msra.mxu0 %v624
    %1859 = vmatpush.bf16.msra.mxu0 %v620
    %1860 = vmatpush.bf16.msra.mxu0 %v616
    %1861 = vmatpush.bf16.msra.mxu0 %v612
    %1862 = vmatpush.bf16.msra.mxu0 %v608
    %1863 = vmatpush.bf16.msra.mxu0 %v604
    %1864 = vmatpush.bf16.msra.mxu0 %v600
    %1865 = vmatmul.bf16.gmra.mxu0 %v1793
    %v1866 = vpop.f32.mrf.mxu0
    %v1867 = vadd.f32 0.0, %v1866
    %v1868 = vpop.f32.mrf.mxu0
    %1869 = vdwg.mxu0
    %1870 = vmatpush.bf16.msra.mxu0 %v660
    %1871 = vmatpush.bf16.msra.mxu0 %v656
    %1872 = vmatpush.bf16.msra.mxu0 %v652
    %1873 = vmatpush.bf16.msra.mxu0 %v648
    %1874 = vmatpush.bf16.msra.mxu0 %v644
    %1875 = vmatpush.bf16.msra.mxu0 %v640
    %1876 = vmatpush.bf16.msra.mxu0 %v636
    %1877 = vmatpush.bf16.msra.mxu0 %v632
    %1878 = vmatmul.bf16.gmra.mxu0 %v1796
    %v1879 = vpop.f32.mrf.mxu0
    %v1880 = vadd.f32 %v1867, %v1879
    %v1881 = vpop.f32.mrf.mxu0
    %1882 = vdwg.mxu0
    %1883 = vmatpush.bf16.msra.mxu0 %v629
    %1884 = vmatpush.bf16.msra.mxu0 %v625
    %1885 = vmatpush.bf16.msra.mxu0 %v621
    %1886 = vmatpush.bf16.msra.mxu0 %v617
    %1887 = vmatpush.bf16.msra.mxu0 %v613
    %1888 = vmatpush.bf16.msra.mxu0 %v609
    %1889 = vmatpush.bf16.msra.mxu0 %v605
    %1890 = vmatpush.bf16.msra.mxu0 %v601
    %1891 = vmatmul.bf16.gmra.mxu0 %v1793
    %v1892 = vpop.f32.mrf.mxu0
    %v1893 = vadd.f32 0.0, %v1892
    %v1894 = vpop.f32.mrf.mxu0
    %1895 = vdwg.mxu0
    %1896 = vmatpush.bf16.msra.mxu0 %v661
    %1897 = vmatpush.bf16.msra.mxu0 %v657
    %1898 = vmatpush.bf16.msra.mxu0 %v653
    %1899 = vmatpush.bf16.msra.mxu0 %v649
    %1900 = vmatpush.bf16.msra.mxu0 %v645
    %1901 = vmatpush.bf16.msra.mxu0 %v641
    %1902 = vmatpush.bf16.msra.mxu0 %v637
    %1903 = vmatpush.bf16.msra.mxu0 %v633
    %1904 = vmatmul.bf16.gmra.mxu0 %v1796
    %v1905 = vpop.f32.mrf.mxu0
    %v1906 = vadd.f32 %v1893, %v1905
    %v1907 = vpop.f32.mrf.mxu0
    %1908 = vdwg.mxu0
    %v1909 = vadd.f32 %v1800, %v1828
    %v1910 = vadd.f32 %v1801, %v1854
    %v1911 = vadd.f32 %v1803, %v1880
    %v1912 = vadd.f32 %v1804, %v1906
    %v1913 = vxor.u32 %v1909, 2147483648
    %v1914 = vmul.f32 %v1913, 1.442695
    %v1915 = vpow.pop %v1914
    %v1916 = vadd.f32 %v1915, 1.0
    %v1917 = vrcp.pop %v1916
    %v1918 = vmul.f32 %v1916, %v1917
    %v1919 = vsub.f32 1.0, %v1918
    %v1920 = vmul.f32 %v1917, %v1919
    %v1921 = vadd.f32 %v1917, %v1920
    %vm1922 = vweird.f32 %v1916
    %vm1923 = vweird.f32 %v1917
    %vm1924 = vmor %vm1922, %vm1923
    %v1925 = vsel %vm1924, %v1917, %v1921
    %v1926 = vand.u32 2147483647, %v1916
    %vm1927 = vcmp.eq.f32.partialorder %v1926, 8.507059e+37
    %v1928 = vand.u32 %v1916, 2147483648
    %v1929 = vor.u32 1.1754944e-38, %v1928
    %v1930 = vsel %vm1927, %v1929, %v1925
    %v1931 = vmul.f32 1.0, %v1930
    %v1932 = vxor.u32 %v1910, 2147483648
    %v1933 = vmul.f32 %v1932, 1.442695
    %v1934 = vpow.pop %v1933
    %v1935 = vadd.f32 %v1934, 1.0
    %v1936 = vrcp.pop %v1935
    %v1937 = vmul.f32 %v1935, %v1936
    %v1938 = vsub.f32 1.0, %v1937
    %v1939 = vmul.f32 %v1936, %v1938
    %v1940 = vadd.f32 %v1936, %v1939
    %vm1941 = vweird.f32 %v1935
    %vm1942 = vweird.f32 %v1936
    %vm1943 = vmor %vm1941, %vm1942
    %v1944 = vsel %vm1943, %v1936, %v1940
    %v1945 = vand.u32 2147483647, %v1935
    %vm1946 = vcmp.eq.f32.partialorder %v1945, 8.507059e+37
    %v1947 = vand.u32 %v1935, 2147483648
    %v1948 = vor.u32 1.1754944e-38, %v1947
    %v1949 = vsel %vm1946, %v1948, %v1944
    %v1950 = vmul.f32 1.0, %v1949
    %v1951 = vmul.f32 %v1950, 2.0
    %v1952 = vsub.f32 %v1951, 1.0
    %v1953 = vsel %vm336, %v1952, %v1950
    %v1954 = vmul.f32 %v1931, %v1742
    %v1955 = vmul.f32 %v1931, %v1953
    %1956 = vrot.lane.b32.xlu0 %v1955, 64
    %v1957 = vpop.permute.xlu0 %1956
    %v1958 = vadd.f32 %v1954, %v1957
    %v1959 = vtanh.pop %v1958
    %v1960 = vmul.f32 %v1953, %v1959
    %v1961 = vxor.u32 %v1911, 2147483648
    %v1962 = vmul.f32 %v1961, 1.442695
    %v1963 = vpow.pop %v1962
    %v1964 = vadd.f32 %v1963, 1.0
    %v1965 = vrcp.pop %v1964
    %v1966 = vmul.f32 %v1964, %v1965
    %v1967 = vsub.f32 1.0, %v1966
    %v1968 = vmul.f32 %v1965, %v1967
    %v1969 = vadd.f32 %v1965, %v1968
    %vm1970 = vweird.f32 %v1964
    %vm1971 = vweird.f32 %v1965
    %vm1972 = vmor %vm1970, %vm1971
    %v1973 = vsel %vm1972, %v1965, %v1969
    %v1974 = vand.u32 2147483647, %v1964
    %vm1975 = vcmp.eq.f32.partialorder %v1974, 8.507059e+37
    %v1976 = vand.u32 %v1964, 2147483648
    %v1977 = vor.u32 1.1754944e-38, %v1976
    %v1978 = vsel %vm1975, %v1977, %v1973
    %v1979 = vmul.f32 1.0, %v1978
    %v1980 = vxor.u32 %v1912, 2147483648
    %v1981 = vmul.f32 %v1980, 1.442695
    %v1982 = vpow.pop %v1981
    %v1983 = vadd.f32 %v1982, 1.0
    %v1984 = vrcp.pop %v1983
    %v1985 = vmul.f32 %v1983, %v1984
    %v1986 = vsub.f32 1.0, %v1985
    %v1987 = vmul.f32 %v1984, %v1986
    %v1988 = vadd.f32 %v1984, %v1987
    %vm1989 = vweird.f32 %v1983
    %vm1990 = vweird.f32 %v1984
    %vm1991 = vmor %vm1989, %vm1990
    %v1992 = vsel %vm1991, %v1984, %v1988
    %v1993 = vand.u32 2147483647, %v1983
    %vm1994 = vcmp.eq.f32.partialorder %v1993, 8.507059e+37
    %v1995 = vand.u32 %v1983, 2147483648
    %v1996 = vor.u32 1.1754944e-38, %v1995
    %v1997 = vsel %vm1994, %v1996, %v1992
    %v1998 = vmul.f32 1.0, %v1997
    %v1999 = vmul.f32 %v1998, 2.0
    %v2000 = vsub.f32 %v1999, 1.0
    %v2001 = vsel %vm336, %v2000, %v1998
    %v2002 = vmul.f32 %v1979, %v1790
    %v2003 = vmul.f32 %v1979, %v2001
    %2004 = vrot.lane.b32.xlu0 %v2003, 64
    %v2005 = vpop.permute.xlu0 %2004
    %v2006 = vadd.f32 %v2002, %v2005
    %v2007 = vtanh.pop %v2006
    %v2008 = vmul.f32 %v2001, %v2007
    %v2009 = vpack.c.bf16 %v1960, %v1960
    %s2010 = scalar_lea.vmem [#allocation4], 20
    %2011 = vst [vmem:[%s2010] sm:$0xf] %v2009
    %v2012 = vpack.c.bf16 %v2008, %v2008
    %s2013 = scalar_lea.vmem [#allocation5], 8
    %2014 = vst [vmem:[%s2013] sm:$0xf] %v2012
    %s2015 = scalar_lea.vmem [#allocation2], 96
    %v2016 = vld [vmem:[%s2015] sm:$0xff]
    %v2017 = vld [vmem:[%s2015 + $0x8] sm:$0xff]
    %s2018 = scalar_lea.vmem [#allocation3], 16
    %v2019 = vld [vmem:[%s2018] sm:$0xff]
    %v2020 = vld [vmem:[%s2018 + $0x8] sm:$0xff]
    %2021 = vmatpush.bf16.msra.mxu0 %v626
    %2022 = vmatpush.bf16.msra.mxu0 %v622
    %2023 = vmatpush.bf16.msra.mxu0 %v618
    %2024 = vmatpush.bf16.msra.mxu0 %v614
    %2025 = vmatpush.bf16.msra.mxu0 %v610
    %2026 = vmatpush.bf16.msra.mxu0 %v606
    %2027 = vmatpush.bf16.msra.mxu0 %v602
    %2028 = vmatpush.bf16.msra.mxu0 %v598
    %2029 = vmatmul.bf16.gmra.mxu0 %v2009
    %v2030 = vpop.f32.mrf.mxu0
    %v2031 = vadd.f32 0.0, %v2030
    %v2032 = vpop.f32.mrf.mxu0
    %2033 = vdwg.mxu0
    %2034 = vmatpush.bf16.msra.mxu0 %v658
    %2035 = vmatpush.bf16.msra.mxu0 %v654
    %2036 = vmatpush.bf16.msra.mxu0 %v650
    %2037 = vmatpush.bf16.msra.mxu0 %v646
    %2038 = vmatpush.bf16.msra.mxu0 %v642
    %2039 = vmatpush.bf16.msra.mxu0 %v638
    %2040 = vmatpush.bf16.msra.mxu0 %v634
    %2041 = vmatpush.bf16.msra.mxu0 %v630
    %2042 = vmatmul.bf16.gmra.mxu0 %v2012
    %v2043 = vpop.f32.mrf.mxu0
    %v2044 = vadd.f32 %v2031, %v2043
    %v2045 = vpop.f32.mrf.mxu0
    %2046 = vdwg.mxu0
    %2047 = vmatpush.bf16.msra.mxu0 %v627
    %2048 = vmatpush.bf16.msra.mxu0 %v623
    %2049 = vmatpush.bf16.msra.mxu0 %v619
    %2050 = vmatpush.bf16.msra.mxu0 %v615
    %2051 = vmatpush.bf16.msra.mxu0 %v611
    %2052 = vmatpush.bf16.msra.mxu0 %v607
    %2053 = vmatpush.bf16.msra.mxu0 %v603
    %2054 = vmatpush.bf16.msra.mxu0 %v599
    %2055 = vmatmul.bf16.gmra.mxu0 %v2009
    %v2056 = vpop.f32.mrf.mxu0
    %v2057 = vadd.f32 0.0, %v2056
    %v2058 = vpop.f32.mrf.mxu0
    %2059 = vdwg.mxu0
    %2060 = vmatpush.bf16.msra.mxu0 %v659
    %2061 = vmatpush.bf16.msra.mxu0 %v655
    %2062 = vmatpush.bf16.msra.mxu0 %v651
    %2063 = vmatpush.bf16.msra.mxu0 %v647
    %2064 = vmatpush.bf16.msra.mxu0 %v643
    %2065 = vmatpush.bf16.msra.mxu0 %v639
    %2066 = vmatpush.bf16.msra.mxu0 %v635
    %2067 = vmatpush.bf16.msra.mxu0 %v631
    %2068 = vmatmul.bf16.gmra.mxu0 %v2012
    %v2069 = vpop.f32.mrf.mxu0
    %v2070 = vadd.f32 %v2057, %v2069
    %v2071 = vpop.f32.mrf.mxu0
    %2072 = vdwg.mxu0
    %2073 = vmatpush.bf16.msra.mxu0 %v628
    %2074 = vmatpush.bf16.msra.mxu0 %v624
    %2075 = vmatpush.bf16.msra.mxu0 %v620
    %2076 = vmatpush.bf16.msra.mxu0 %v616
    %2077 = vmatpush.bf16.msra.mxu0 %v612
    %2078 = vmatpush.bf16.msra.mxu0 %v608
    %2079 = vmatpush.bf16.msra.mxu0 %v604
    %2080 = vmatpush.bf16.msra.mxu0 %v600
    %2081 = vmatmul.bf16.gmra.mxu0 %v2009
    %v2082 = vpop.f32.mrf.mxu0
    %v2083 = vadd.f32 0.0, %v2082
    %v2084 = vpop.f32.mrf.mxu0
    %2085 = vdwg.mxu0
    %2086 = vmatpush.bf16.msra.mxu0 %v660
    %2087 = vmatpush.bf16.msra.mxu0 %v656
    %2088 = vmatpush.bf16.msra.mxu0 %v652
    %2089 = vmatpush.bf16.msra.mxu0 %v648
    %2090 = vmatpush.bf16.msra.mxu0 %v644
    %2091 = vmatpush.bf16.msra.mxu0 %v640
    %2092 = vmatpush.bf16.msra.mxu0 %v636
    %2093 = vmatpush.bf16.msra.mxu0 %v632
    %2094 = vmatmul.bf16.gmra.mxu0 %v2012
    %v2095 = vpop.f32.mrf.mxu0
    %v2096 = vadd.f32 %v2083, %v2095
    %v2097 = vpop.f32.mrf.mxu0
    %2098 = vdwg.mxu0
    %2099 = vmatpush.bf16.msra.mxu0 %v629
    %2100 = vmatpush.bf16.msra.mxu0 %v625
    %2101 = vmatpush.bf16.msra.mxu0 %v621
    %2102 = vmatpush.bf16.msra.mxu0 %v617
    %2103 = vmatpush.bf16.msra.mxu0 %v613
    %2104 = vmatpush.bf16.msra.mxu0 %v609
    %2105 = vmatpush.bf16.msra.mxu0 %v605
    %2106 = vmatpush.bf16.msra.mxu0 %v601
    %2107 = vmatmul.bf16.gmra.mxu0 %v2009
    %v2108 = vpop.f32.mrf.mxu0
    %v2109 = vadd.f32 0.0, %v2108
    %v2110 = vpop.f32.mrf.mxu0
    %2111 = vdwg.mxu0
    %2112 = vmatpush.bf16.msra.mxu0 %v661
    %2113 = vmatpush.bf16.msra.mxu0 %v657
    %2114 = vmatpush.bf16.msra.mxu0 %v653
    %2115 = vmatpush.bf16.msra.mxu0 %v649
    %2116 = vmatpush.bf16.msra.mxu0 %v645
    %2117 = vmatpush.bf16.msra.mxu0 %v641
    %2118 = vmatpush.bf16.msra.mxu0 %v637
    %2119 = vmatpush.bf16.msra.mxu0 %v633
    %2120 = vmatmul.bf16.gmra.mxu0 %v2012
    %v2121 = vpop.f32.mrf.mxu0
    %v2122 = vadd.f32 %v2109, %v2121
    %v2123 = vpop.f32.mrf.mxu0
    %2124 = vdwg.mxu0
    %v2125 = vadd.f32 %v2016, %v2044
    %v2126 = vadd.f32 %v2017, %v2070
    %v2127 = vadd.f32 %v2019, %v2096
    %v2128 = vadd.f32 %v2020, %v2122
    %v2129 = vxor.u32 %v2125, 2147483648
    %v2130 = vmul.f32 %v2129, 1.442695
    %v2131 = vpow.pop %v2130
    %v2132 = vadd.f32 %v2131, 1.0
    %v2133 = vrcp.pop %v2132
    %v2134 = vmul.f32 %v2132, %v2133
    %v2135 = vsub.f32 1.0, %v2134
    %v2136 = vmul.f32 %v2133, %v2135
    %v2137 = vadd.f32 %v2133, %v2136
    %vm2138 = vweird.f32 %v2132
    %vm2139 = vweird.f32 %v2133
    %vm2140 = vmor %vm2138, %vm2139
    %v2141 = vsel %vm2140, %v2133, %v2137
    %v2142 = vand.u32 2147483647, %v2132
    %vm2143 = vcmp.eq.f32.partialorder %v2142, 8.507059e+37
    %v2144 = vand.u32 %v2132, 2147483648
    %v2145 = vor.u32 1.1754944e-38, %v2144
    %v2146 = vsel %vm2143, %v2145, %v2141
    %v2147 = vmul.f32 1.0, %v2146
    %v2148 = vxor.u32 %v2126, 2147483648
    %v2149 = vmul.f32 %v2148, 1.442695
    %v2150 = vpow.pop %v2149
    %v2151 = vadd.f32 %v2150, 1.0
    %v2152 = vrcp.pop %v2151
    %v2153 = vmul.f32 %v2151, %v2152
    %v2154 = vsub.f32 1.0, %v2153
    %v2155 = vmul.f32 %v2152, %v2154
    %v2156 = vadd.f32 %v2152, %v2155
    %vm2157 = vweird.f32 %v2151
    %vm2158 = vweird.f32 %v2152
    %vm2159 = vmor %vm2157, %vm2158
    %v2160 = vsel %vm2159, %v2152, %v2156
    %v2161 = vand.u32 2147483647, %v2151
    %vm2162 = vcmp.eq.f32.partialorder %v2161, 8.507059e+37
    %v2163 = vand.u32 %v2151, 2147483648
    %v2164 = vor.u32 1.1754944e-38, %v2163
    %v2165 = vsel %vm2162, %v2164, %v2160
    %v2166 = vmul.f32 1.0, %v2165
    %v2167 = vmul.f32 %v2166, 2.0
    %v2168 = vsub.f32 %v2167, 1.0
    %v2169 = vsel %vm336, %v2168, %v2166
    %v2170 = vmul.f32 %v2147, %v1958
    %v2171 = vmul.f32 %v2147, %v2169
    %2172 = vrot.lane.b32.xlu0 %v2171, 64
    %v2173 = vpop.permute.xlu0 %2172
    %v2174 = vadd.f32 %v2170, %v2173
    %v2175 = vtanh.pop %v2174
    %v2176 = vmul.f32 %v2169, %v2175
    %v2177 = vxor.u32 %v2127, 2147483648
    %v2178 = vmul.f32 %v2177, 1.442695
    %v2179 = vpow.pop %v2178
    %v2180 = vadd.f32 %v2179, 1.0
    %v2181 = vrcp.pop %v2180
    %v2182 = vmul.f32 %v2180, %v2181
    %v2183 = vsub.f32 1.0, %v2182
    %v2184 = vmul.f32 %v2181, %v2183
    %v2185 = vadd.f32 %v2181, %v2184
    %vm2186 = vweird.f32 %v2180
    %vm2187 = vweird.f32 %v2181
    %vm2188 = vmor %vm2186, %vm2187
    %v2189 = vsel %vm2188, %v2181, %v2185
    %v2190 = vand.u32 2147483647, %v2180
    %vm2191 = vcmp.eq.f32.partialorder %v2190, 8.507059e+37
    %v2192 = vand.u32 %v2180, 2147483648
    %v2193 = vor.u32 1.1754944e-38, %v2192
    %v2194 = vsel %vm2191, %v2193, %v2189
    %v2195 = vmul.f32 1.0, %v2194
    %v2196 = vxor.u32 %v2128, 2147483648
    %v2197 = vmul.f32 %v2196, 1.442695
    %v2198 = vpow.pop %v2197
    %v2199 = vadd.f32 %v2198, 1.0
    %v2200 = vrcp.pop %v2199
    %v2201 = vmul.f32 %v2199, %v2200
    %v2202 = vsub.f32 1.0, %v2201
    %v2203 = vmul.f32 %v2200, %v2202
    %v2204 = vadd.f32 %v2200, %v2203
    %vm2205 = vweird.f32 %v2199
    %vm2206 = vweird.f32 %v2200
    %vm2207 = vmor %vm2205, %vm2206
    %v2208 = vsel %vm2207, %v2200, %v2204
    %v2209 = vand.u32 2147483647, %v2199
    %vm2210 = vcmp.eq.f32.partialorder %v2209, 8.507059e+37
    %v2211 = vand.u32 %v2199, 2147483648
    %v2212 = vor.u32 1.1754944e-38, %v2211
    %v2213 = vsel %vm2210, %v2212, %v2208
    %v2214 = vmul.f32 1.0, %v2213
    %v2215 = vmul.f32 %v2214, 2.0
    %v2216 = vsub.f32 %v2215, 1.0
    %v2217 = vsel %vm336, %v2216, %v2214
    %v2218 = vmul.f32 %v2195, %v2006
    %v2219 = vmul.f32 %v2195, %v2217
    %2220 = vrot.lane.b32.xlu0 %v2219, 64
    %v2221 = vpop.permute.xlu0 %2220
    %v2222 = vadd.f32 %v2218, %v2221
    %v2223 = vtanh.pop %v2222
    %v2224 = vmul.f32 %v2217, %v2223
    %v2225 = vpack.c.bf16 %v2176, %v2176
    %s2226 = scalar_lea.vmem [#allocation4], 24
    %2227 = vst [vmem:[%s2226] sm:$0xf] %v2225
    %v2228 = vpack.c.bf16 %v2224, %v2224
    %s2229 = scalar_lea.vmem [#allocation5], 4
    %2230 = vst [vmem:[%s2229] sm:$0xf] %v2228
    %s2231 = scalar_lea.vmem [#allocation2], 112
    %v2232 = vld [vmem:[%s2231] sm:$0xff]
    %v2233 = vld [vmem:[%s2231 + $0x8] sm:$0xff]
    %v2234 = vld [vmem:[#allocation3] sm:$0xff]
    %v2235 = vld [vmem:[#allocation3 + $0x8] sm:$0xff]
    %2236 = vmatpush.bf16.msra.mxu0 %v626
    %2237 = vmatpush.bf16.msra.mxu0 %v622
    %2238 = vmatpush.bf16.msra.mxu0 %v618
    %2239 = vmatpush.bf16.msra.mxu0 %v614
    %2240 = vmatpush.bf16.msra.mxu0 %v610
    %2241 = vmatpush.bf16.msra.mxu0 %v606
    %2242 = vmatpush.bf16.msra.mxu0 %v602
    %2243 = vmatpush.bf16.msra.mxu0 %v598
    %2244 = vmatmul.bf16.gmra.mxu0 %v2225
    %v2245 = vpop.f32.mrf.mxu0
    %v2246 = vadd.f32 0.0, %v2245
    %v2247 = vpop.f32.mrf.mxu0
    %2248 = vdwg.mxu0
    %2249 = vmatpush.bf16.msra.mxu0 %v658
    %2250 = vmatpush.bf16.msra.mxu0 %v654
    %2251 = vmatpush.bf16.msra.mxu0 %v650
    %2252 = vmatpush.bf16.msra.mxu0 %v646
    %2253 = vmatpush.bf16.msra.mxu0 %v642
    %2254 = vmatpush.bf16.msra.mxu0 %v638
    %2255 = vmatpush.bf16.msra.mxu0 %v634
    %2256 = vmatpush.bf16.msra.mxu0 %v630
    %2257 = vmatmul.bf16.gmra.mxu0 %v2228
    %v2258 = vpop.f32.mrf.mxu0
    %v2259 = vadd.f32 %v2246, %v2258
    %v2260 = vpop.f32.mrf.mxu0
    %2261 = vdwg.mxu0
    %2262 = vmatpush.bf16.msra.mxu0 %v627
    %2263 = vmatpush.bf16.msra.mxu0 %v623
    %2264 = vmatpush.bf16.msra.mxu0 %v619
    %2265 = vmatpush.bf16.msra.mxu0 %v615
    %2266 = vmatpush.bf16.msra.mxu0 %v611
    %2267 = vmatpush.bf16.msra.mxu0 %v607
    %2268 = vmatpush.bf16.msra.mxu0 %v603
    %2269 = vmatpush.bf16.msra.mxu0 %v599
    %2270 = vmatmul.bf16.gmra.mxu0 %v2225
    %v2271 = vpop.f32.mrf.mxu0
    %v2272 = vadd.f32 0.0, %v2271
    %v2273 = vpop.f32.mrf.mxu0
    %2274 = vdwg.mxu0
    %2275 = vmatpush.bf16.msra.mxu0 %v659
    %2276 = vmatpush.bf16.msra.mxu0 %v655
    %2277 = vmatpush.bf16.msra.mxu0 %v651
    %2278 = vmatpush.bf16.msra.mxu0 %v647
    %2279 = vmatpush.bf16.msra.mxu0 %v643
    %2280 = vmatpush.bf16.msra.mxu0 %v639
    %2281 = vmatpush.bf16.msra.mxu0 %v635
    %2282 = vmatpush.bf16.msra.mxu0 %v631
    %2283 = vmatmul.bf16.gmra.mxu0 %v2228
    %v2284 = vpop.f32.mrf.mxu0
    %v2285 = vadd.f32 %v2272, %v2284
    %v2286 = vpop.f32.mrf.mxu0
    %2287 = vdwg.mxu0
    %2288 = vmatpush.bf16.msra.mxu0 %v628
    %2289 = vmatpush.bf16.msra.mxu0 %v624
    %2290 = vmatpush.bf16.msra.mxu0 %v620
    %2291 = vmatpush.bf16.msra.mxu0 %v616
    %2292 = vmatpush.bf16.msra.mxu0 %v612
    %2293 = vmatpush.bf16.msra.mxu0 %v608
    %2294 = vmatpush.bf16.msra.mxu0 %v604
    %2295 = vmatpush.bf16.msra.mxu0 %v600
    %2296 = vmatmul.bf16.gmra.mxu0 %v2225
    %v2297 = vpop.f32.mrf.mxu0
    %v2298 = vadd.f32 0.0, %v2297
    %v2299 = vpop.f32.mrf.mxu0
    %2300 = vdwg.mxu0
    %2301 = vmatpush.bf16.msra.mxu0 %v660
    %2302 = vmatpush.bf16.msra.mxu0 %v656
    %2303 = vmatpush.bf16.msra.mxu0 %v652
    %2304 = vmatpush.bf16.msra.mxu0 %v648
    %2305 = vmatpush.bf16.msra.mxu0 %v644
    %2306 = vmatpush.bf16.msra.mxu0 %v640
    %2307 = vmatpush.bf16.msra.mxu0 %v636
    %2308 = vmatpush.bf16.msra.mxu0 %v632
    %2309 = vmatmul.bf16.gmra.mxu0 %v2228
    %v2310 = vpop.f32.mrf.mxu0
    %v2311 = vadd.f32 %v2298, %v2310
    %v2312 = vpop.f32.mrf.mxu0
    %2313 = vdwg.mxu0
    %2314 = vmatpush.bf16.msra.mxu0 %v629
    %2315 = vmatpush.bf16.msra.mxu0 %v625
    %2316 = vmatpush.bf16.msra.mxu0 %v621
    %2317 = vmatpush.bf16.msra.mxu0 %v617
    %2318 = vmatpush.bf16.msra.mxu0 %v613
    %2319 = vmatpush.bf16.msra.mxu0 %v609
    %2320 = vmatpush.bf16.msra.mxu0 %v605
    %2321 = vmatpush.bf16.msra.mxu0 %v601
    %2322 = vmatmul.bf16.gmra.mxu0 %v2225
    %v2323 = vpop.f32.mrf.mxu0
    %v2324 = vadd.f32 0.0, %v2323
    %v2325 = vpop.f32.mrf.mxu0
    %2326 = vdwg.mxu0
    %2327 = vmatpush.bf16.msra.mxu0 %v661
    %2328 = vmatpush.bf16.msra.mxu0 %v657
    %2329 = vmatpush.bf16.msra.mxu0 %v653
    %2330 = vmatpush.bf16.msra.mxu0 %v649
    %2331 = vmatpush.bf16.msra.mxu0 %v645
    %2332 = vmatpush.bf16.msra.mxu0 %v641
    %2333 = vmatpush.bf16.msra.mxu0 %v637
    %2334 = vmatpush.bf16.msra.mxu0 %v633
    %2335 = vmatmul.bf16.gmra.mxu0 %v2228
    %v2336 = vpop.f32.mrf.mxu0
    %v2337 = vadd.f32 %v2324, %v2336
    %v2338 = vpop.f32.mrf.mxu0
    %2339 = vdwg.mxu0
    %v2340 = vadd.f32 %v2232, %v2259
    %v2341 = vadd.f32 %v2233, %v2285
    %v2342 = vadd.f32 %v2234, %v2311
    %v2343 = vadd.f32 %v2235, %v2337
    %v2344 = vxor.u32 %v2340, 2147483648
    %v2345 = vmul.f32 %v2344, 1.442695
    %v2346 = vpow.pop %v2345
    %v2347 = vadd.f32 %v2346, 1.0
    %v2348 = vrcp.pop %v2347
    %v2349 = vmul.f32 %v2347, %v2348
    %v2350 = vsub.f32 1.0, %v2349
    %v2351 = vmul.f32 %v2348, %v2350
    %v2352 = vadd.f32 %v2348, %v2351
    %vm2353 = vweird.f32 %v2347
    %vm2354 = vweird.f32 %v2348
    %vm2355 = vmor %vm2353, %vm2354
    %v2356 = vsel %vm2355, %v2348, %v2352
    %v2357 = vand.u32 2147483647, %v2347
    %vm2358 = vcmp.eq.f32.partialorder %v2357, 8.507059e+37
    %v2359 = vand.u32 %v2347, 2147483648
    %v2360 = vor.u32 1.1754944e-38, %v2359
    %v2361 = vsel %vm2358, %v2360, %v2356
    %v2362 = vmul.f32 1.0, %v2361
    %v2363 = vxor.u32 %v2341, 2147483648
    %v2364 = vmul.f32 %v2363, 1.442695
    %v2365 = vpow.pop %v2364
    %v2366 = vadd.f32 %v2365, 1.0
    %v2367 = vrcp.pop %v2366
    %v2368 = vmul.f32 %v2366, %v2367
    %v2369 = vsub.f32 1.0, %v2368
    %v2370 = vmul.f32 %v2367, %v2369
    %v2371 = vadd.f32 %v2367, %v2370
    %vm2372 = vweird.f32 %v2366
    %vm2373 = vweird.f32 %v2367
    %vm2374 = vmor %vm2372, %vm2373
    %v2375 = vsel %vm2374, %v2367, %v2371
    %v2376 = vand.u32 2147483647, %v2366
    %vm2377 = vcmp.eq.f32.partialorder %v2376, 8.507059e+37
    %v2378 = vand.u32 %v2366, 2147483648
    %v2379 = vor.u32 1.1754944e-38, %v2378
    %v2380 = vsel %vm2377, %v2379, %v2375
    %v2381 = vmul.f32 1.0, %v2380
    %v2382 = vmul.f32 %v2381, 2.0
    %v2383 = vsub.f32 %v2382, 1.0
    %v2384 = vsel %vm336, %v2383, %v2381
    %v2385 = vmul.f32 %v2362, %v2174
    %v2386 = vmul.f32 %v2362, %v2384
    %2387 = vrot.lane.b32.xlu0 %v2386, 64
    %v2388 = vpop.permute.xlu0 %2387
    %v2389 = vadd.f32 %v2385, %v2388
    %v2390 = vtanh.pop %v2389
    %v2391 = vmul.f32 %v2384, %v2390
    %v2392 = vxor.u32 %v2342, 2147483648
    %v2393 = vmul.f32 %v2392, 1.442695
    %v2394 = vpow.pop %v2393
    %v2395 = vadd.f32 %v2394, 1.0
    %v2396 = vrcp.pop %v2395
    %v2397 = vmul.f32 %v2395, %v2396
    %v2398 = vsub.f32 1.0, %v2397
    %v2399 = vmul.f32 %v2396, %v2398
    %v2400 = vadd.f32 %v2396, %v2399
    %vm2401 = vweird.f32 %v2395
    %vm2402 = vweird.f32 %v2396
    %vm2403 = vmor %vm2401, %vm2402
    %v2404 = vsel %vm2403, %v2396, %v2400
    %v2405 = vand.u32 2147483647, %v2395
    %vm2406 = vcmp.eq.f32.partialorder %v2405, 8.507059e+37
    %v2407 = vand.u32 %v2395, 2147483648
    %v2408 = vor.u32 1.1754944e-38, %v2407
    %v2409 = vsel %vm2406, %v2408, %v2404
    %v2410 = vmul.f32 1.0, %v2409
    %v2411 = vxor.u32 %v2343, 2147483648
    %v2412 = vmul.f32 %v2411, 1.442695
    %v2413 = vpow.pop %v2412
    %v2414 = vadd.f32 %v2413, 1.0
    %v2415 = vrcp.pop %v2414
    %v2416 = vmul.f32 %v2414, %v2415
    %v2417 = vsub.f32 1.0, %v2416
    %v2418 = vmul.f32 %v2415, %v2417
    %v2419 = vadd.f32 %v2415, %v2418
    %vm2420 = vweird.f32 %v2414
    %vm2421 = vweird.f32 %v2415
    %vm2422 = vmor %vm2420, %vm2421
    %v2423 = vsel %vm2422, %v2415, %v2419
    %v2424 = vand.u32 2147483647, %v2414
    %vm2425 = vcmp.eq.f32.partialorder %v2424, 8.507059e+37
    %v2426 = vand.u32 %v2414, 2147483648
    %v2427 = vor.u32 1.1754944e-38, %v2426
    %v2428 = vsel %vm2425, %v2427, %v2423
    %v2429 = vmul.f32 1.0, %v2428
    %v2430 = vmul.f32 %v2429, 2.0
    %v2431 = vsub.f32 %v2430, 1.0
    %v2432 = vsel %vm336, %v2431, %v2429
    %v2433 = vmul.f32 %v2410, %v2222
    %v2434 = vmul.f32 %v2410, %v2432
    %2435 = vrot.lane.b32.xlu0 %v2434, 64
    %v2436 = vpop.permute.xlu0 %2435
    %v2437 = vadd.f32 %v2433, %v2436
    %v2438 = vtanh.pop %v2437
    %v2439 = vmul.f32 %v2432, %v2438
    %v2440 = vpack.c.bf16 %v2391, %v2391
    %s2441 = scalar_lea.vmem [#allocation4], 28
    %2442 = vst [vmem:[%s2441] sm:$0xf] %v2440
    %v2443 = vpack.c.bf16 %v2439, %v2439
    %2444 = vst [vmem:[#allocation5] sm:$0xf] %v2443
    %v2445 = vld [vmem:[#allocation4] sm:$0xf]
    %v2446 = vld [vmem:[#allocation4 + $0x4] sm:$0xf]
    %v2447 = vld [vmem:[#allocation4 + $0x8] sm:$0xf]
    %v2448 = vld [vmem:[#allocation4 + $0xc] sm:$0xf]
    %v2449 = vld [vmem:[#allocation4 + $0x10] sm:$0xf]
    %v2450 = vld [vmem:[#allocation4 + $0x14] sm:$0xf]
    %v2451 = vld [vmem:[#allocation4 + $0x18] sm:$0xf]
    %v2452 = vld [vmem:[#allocation4 + $0x1c] sm:$0xf]
    %v2453 = vld [vmem:[#allocation5] sm:$0xf]
    %v2454 = vld [vmem:[#allocation5 + $0x4] sm:$0xf]
    %v2455 = vld [vmem:[#allocation5 + $0x8] sm:$0xf]
    %v2456 = vld [vmem:[#allocation5 + $0xc] sm:$0xf]
    %v2457 = vld [vmem:[#allocation5 + $0x10] sm:$0xf]
    %v2458 = vld [vmem:[#allocation5 + $0x14] sm:$0xf]
    %v2459 = vld [vmem:[#allocation5 + $0x18] sm:$0xf]
    %v2460 = vld [vmem:[#allocation5 + $0x1c] sm:$0xf]
    %v2469 = vunpack.c.l.b16 %v2445
    %v2470 = vunpack.c.l.b16 %v2446
    %v2471 = vunpack.c.l.b16 %v2447
    %v2472 = vunpack.c.l.b16 %v2448
    %v2473 = vunpack.c.l.b16 %v2449
    %v2474 = vunpack.c.l.b16 %v2450
    %v2475 = vunpack.c.l.b16 %v2451
    %v2476 = vunpack.c.l.b16 %v2452
    %v2477 = vpack.c.b16 %v2470, %v2469
    %v2478 = vpack.c.b16 %v2472, %v2471
    %v2479 = vpack.c.b16 %v2474, %v2473
    %v2480 = vpack.c.b16 %v2476, %v2475
    %v2493 = vunpack.c.l.b16 %v2453
    %v2494 = vunpack.c.l.b16 %v2454
    %v2495 = vunpack.c.l.b16 %v2455
    %v2496 = vunpack.c.l.b16 %v2456
    %v2497 = vunpack.c.l.b16 %v2457
    %v2498 = vunpack.c.l.b16 %v2458
    %v2499 = vunpack.c.l.b16 %v2459
    %v2500 = vunpack.c.l.b16 %v2460
    %v2501 = vpack.c.b16 %v2494, %v2493
    %v2502 = vpack.c.b16 %v2496, %v2495
    %v2503 = vpack.c.b16 %v2498, %v2497
    %v2504 = vpack.c.b16 %v2500, %v2499
    %v2509 = vld [vmem:[#allocation14] sm:$0xf]
    %v2510 = vld [vmem:[#allocation14 + $0x4] sm:$0xf]
    %v2511 = vld [vmem:[#allocation14 + $0x8] sm:$0xf]
    %v2512 = vld [vmem:[#allocation14 + $0xc] sm:$0xf]
    %v2513 = vld [vmem:[#allocation14 + $0x10] sm:$0xf]
    %v2514 = vld [vmem:[#allocation14 + $0x14] sm:$0xf]
    %v2515 = vld [vmem:[#allocation14 + $0x18] sm:$0xf]
    %v2516 = vld [vmem:[#allocation14 + $0x1c] sm:$0xf]
    %v2517 = vld [vmem:[#allocation14 + $0x20] sm:$0xf]
    %v2518 = vld [vmem:[#allocation14 + $0x24] sm:$0xf]
    %v2519 = vld [vmem:[#allocation14 + $0x28] sm:$0xf]
    %v2520 = vld [vmem:[#allocation14 + $0x2c] sm:$0xf]
    %v2521 = vld [vmem:[#allocation14 + $0x30] sm:$0xf]
    %v2522 = vld [vmem:[#allocation14 + $0x34] sm:$0xf]
    %v2523 = vld [vmem:[#allocation14 + $0x38] sm:$0xf]
    %v2524 = vld [vmem:[#allocation14 + $0x3c] sm:$0xf]
    %v2525 = vld [vmem:[#allocation14 + $0x40] sm:$0xf]
    %v2526 = vld [vmem:[#allocation14 + $0x44] sm:$0xf]
    %v2527 = vld [vmem:[#allocation14 + $0x48] sm:$0xf]
    %v2528 = vld [vmem:[#allocation14 + $0x4c] sm:$0xf]
    %v2529 = vld [vmem:[#allocation14 + $0x50] sm:$0xf]
    %v2530 = vld [vmem:[#allocation14 + $0x54] sm:$0xf]
    %v2531 = vld [vmem:[#allocation14 + $0x58] sm:$0xf]
    %v2532 = vld [vmem:[#allocation14 + $0x5c] sm:$0xf]
    %v2533 = vld [vmem:[#allocation14 + $0x60] sm:$0xf]
    %v2534 = vld [vmem:[#allocation14 + $0x64] sm:$0xf]
    %v2535 = vld [vmem:[#allocation14 + $0x68] sm:$0xf]
    %v2536 = vld [vmem:[#allocation14 + $0x6c] sm:$0xf]
    %v2537 = vld [vmem:[#allocation14 + $0x70] sm:$0xf]
    %v2538 = vld [vmem:[#allocation14 + $0x74] sm:$0xf]
    %v2539 = vld [vmem:[#allocation14 + $0x78] sm:$0xf]
    %v2540 = vld [vmem:[#allocation14 + $0x7c] sm:$0xf]
    %v2541 = vld [vmem:[%s5] sm:$0x1]
    %v2543 = vperm.slane %v2541, 0
    %v2577 = vunpack.c.l.b16 %v2509
    %v2578 = vunpack.c.l.b16 %v2510
    %v2579 = vunpack.c.l.b16 %v2511
    %v2580 = vunpack.c.l.b16 %v2512
    %v2581 = vunpack.c.l.b16 %v2513
    %v2582 = vunpack.c.l.b16 %v2514
    %v2583 = vunpack.c.l.b16 %v2515
    %v2584 = vunpack.c.l.b16 %v2516
    %v2585 = vunpack.c.l.b16 %v2517
    %v2586 = vunpack.c.l.b16 %v2518
    %v2587 = vunpack.c.l.b16 %v2519
    %v2588 = vunpack.c.l.b16 %v2520
    %v2589 = vunpack.c.l.b16 %v2521
    %v2590 = vunpack.c.l.b16 %v2522
    %v2591 = vunpack.c.l.b16 %v2523
    %v2592 = vunpack.c.l.b16 %v2524
    %v2593 = vunpack.c.l.b16 %v2525
    %v2594 = vunpack.c.l.b16 %v2526
    %v2595 = vunpack.c.l.b16 %v2527
    %v2596 = vunpack.c.l.b16 %v2528
    %v2597 = vunpack.c.l.b16 %v2529
    %v2598 = vunpack.c.l.b16 %v2530
    %v2599 = vunpack.c.l.b16 %v2531
    %v2600 = vunpack.c.l.b16 %v2532
    %v2601 = vunpack.c.l.b16 %v2533
    %v2602 = vunpack.c.l.b16 %v2534
    %v2603 = vunpack.c.l.b16 %v2535
    %v2604 = vunpack.c.l.b16 %v2536
    %v2605 = vunpack.c.l.b16 %v2537
    %v2606 = vunpack.c.l.b16 %v2538
    %v2607 = vunpack.c.l.b16 %v2539
    %v2608 = vunpack.c.l.b16 %v2540
    %v2609 = vpack.c.b16 %v2578, %v2577
    %v2610 = vpack.c.b16 %v2580, %v2579
    %v2611 = vpack.c.b16 %v2582, %v2581
    %v2612 = vpack.c.b16 %v2584, %v2583
    %v2613 = vpack.c.b16 %v2586, %v2585
    %v2614 = vpack.c.b16 %v2588, %v2587
    %v2615 = vpack.c.b16 %v2590, %v2589
    %v2616 = vpack.c.b16 %v2592, %v2591
    %v2617 = vpack.c.b16 %v2594, %v2593
    %v2618 = vpack.c.b16 %v2596, %v2595
    %v2619 = vpack.c.b16 %v2598, %v2597
    %v2620 = vpack.c.b16 %v2600, %v2599
    %v2621 = vpack.c.b16 %v2602, %v2601
    %v2622 = vpack.c.b16 %v2604, %v2603
    %v2623 = vpack.c.b16 %v2606, %v2605
    %v2624 = vpack.c.b16 %v2608, %v2607
    %2641 = vmatpush.bf16.msra.mxu0 %v2616
    %2642 = vmatpush.bf16.msra.mxu0 %v2615
    %2643 = vmatpush.bf16.msra.mxu0 %v2614
    %2644 = vmatpush.bf16.msra.mxu0 %v2613
    %2645 = vmatpush.bf16.msra.mxu0 %v2612
    %2646 = vmatpush.bf16.msra.mxu0 %v2611
    %2647 = vmatpush.bf16.msra.mxu0 %v2610
    %2648 = vmatpush.bf16.msra.mxu0 %v2609
    %2649 = vmatmul.bf16.gmra.mxu0 %v2477
    %v2650 = vpop.f32.mrf.mxu0
    %v2651 = vadd.f32 %v2543, %v2650
    %v2652 = vpop.f32.mrf.mxu0
    %v2653 = vadd.f32 %v2543, %v2652
    %2654 = vmatmul.bf16.gmra.mxu0 %v2478
    %v2655 = vpop.f32.mrf.mxu0
    %v2656 = vadd.f32 %v2543, %v2655
    %v2657 = vpop.f32.mrf.mxu0
    %v2658 = vadd.f32 %v2543, %v2657
    %2659 = vmatmul.bf16.gmra.mxu0 %v2479
    %v2660 = vpop.f32.mrf.mxu0
    %v2661 = vadd.f32 %v2543, %v2660
    %v2662 = vpop.f32.mrf.mxu0
    %v2663 = vadd.f32 %v2543, %v2662
    %2664 = vmatmul.bf16.gmra.mxu0 %v2480
    %v2665 = vpop.f32.mrf.mxu0
    %v2666 = vadd.f32 %v2543, %v2665
    %v2667 = vpop.f32.mrf.mxu0
    %v2668 = vadd.f32 %v2543, %v2667
    %2669 = vdwg.mxu0
    %2670 = vmatpush.bf16.msra.mxu0 %v2624
    %2671 = vmatpush.bf16.msra.mxu0 %v2623
    %2672 = vmatpush.bf16.msra.mxu0 %v2622
    %2673 = vmatpush.bf16.msra.mxu0 %v2621
    %2674 = vmatpush.bf16.msra.mxu0 %v2620
    %2675 = vmatpush.bf16.msra.mxu0 %v2619
    %2676 = vmatpush.bf16.msra.mxu0 %v2618
    %2677 = vmatpush.bf16.msra.mxu0 %v2617
    %2678 = vmatmul.bf16.gmra.mxu0 %v2501
    %v2679 = vpop.f32.mrf.mxu0
    %v2680 = vadd.f32 %v2651, %v2679
    %v2681 = vpop.f32.mrf.mxu0
    %v2682 = vadd.f32 %v2653, %v2681
    %2683 = vmatmul.bf16.gmra.mxu0 %v2502
    %v2684 = vpop.f32.mrf.mxu0
    %v2685 = vadd.f32 %v2656, %v2684
    %v2686 = vpop.f32.mrf.mxu0
    %v2687 = vadd.f32 %v2658, %v2686
    %2688 = vmatmul.bf16.gmra.mxu0 %v2503
    %v2689 = vpop.f32.mrf.mxu0
    %v2690 = vadd.f32 %v2661, %v2689
    %v2691 = vpop.f32.mrf.mxu0
    %v2692 = vadd.f32 %v2663, %v2691
    %2693 = vmatmul.bf16.gmra.mxu0 %v2504
    %v2694 = vpop.f32.mrf.mxu0
    %v2695 = vadd.f32 %v2666, %v2694
    %v2696 = vpop.f32.mrf.mxu0
    %v2697 = vadd.f32 %v2668, %v2696
    %2698 = vdwg.mxu0
    %2699 = vst [vmem:[#allocation15] sm:$0xff] %v2680
    %2700 = vst [vmem:[#allocation15 + $0x8] sm:$0xff] %v2682
    %2701 = vst [vmem:[#allocation15 + $0x10] sm:$0xff] %v2685
    %2702 = vst [vmem:[#allocation15 + $0x18] sm:$0xff] %v2687
    %2703 = vst [vmem:[#allocation15 + $0x20] sm:$0xff] %v2690
    %2704 = vst [vmem:[#allocation15 + $0x28] sm:$0xff] %v2692
    %2705 = vst [vmem:[#allocation15 + $0x30] sm:$0xff] %v2695
    %2706 = vst [vmem:[#allocation15 + $0x38] sm:$0xff] %v2697
    // Predicated region
    $region46: #{tpu_custom_call.1} parent=1 // pred_check
      _
    $region47: #{tpu_custom_call.1} parent=1 // pred_check_branch
      %2708 = sbr.rel (0) target = $region49
    $region48: #{tpu_custom_call.1} parent=1 // pred_region
      %2710 = vsyncadd [#allocation8], 0
      %s2711 = sshll.u32 [#allocation15], 4
      %s2712 = int_to_ptr.vmem [resolvable:$true] %s2711
      %s2713 = sshll.u32 %s6, 4
      %s2714 = int_to_ptr.hbm [resolvable:$true] %s2713
      %2719 = dma.vmem_to_hbm [thread:$0]  %s2712, 1024, %s2714, [#allocation8], 128, 128, 8
    $region49: #{tpu_custom_call.1} parent=1 // pred_fallthru
      _
    // Predicated region
    $region50: #{tpu_custom_call.1} parent=1 // pred_check
      _
    $region51: #{tpu_custom_call.1} parent=1 // pred_check_branch
      %2721 = sbr.rel (0) target = $region53
    $region52: #{tpu_custom_call.1} parent=1 // pred_region
      %2723 = dma.done [#allocation8], 1024
    $region53: #{tpu_custom_call.1} parent=1 // pred_fallthru
      _
    %2724 = vsyncpa [#allocation7], 1
    %2725 = vsyncpa [#allocation10], 1
    %2726 = vsyncpa [#allocation13], 1
    %2727 = vsyncpa [#allocation8], 1

</llo_original>
